<compile_context>
chip_gen: v6e
topology: v6e:2x2x1
jax: 0.10.0
libtpu: 0.0.40
codegen_flags: <defaults>
</compile_context>

<pallas_src>
import functools

import numpy as np
import jax
import jax.numpy as jnp
from jax.experimental import pallas as pl
from jax.experimental.pallas import tpu as pltpu

C_KMS = 299792.458  # speed of light [km/s]
LANES = 128


def _toeplitz_conv_kernel(x_ref, t_ref, out_ref):
    """Banded-Toeplitz (MXU) formulation of the 'same' 1-D convolution.

    x_ref:   VMEM (NB + NQ - 1, 128) f32 : x_ref[r, m] = xpad[r*128 + m]
    t_ref:   VMEM (NQ, 128, 128)     f32 : t_ref[q, m, j] = kern[q*128 + m - j] (0 outside)
    out_ref: VMEM (BLK, 128)         f32 : out_ref[r, j] = broadened[(i*BLK + r)*128 + j]
    """
    blk = out_ref.shape[0]
    nq = t_ref.shape[0]

    i = pl.program_id(0)
    row0 = pl.multiple_of(i * blk, 8)
    # One aligned dynamic load of the whole input window for this output block.
    win = x_ref[pl.ds(row0, blk + nq - 1), :]          # (BLK + NQ - 1, 128)

    acc = jnp.zeros(out_ref.shape, jnp.float32)
    for q in range(nq):                                # static unroll (NQ = 9 matmuls)
        acc = acc + jnp.dot(
            win[q:q + blk, :], t_ref[q],
            preferred_element_type=jnp.float32,
            precision=jax.lax.Precision.HIGHEST,
        )
    out_ref[...] = acc                                 # single lane-dense store


def extrinsic_forward(high_res_model, ln_vsini, kernel_grid, median_wl, *, block_rows=16):
    """JAX/Pallas equivalent of ExtrinsicModel.forward(high_res_model)."""
    flux = jnp.asarray(high_res_model, jnp.float32)
    n = flux.shape[0]
    k = kernel_grid.shape[0]

    # ---- parameter glue: rotational-broadening taps (plain JAX, tiny) -------
    ln_vsini = jnp.asarray(ln_vsini, jnp.float32)
    vsini = 0.9 + jnp.exp(ln_vsini)
    velocity_grid = C_KMS * kernel_grid.astype(jnp.float32) / median_wl
    x = velocity_grid / vsini
    x2 = jnp.minimum(x * x, 1.0)                       # torch.clamp(x2, max=1)
    kern = jnp.where(x2 < 0.99999999, 2.0 * jnp.sqrt(1.0 - x2), 0.0)
    kern = (kern / jnp.sum(kern)).astype(jnp.float32)

    # ---- Toeplitz tap matrices: T[q, m, j] = kern[q*128 + m - j] -------------
    nq = (k + LANES - 2) // LANES + 1                  # number of 128-wide tap bands
    q_np = np.arange(nq)[:, None, None]
    m_np = np.arange(LANES)[None, :, None]
    j_np = np.arange(LANES)[None, None, :]
    tap_idx = q_np * LANES + m_np - j_np               # static (numpy) index structure
    tap_idx = np.where((tap_idx >= 0) & (tap_idx < k), tap_idx, k).astype(np.int32)
    kern_z = jnp.concatenate([kern, jnp.zeros((1,), jnp.float32)])   # slot k == 0.0
    tmats = kern_z[tap_idx]                            # (NQ, 128, 128) f32

    # ---- layout glue: 'same' padding + lane-dense row blocks (pad + reshape) -
    assert n % LANES == 0, "flux length must be a multiple of 128"
    nb = n // LANES
    blk = min(block_rows, nb)
    assert blk % 8 == 0 and nb % blk == 0, "block_rows must tile the output rows"

    pad_left = (k - 1) // 2
    total = (nb + nq - 1) * LANES
    xpad = jnp.pad(flux, (pad_left, total - n - pad_left))
    x2d = xpad.reshape(nb + nq - 1, LANES)             # x2d[r, m] = xpad[r*128 + m]

    # ---- hot path: banded-Toeplitz matmuls on the MXU ------------------------
    out2 = pl.pallas_call(
        _toeplitz_conv_kernel,
        out_shape=jax.ShapeDtypeStruct((nb, LANES), jnp.float32),
        grid=(nb // blk,),
        in_specs=[
            pl.BlockSpec((nb + nq - 1, LANES), lambda i: (0, 0)),      # resident flux rows
            pl.BlockSpec((nq, LANES, LANES), lambda i: (0, 0, 0)),     # resident tap matrices
        ],
        out_specs=pl.BlockSpec((blk, LANES), lambda i: (i, 0)),        # lane-dense output
        compiler_params=pltpu.CompilerParams(
            dimension_semantics=("parallel",),
            vmem_limit_bytes=32 * 1024 * 1024,
        ),
    )(x2d, tmats)

    # out2[b, j] == broadened_flux[b*128 + j]  -> transpose-free unchunk
    return out2.reshape(n)


if __name__ == "__main__":
    key = jax.random.PRNGKey(0)
    n = 4096

    # native wavelength grid (Angstroms) -> median_wl, as in the torch __init__
    wl_native = np.linspace(10500.0, 10600.0, n)
    median_wl = float(np.median(wl_native))

    # kernel_grid = torch.arange(-4.5, 4.51, 0.01)  -> 901 points
    kernel_grid_np = np.arange(-4.5, 4.51, 0.01)
    kernel_grid = jnp.asarray(kernel_grid_np, dtype=jnp.float32)

    # deterministic parameter init: nn.Parameter(torch.tensor(2.89))
    ln_vsini = jnp.float32(2.89)

    # synthetic high-resolution model flux (continuum ~1 with noise-like features)
    flux = 1.0 + 0.1 * jax.random.normal(key, (n,), dtype=jnp.float32)

    fwd = jax.jit(functools.partial(extrinsic_forward, block_rows=16))
    out = fwd(flux, ln_vsini, kernel_grid, median_wl)
    out = jax.block_until_ready(out)

    # float64 numpy reference mirroring the torch forward exactly
    vsini_ref = 0.9 + np.exp(2.89)
    vel = C_KMS * kernel_grid_np / median_wl
    xv = vel / vsini_ref
    x2v = np.minimum(xv * xv, 1.0)
    kern_ref = np.where(x2v < 0.99999999, 2.0 * np.sqrt(1.0 - x2v), 0.0)
    kern_ref = kern_ref / kern_ref.sum()
    k = kernel_grid_np.shape[0]
    xpad_np = np.pad(np.asarray(flux, np.float64),
                     ((k - 1) // 2, k - 1 - (k - 1) // 2))
    ref = np.array([np.dot(kern_ref, xpad_np[i:i + k]) for i in range(n)])

    np.testing.assert_allclose(np.asarray(out, np.float64), ref, rtol=2e-3, atol=2e-3)
    print("KERNEL_OK")
</pallas_src>

<mosaic_0001>
module attributes {stable_mosaic.version = 11 : i64} {
  func.func @_toeplitz_conv_kernel(%arg0: i32, %arg1: memref<40x128xf32, #tpu.memory_space<vmem>>, %arg2: memref<9x128x128xf32, #tpu.memory_space<vmem>>, %arg3: memref<16x128xf32, #tpu.memory_space<vmem>>) attributes {dimension_semantics = [#tpu.dimension_semantics<parallel>], iteration_bounds = array<i64: 2>, scalar_prefetch = 0 : i64, scratch_operands = 0 : i64, tpu.core_type = #tpu.core_type<tc>, window_params = [{pipeline_mode = #tpu.pipeline_mode<synchronous>, transform_indices = @transform_0, window_bounds = array<i64: 40, 128>}, {pipeline_mode = #tpu.pipeline_mode<synchronous>, transform_indices = @transform_1, window_bounds = array<i64: 9, 128, 128>}, {transform_indices = @transform_2, window_bounds = array<i64: 16, 128>}]} {
    %c16_i32 = arith.constant 16 : i32
    %0 = arith.muli %arg0, %c16_i32 : i32
    %1 = tpu.assume_multiple %0, 8 : i32
    %2 = arith.index_cast %1 : i32 to index
    %c0 = arith.constant 0 : index
    %3 = vector.load %arg1[%2, %c0] : memref<40x128xf32, #tpu.memory_space<vmem>>, vector<24x128xf32>
    %cst = arith.constant 0.000000e+00 : f32
    %4 = vector.broadcast %cst : f32 to vector<16x128xf32>
    %5 = vector.extract_strided_slice %3 {offsets = [0, 0], sizes = [16, 128], strides = [1, 1]} : vector<24x128xf32> to vector<16x128xf32>
    %c0_0 = arith.constant 0 : index
    %c0_1 = arith.constant 0 : index
    %c0_2 = arith.constant 0 : index
    %6 = vector.load %arg2[%c0_0, %c0_1, %c0_2] : memref<9x128x128xf32, #tpu.memory_space<vmem>>, vector<1x128x128xf32>
    %7 = vector.shape_cast %6 : vector<1x128x128xf32> to vector<128x128xf32>
    %cst_3 = arith.constant dense<0.000000e+00> : vector<16x128xf32>
    %8 = tpu.matmul %5, %7, %cst_3 {dimension_numbers = #tpu.dot_dimension_numbers<[1], [0], [0], [1], [0, 0, 1, 1], [], []>, precision = #tpu.contract_precision<fp32>} : vector<16x128xf32>, vector<128x128xf32>, vector<16x128xf32> -> vector<16x128xf32>
    %9 = arith.addf %4, %8 : vector<16x128xf32>
    %10 = vector.extract_strided_slice %3 {offsets = [1, 0], sizes = [16, 128], strides = [1, 1]} : vector<24x128xf32> to vector<16x128xf32>
    %c1 = arith.constant 1 : index
    %c0_4 = arith.constant 0 : index
    %c0_5 = arith.constant 0 : index
    %11 = vector.load %arg2[%c1, %c0_4, %c0_5] : memref<9x128x128xf32, #tpu.memory_space<vmem>>, vector<1x128x128xf32>
    %12 = vector.shape_cast %11 : vector<1x128x128xf32> to vector<128x128xf32>
    %cst_6 = arith.constant dense<0.000000e+00> : vector<16x128xf32>
    %13 = tpu.matmul %10, %12, %cst_6 {dimension_numbers = #tpu.dot_dimension_numbers<[1], [0], [0], [1], [0, 0, 1, 1], [], []>, precision = #tpu.contract_precision<fp32>} : vector<16x128xf32>, vector<128x128xf32>, vector<16x128xf32> -> vector<16x128xf32>
    %14 = arith.addf %9, %13 : vector<16x128xf32>
    %15 = vector.extract_strided_slice %3 {offsets = [2, 0], sizes = [16, 128], strides = [1, 1]} : vector<24x128xf32> to vector<16x128xf32>
    %c2 = arith.constant 2 : index
    %c0_7 = arith.constant 0 : index
    %c0_8 = arith.constant 0 : index
    %16 = vector.load %arg2[%c2, %c0_7, %c0_8] : memref<9x128x128xf32, #tpu.memory_space<vmem>>, vector<1x128x128xf32>
    %17 = vector.shape_cast %16 : vector<1x128x128xf32> to vector<128x128xf32>
    %cst_9 = arith.constant dense<0.000000e+00> : vector<16x128xf32>
    %18 = tpu.matmul %15, %17, %cst_9 {dimension_numbers = #tpu.dot_dimension_numbers<[1], [0], [0], [1], [0, 0, 1, 1], [], []>, precision = #tpu.contract_precision<fp32>} : vector<16x128xf32>, vector<128x128xf32>, vector<16x128xf32> -> vector<16x128xf32>
    %19 = arith.addf %14, %18 : vector<16x128xf32>
    %20 = vector.extract_strided_slice %3 {offsets = [3, 0], sizes = [16, 128], strides = [1, 1]} : vector<24x128xf32> to vector<16x128xf32>
    %c3 = arith.constant 3 : index
    %c0_10 = arith.constant 0 : index
    %c0_11 = arith.constant 0 : index
    %21 = vector.load %arg2[%c3, %c0_10, %c0_11] : memref<9x128x128xf32, #tpu.memory_space<vmem>>, vector<1x128x128xf32>
    %22 = vector.shape_cast %21 : vector<1x128x128xf32> to vector<128x128xf32>
    %cst_12 = arith.constant dense<0.000000e+00> : vector<16x128xf32>
    %23 = tpu.matmul %20, %22, %cst_12 {dimension_numbers = #tpu.dot_dimension_numbers<[1], [0], [0], [1], [0, 0, 1, 1], [], []>, precision = #tpu.contract_precision<fp32>} : vector<16x128xf32>, vector<128x128xf32>, vector<16x128xf32> -> vector<16x128xf32>
    %24 = arith.addf %19, %23 : vector<16x128xf32>
    %25 = vector.extract_strided_slice %3 {offsets = [4, 0], sizes = [16, 128], strides = [1, 1]} : vector<24x128xf32> to vector<16x128xf32>
    %c4 = arith.constant 4 : index
    %c0_13 = arith.constant 0 : index
    %c0_14 = arith.constant 0 : index
    %26 = vector.load %arg2[%c4, %c0_13, %c0_14] : memref<9x128x128xf32, #tpu.memory_space<vmem>>, vector<1x128x128xf32>
    %27 = vector.shape_cast %26 : vector<1x128x128xf32> to vector<128x128xf32>
    %cst_15 = arith.constant dense<0.000000e+00> : vector<16x128xf32>
    %28 = tpu.matmul %25, %27, %cst_15 {dimension_numbers = #tpu.dot_dimension_numbers<[1], [0], [0], [1], [0, 0, 1, 1], [], []>, precision = #tpu.contract_precision<fp32>} : vector<16x128xf32>, vector<128x128xf32>, vector<16x128xf32> -> vector<16x128xf32>
    %29 = arith.addf %24, %28 : vector<16x128xf32>
    %30 = vector.extract_strided_slice %3 {offsets = [5, 0], sizes = [16, 128], strides = [1, 1]} : vector<24x128xf32> to vector<16x128xf32>
    %c5 = arith.constant 5 : index
    %c0_16 = arith.constant 0 : index
    %c0_17 = arith.constant 0 : index
    %31 = vector.load %arg2[%c5, %c0_16, %c0_17] : memref<9x128x128xf32, #tpu.memory_space<vmem>>, vector<1x128x128xf32>
    %32 = vector.shape_cast %31 : vector<1x128x128xf32> to vector<128x128xf32>
    %cst_18 = arith.constant dense<0.000000e+00> : vector<16x128xf32>
    %33 = tpu.matmul %30, %32, %cst_18 {dimension_numbers = #tpu.dot_dimension_numbers<[1], [0], [0], [1], [0, 0, 1, 1], [], []>, precision = #tpu.contract_precision<fp32>} : vector<16x128xf32>, vector<128x128xf32>, vector<16x128xf32> -> vector<16x128xf32>
    %34 = arith.addf %29, %33 : vector<16x128xf32>
    %35 = vector.extract_strided_slice %3 {offsets = [6, 0], sizes = [16, 128], strides = [1, 1]} : vector<24x128xf32> to vector<16x128xf32>
    %c6 = arith.constant 6 : index
    %c0_19 = arith.constant 0 : index
    %c0_20 = arith.constant 0 : index
    %36 = vector.load %arg2[%c6, %c0_19, %c0_20] : memref<9x128x128xf32, #tpu.memory_space<vmem>>, vector<1x128x128xf32>
    %37 = vector.shape_cast %36 : vector<1x128x128xf32> to vector<128x128xf32>
    %cst_21 = arith.constant dense<0.000000e+00> : vector<16x128xf32>
    %38 = tpu.matmul %35, %37, %cst_21 {dimension_numbers = #tpu.dot_dimension_numbers<[1], [0], [0], [1], [0, 0, 1, 1], [], []>, precision = #tpu.contract_precision<fp32>} : vector<16x128xf32>, vector<128x128xf32>, vector<16x128xf32> -> vector<16x128xf32>
    %39 = arith.addf %34, %38 : vector<16x128xf32>
    %40 = vector.extract_strided_slice %3 {offsets = [7, 0], sizes = [16, 128], strides = [1, 1]} : vector<24x128xf32> to vector<16x128xf32>
    %c7 = arith.constant 7 : index
    %c0_22 = arith.constant 0 : index
    %c0_23 = arith.constant 0 : index
    %41 = vector.load %arg2[%c7, %c0_22, %c0_23] : memref<9x128x128xf32, #tpu.memory_space<vmem>>, vector<1x128x128xf32>
    %42 = vector.shape_cast %41 : vector<1x128x128xf32> to vector<128x128xf32>
    %cst_24 = arith.constant dense<0.000000e+00> : vector<16x128xf32>
    %43 = tpu.matmul %40, %42, %cst_24 {dimension_numbers = #tpu.dot_dimension_numbers<[1], [0], [0], [1], [0, 0, 1, 1], [], []>, precision = #tpu.contract_precision<fp32>} : vector<16x128xf32>, vector<128x128xf32>, vector<16x128xf32> -> vector<16x128xf32>
    %44 = arith.addf %39, %43 : vector<16x128xf32>
    %45 = vector.extract_strided_slice %3 {offsets = [8, 0], sizes = [16, 128], strides = [1, 1]} : vector<24x128xf32> to vector<16x128xf32>
    %c8 = arith.constant 8 : index
    %c0_25 = arith.constant 0 : index
    %c0_26 = arith.constant 0 : index
    %46 = vector.load %arg2[%c8, %c0_25, %c0_26] : memref<9x128x128xf32, #tpu.memory_space<vmem>>, vector<1x128x128xf32>
    %47 = vector.shape_cast %46 : vector<1x128x128xf32> to vector<128x128xf32>
    %cst_27 = arith.constant dense<0.000000e+00> : vector<16x128xf32>
    %48 = tpu.matmul %45, %47, %cst_27 {dimension_numbers = #tpu.dot_dimension_numbers<[1], [0], [0], [1], [0, 0, 1, 1], [], []>, precision = #tpu.contract_precision<fp32>} : vector<16x128xf32>, vector<128x128xf32>, vector<16x128xf32> -> vector<16x128xf32>
    %49 = arith.addf %44, %48 : vector<16x128xf32>
    %c0_28 = arith.constant 0 : index
    %c0_29 = arith.constant 0 : index
    %50 = vector.load %arg3[%c0_28, %c0_29] : memref<16x128xf32, #tpu.memory_space<vmem>>, vector<16x128xf32>
    tpu.vector_store %arg3[%c0_28, %c0_29], %49 {strides = array<i32>} : memref<16x128xf32, #tpu.memory_space<vmem>>, vector<16x128xf32>,
    return
  }
  func.func @transform_0(%arg0: i32) -> (i32, i32) {
    %c0_i32 = arith.constant 0 : i32
    %c0_i32_0 = arith.constant 0 : i32
    %c0_i32_1 = arith.constant 0 : i32
    return %c0_i32, %c0_i32_0 : i32, i32
  }
  func.func @transform_1(%arg0: i32) -> (i32, i32, i32) {
    %c0_i32 = arith.constant 0 : i32
    %c0_i32_0 = arith.constant 0 : i32
    %c0_i32_1 = arith.constant 0 : i32
    %c0_i32_2 = arith.constant 0 : i32
    return %c0_i32, %c0_i32_0, %c0_i32_1 : i32, i32, i32
  }
  func.func @transform_2(%arg0: i32) -> (i32, i32) {
    %c0_i32 = arith.constant 0 : i32
    %c0_i32_0 = arith.constant 0 : i32
    return %arg0, %c0_i32 : i32, i32
  }
}

</mosaic_0001>

<llo_original>
// kernel: extrinsic_forward.1
$region0: #{extrinsic_forward.1}
  #allocation0 [shape = 'u32[]', space=smem, size = 0x4, offset = 0x4, fixed_abs, tag = 'smem constant byte address 0x4 - core index']
  #allocation1 [shape = 'u32[144,128]{1,0:T(1,128)}', space=vmem, size = 0x12000, scoped, tag = 'internal scratch']
  %s0 = inlined_call_operand.vmem [shape: f32[40,128], index: 0, kind: input, shape index: {}]
  %s1 = inlined_call_operand.vmem [shape: f32[9,128,128], index: 1, kind: input, shape index: {}]
  %s2 = inlined_call_operand.hbm [shape: f32[32,128], index: 2, kind: output, shape index: {}]
  %s3 = sld [smem:[#allocation0]]
  $region41: #{extrinsic_forward.1} parent=0
    _
  %s5 = ssub.s32 1, %s3
  %s6 = scalar_select 0, %s5, %s3
  $region1: #{extrinsic_forward.1} parent=0
    #allocation2 [shape = 'u8[16384]{0}', space=vmem, size = 0x4000, scoped, tag = 'output window, operand 0']
    #allocation3 [shape = 's32[2]{0}', space=sflag, size = 0x8, scoped, tag = 'scoped memory for extrinsic_forward.1']
    %7 = vsyncpa [#allocation3], 0
    %s8 = scalar_lea.sflag [#allocation3], 1
    %9 = vsyncpa %s8, 0
    loop: start=0, step=1, limit=4
    $region2: #{extrinsic_forward.1} parent=1 // loop_pre_header
      _
    $region3: #{extrinsic_forward.1} parent=1 // loop_header
      %s11 = sphi 0, %s15
      %p12 = scmp.ge.s32.totalorder %s11, 4
      %s19 = sphi 0, %s19
      %s21 = sphi 0, %s19
      %s22 = sphi 0, %s21
      %s36 = sphi 0, %s22
      %s40 = sphi 0, %s40
      %s42 = sphi 0, %s40
      %s43 = sphi 0, %s42
      %s57 = sphi 0, %s43
      %s63 = sphi 0, %s65
      %s66 = sphi 0, %s63
      %s67 = sphi 0, %s66
      %s83 = sphi 0, %s67
    $region4: #{extrinsic_forward.1} parent=1 // loop_header_branch
      %14 = sbr.rel (%p12) target = $region8
    $region5: #{extrinsic_forward.1} parent=1 // loop_body
      %s16 = ssub.s32 %s11, 1
      %s17 = ssub.s32 %s11, 2
      %s18 = sadd.s32 %s11, 1
      %s20 = sadd.s32 %s19, 1
      %p23 = scmp.eq.s32.totalorder %s11, 1
      %p24 = scmp.ne.s32.totalorder %s19, %s21
      %p25 = scmp.eq.s32.totalorder %s11, 0
      %p26 = por %p24, %p25
      %p27 = scmp.ne.s32.totalorder %s19, %s21
      %p28 = scmp.eq.s32.totalorder %s16, 1
      %p29 = por %p27, %p28
      %p30 = scmp.ne.s32.totalorder %s21, %s22
      %p31 = scmp.eq.s32.totalorder %s16, 0
      %p32 = por %p30, %p31
      %p33 = scmp.ne.s32.totalorder %s21, %s22
      %p34 = scmp.eq.s32.totalorder %s17, 1
      %p35 = por %p33, %p34
      %p37 = scmp.ne.s32.totalorder %s22, %s36
      %p38 = scmp.eq.s32.totalorder %s17, 0
      %p39 = por %p37, %p38
      %s41 = sadd.s32 %s40, 1
      %p44 = scmp.eq.s32.totalorder %s11, 1
      %p45 = scmp.ne.s32.totalorder %s40, %s42
      %p46 = scmp.eq.s32.totalorder %s11, 0
      %p47 = por %p45, %p46
      %p48 = scmp.ne.s32.totalorder %s40, %s42
      %p49 = scmp.eq.s32.totalorder %s16, 1
      %p50 = por %p48, %p49
      %p51 = scmp.ne.s32.totalorder %s42, %s43
      %p52 = scmp.eq.s32.totalorder %s16, 0
      %p53 = por %p51, %p52
      %p54 = scmp.ne.s32.totalorder %s42, %s43
      %p55 = scmp.eq.s32.totalorder %s17, 1
      %p56 = por %p54, %p55
      %p58 = scmp.ne.s32.totalorder %s43, %s57
      %p59 = scmp.eq.s32.totalorder %s17, 0
      %p60 = por %p58, %p59
      %s61 = ssub.s32 %s11, %s18
      %p62 = scmp.eq.s32.totalorder %s61, 0
      %s64 = sadd.s32 %s63, 1
      %s65 = scalar_select %p62, %s63, %s64
      %p68 = pneg %p62
      %p69 = scmp.eq.s32.totalorder %s11, 1
      %p70 = por %p68, %p69
      %p71 = scmp.ne.s32.totalorder %s63, %s66
      %p72 = scmp.eq.s32.totalorder %s11, 0
      %p73 = por %p71, %p72
      %p74 = scmp.ne.s32.totalorder %s63, %s66
      %p75 = scmp.eq.s32.totalorder %s16, 1
      %p76 = por %p74, %p75
      %p77 = scmp.ne.s32.totalorder %s66, %s67
      %p78 = scmp.eq.s32.totalorder %s16, 0
      %p79 = por %p77, %p78
      %p80 = scmp.ne.s32.totalorder %s66, %s67
      %p81 = scmp.eq.s32.totalorder %s17, 1
      %p82 = por %p80, %p81
      %p84 = scmp.ne.s32.totalorder %s67, %s83
      %p85 = scmp.eq.s32.totalorder %s17, 0
      %p86 = por %p84, %p85
      %p87 = scmp.le.s32.totalorder 1, %s11
      %p88 = scmp.lt.s32.totalorder %s11, 3
      %p89 = pnand %p87, %p88
      %p90 = pneg %p89
      // Predicated region
      $region9: #{extrinsic_forward.1} parent=5 // pred_check
        _
      $region10: #{extrinsic_forward.1} parent=5 // pred_check_branch
        %92 = sbr.rel (%p89) target = $region12
      $region11: #{extrinsic_forward.1} parent=5 // pred_region
        %s93 = ssub.s32 %s11, 1
        // Predicated region
        $region13: #{extrinsic_forward.1} parent=11 // pred_check
          %p94 = pneg %p32
        $region14: #{extrinsic_forward.1} parent=11 // pred_check_branch
          %96 = sbr.rel (%p94) target = $region16
        $region15: #{extrinsic_forward.1} parent=11 // pred_region
          _
        $region16: #{extrinsic_forward.1} parent=11 // pred_fallthru
          _
        // Predicated region
        $region17: #{extrinsic_forward.1} parent=11 // pred_check
          %p97 = pneg %p53
        $region18: #{extrinsic_forward.1} parent=11 // pred_check_branch
          %99 = sbr.rel (%p97) target = $region20
        $region19: #{extrinsic_forward.1} parent=11 // pred_region
          _
        $region20: #{extrinsic_forward.1} parent=11 // pred_fallthru
          _
      $region12: #{extrinsic_forward.1} parent=5 // pred_fallthru
        _
      %p100 = scmp.lt.s32.totalorder %s11, 2
      // Predicated region
      $region21: #{extrinsic_forward.1} parent=5 // pred_check
        %p101 = pneg %p100
      $region22: #{extrinsic_forward.1} parent=5 // pred_check_branch
        %103 = sbr.rel (%p101) target = $region24
      $region23: #{extrinsic_forward.1} parent=5 // pred_region
        _
      $region24: #{extrinsic_forward.1} parent=5 // pred_fallthru
        _
      %p104 = scmp.le.s32.totalorder 1, %s11
      %p105 = scmp.lt.s32.totalorder %s11, 3
      %p106 = pnand %p104, %p105
      %p107 = pneg %p106
      // Predicated region
      $region25: #{extrinsic_forward.1} parent=5 // pred_check
        _
      $region26: #{extrinsic_forward.1} parent=5 // pred_check_branch
        %109 = sbr.rel (%p106) target = $region28
      $region27: #{extrinsic_forward.1} parent=5 // pred_region
        %s110 = ssub.s32 %s11, 1
        %p111 = pneg %p32
        %p112 = pneg %p29
        %p113 = pneg %p53
        %p114 = pneg %p50
        %p115 = pneg %p79
        %p116 = pneg %p76
        %s117 = sand.u32 %s66, 1
        %s118 = scalar_lea.sflag [#allocation3], %s117
        %s119 = sand.u32 %s66, 1
        %s120 = smul.addr %s119, 16
        %s121 = scalar_lea.vmem [#allocation2], %s120
        %s122 = smul.u32 2, %s16
        %s123 = smul.u32 %s16, 16
        %s124 = scalar_lea.vmem %s0, %s123
        %v125 = vld [vmem:[%s124] sm:$0xff]
        %v126 = vld [vmem:[%s124 + $0x8] sm:$0xff]
        %v127 = vld [vmem:[%s124 + $0x10] sm:$0xff]
        %v128 = vld [vmem:[%s1] sm:$0xff]
        %v129 = vld [vmem:[%s1 + $0x8] sm:$0xff]
        %v130 = vld [vmem:[%s1 + $0x10] sm:$0xff]
        %v131 = vld [vmem:[%s1 + $0x18] sm:$0xff]
        %v132 = vld [vmem:[%s1 + $0x20] sm:$0xff]
        %v133 = vld [vmem:[%s1 + $0x28] sm:$0xff]
        %v134 = vld [vmem:[%s1 + $0x30] sm:$0xff]
        %v135 = vld [vmem:[%s1 + $0x38] sm:$0xff]
        %v136 = vld [vmem:[%s1 + $0x40] sm:$0xff]
        %v137 = vld [vmem:[%s1 + $0x48] sm:$0xff]
        %v138 = vld [vmem:[%s1 + $0x50] sm:$0xff]
        %v139 = vld [vmem:[%s1 + $0x58] sm:$0xff]
        %v140 = vld [vmem:[%s1 + $0x60] sm:$0xff]
        %v141 = vld [vmem:[%s1 + $0x68] sm:$0xff]
        %v142 = vld [vmem:[%s1 + $0x70] sm:$0xff]
        %v143 = vld [vmem:[%s1 + $0x78] sm:$0xff]
        %s144 = scalar_lea.vmem %s1, 128
        %v145 = vld [vmem:[%s144] sm:$0xff]
        %v146 = vld [vmem:[%s144 + $0x8] sm:$0xff]
        %v147 = vld [vmem:[%s144 + $0x10] sm:$0xff]
        %v148 = vld [vmem:[%s144 + $0x18] sm:$0xff]
        %v149 = vld [vmem:[%s144 + $0x20] sm:$0xff]
        %v150 = vld [vmem:[%s144 + $0x28] sm:$0xff]
        %v151 = vld [vmem:[%s144 + $0x30] sm:$0xff]
        %v152 = vld [vmem:[%s144 + $0x38] sm:$0xff]
        %v153 = vld [vmem:[%s144 + $0x40] sm:$0xff]
        %v154 = vld [vmem:[%s144 + $0x48] sm:$0xff]
        %v155 = vld [vmem:[%s144 + $0x50] sm:$0xff]
        %v156 = vld [vmem:[%s144 + $0x58] sm:$0xff]
        %v157 = vld [vmem:[%s144 + $0x60] sm:$0xff]
        %v158 = vld [vmem:[%s144 + $0x68] sm:$0xff]
        %v159 = vld [vmem:[%s144 + $0x70] sm:$0xff]
        %v160 = vld [vmem:[%s144 + $0x78] sm:$0xff]
        %vm164 = vcmask 1046528
        %v165 = vrot.slane %v125, 1
        %v166 = vrot.slane %v126, 1
        %v167 = vsel %vm164, %v165, %v166
        %v168 = vrot.slane %v127, 1
        %v169 = vsel %vm164, %v166, %v168
        %172 = vmatprep.subr.mxu0 0.0
        %v173 = vand.u32 %v160, 4294901760
        %174 = vmatpush1.msra.mxu0 %v173
        %175 = vmatprep.subr.mxu0 0.0
        %v176 = vand.u32 %v159, 4294901760
        %177 = vmatpush1.msra.mxu0 %v176
        %178 = vmatprep.subr.mxu0 0.0
        %v179 = vand.u32 %v158, 4294901760
        %180 = vmatpush1.msra.mxu0 %v179
        %181 = vmatprep.subr.mxu0 0.0
        %v182 = vand.u32 %v157, 4294901760
        %183 = vmatpush1.msra.mxu0 %v182
        %184 = vmatprep.subr.mxu0 0.0
        %v185 = vand.u32 %v156, 4294901760
        %186 = vmatpush1.msra.mxu0 %v185
        %187 = vmatprep.subr.mxu0 0.0
        %v188 = vand.u32 %v155, 4294901760
        %189 = vmatpush1.msra.mxu0 %v188
        %190 = vmatprep.subr.mxu0 0.0
        %v191 = vand.u32 %v154, 4294901760
        %192 = vmatpush1.msra.mxu0 %v191
        %193 = vmatprep.subr.mxu0 0.0
        %v194 = vand.u32 %v153, 4294901760
        %195 = vmatpush1.msra.mxu0 %v194
        %196 = vmatprep.subr.mxu0 0.0
        %v197 = vand.u32 %v152, 4294901760
        %198 = vmatpush1.msra.mxu0 %v197
        %199 = vmatprep.subr.mxu0 0.0
        %v200 = vand.u32 %v151, 4294901760
        %201 = vmatpush1.msra.mxu0 %v200
        %202 = vmatprep.subr.mxu0 0.0
        %v203 = vand.u32 %v150, 4294901760
        %204 = vmatpush1.msra.mxu0 %v203
        %205 = vmatprep.subr.mxu0 0.0
        %v206 = vand.u32 %v149, 4294901760
        %207 = vmatpush1.msra.mxu0 %v206
        %208 = vmatprep.subr.mxu0 0.0
        %v209 = vand.u32 %v148, 4294901760
        %210 = vmatpush1.msra.mxu0 %v209
        %211 = vmatprep.subr.mxu0 0.0
        %v212 = vand.u32 %v147, 4294901760
        %213 = vmatpush1.msra.mxu0 %v212
        %214 = vmatprep.subr.mxu0 0.0
        %v215 = vand.u32 %v146, 4294901760
        %216 = vmatpush1.msra.mxu0 %v215
        %217 = vmatprep.subr.mxu0 0.0
        %v218 = vand.u32 %v145, 4294901760
        %219 = vmatpush1.msra.mxu0 %v218
        %220 = vmatprep.subr.mxu0 0.0
        %221 = vmatpush2.msra.mxu0 0.0
        %222 = vmatprep.subr.mxu0 0.0
        %223 = vmatpush2.msra.mxu0 0.0
        %224 = vmatprep.subr.mxu0 0.0
        %225 = vmatpush2.msra.mxu0 0.0
        %226 = vmatprep.subr.mxu0 0.0
        %227 = vmatpush2.msra.mxu0 0.0
        %228 = vmatprep.subr.mxu0 0.0
        %229 = vmatpush2.msra.mxu0 0.0
        %230 = vmatprep.subr.mxu0 0.0
        %231 = vmatpush2.msra.mxu0 0.0
        %232 = vmatprep.subr.mxu0 0.0
        %233 = vmatpush2.msra.mxu0 0.0
        %234 = vmatprep.subr.mxu0 0.0
        %235 = vmatpush2.msra.mxu0 0.0
        %236 = vmatprep.subr.mxu0 0.0
        %237 = vmatpush2.msra.mxu0 0.0
        %238 = vmatprep.subr.mxu0 0.0
        %239 = vmatpush2.msra.mxu0 0.0
        %240 = vmatprep.subr.mxu0 0.0
        %241 = vmatpush2.msra.mxu0 0.0
        %242 = vmatprep.subr.mxu0 0.0
        %243 = vmatpush2.msra.mxu0 0.0
        %244 = vmatprep.subr.mxu0 0.0
        %245 = vmatpush2.msra.mxu0 0.0
        %246 = vmatprep.subr.mxu0 0.0
        %247 = vmatpush2.msra.mxu0 0.0
        %248 = vmatprep.subr.mxu0 0.0
        %249 = vmatpush2.msra.mxu0 0.0
        %250 = vmatprep.subr.mxu0 0.0
        %251 = vmatpush2.msra.mxu0 0.0
        %252 = vmatprep.mubr.f32.mxu0 0.0
        %v253 = vand.u32 %v167, 4294901760
        %v254 = vsub.f32 %v167, %v253
        %v255 = vand.u32 %v254, 4294901760
        %v256 = vsub.f32 %v254, %v255
        %v257 = vand.u32 %v256, 4294901760
        %258 = vmatmul.mubr.f32.gmra.mxu0 %v257
        %v259 = vpop.f32.mrf.mxu0
        %v260 = vadd.f32 0.0, %v259
        %v261 = vpop.f32.mrf.mxu0
        %262 = vmatprep.mubr.f32.mxu0 0.0
        %v263 = vand.u32 %v169, 4294901760
        %v264 = vsub.f32 %v169, %v263
        %v265 = vand.u32 %v264, 4294901760
        %v266 = vsub.f32 %v264, %v265
        %v267 = vand.u32 %v266, 4294901760
        %268 = vmatmul.mubr.f32.gmra.mxu0 %v267
        %v269 = vpop.f32.mrf.mxu0
        %v270 = vadd.f32 0.0, %v269
        %v271 = vpop.f32.mrf.mxu0
        %272 = vdwg.mxu0
        %273 = vmatprep.subr.mxu0 0.0
        %v274 = vand.u32 %v160, 4294901760
        %v275 = vsub.f32 %v160, %v274
        %v276 = vand.u32 %v275, 4294901760
        %v277 = vsub.f32 %v275, %v276
        %v278 = vand.u32 %v277, 4294901760
        %279 = vmatpush1.msra.mxu0 %v278
        %280 = vmatprep.subr.mxu0 0.0
        %v281 = vand.u32 %v159, 4294901760
        %v282 = vsub.f32 %v159, %v281
        %v283 = vand.u32 %v282, 4294901760
        %v284 = vsub.f32 %v282, %v283
        %v285 = vand.u32 %v284, 4294901760
        %286 = vmatpush1.msra.mxu0 %v285
        %287 = vmatprep.subr.mxu0 0.0
        %v288 = vand.u32 %v158, 4294901760
        %v289 = vsub.f32 %v158, %v288
        %v290 = vand.u32 %v289, 4294901760
        %v291 = vsub.f32 %v289, %v290
        %v292 = vand.u32 %v291, 4294901760
        %293 = vmatpush1.msra.mxu0 %v292
        %294 = vmatprep.subr.mxu0 0.0
        %v295 = vand.u32 %v157, 4294901760
        %v296 = vsub.f32 %v157, %v295
        %v297 = vand.u32 %v296, 4294901760
        %v298 = vsub.f32 %v296, %v297
        %v299 = vand.u32 %v298, 4294901760
        %300 = vmatpush1.msra.mxu0 %v299
        %301 = vmatprep.subr.mxu0 0.0
        %v302 = vand.u32 %v156, 4294901760
        %v303 = vsub.f32 %v156, %v302
        %v304 = vand.u32 %v303, 4294901760
        %v305 = vsub.f32 %v303, %v304
        %v306 = vand.u32 %v305, 4294901760
        %307 = vmatpush1.msra.mxu0 %v306
        %308 = vmatprep.subr.mxu0 0.0
        %v309 = vand.u32 %v155, 4294901760
        %v310 = vsub.f32 %v155, %v309
        %v311 = vand.u32 %v310, 4294901760
        %v312 = vsub.f32 %v310, %v311
        %v313 = vand.u32 %v312, 4294901760
        %314 = vmatpush1.msra.mxu0 %v313
        %315 = vmatprep.subr.mxu0 0.0
        %v316 = vand.u32 %v154, 4294901760
        %v317 = vsub.f32 %v154, %v316
        %v318 = vand.u32 %v317, 4294901760
        %v319 = vsub.f32 %v317, %v318
        %v320 = vand.u32 %v319, 4294901760
        %321 = vmatpush1.msra.mxu0 %v320
        %322 = vmatprep.subr.mxu0 0.0
        %v323 = vand.u32 %v153, 4294901760
        %v324 = vsub.f32 %v153, %v323
        %v325 = vand.u32 %v324, 4294901760
        %v326 = vsub.f32 %v324, %v325
        %v327 = vand.u32 %v326, 4294901760
        %328 = vmatpush1.msra.mxu0 %v327
        %329 = vmatprep.subr.mxu0 0.0
        %v330 = vand.u32 %v152, 4294901760
        %v331 = vsub.f32 %v152, %v330
        %v332 = vand.u32 %v331, 4294901760
        %v333 = vsub.f32 %v331, %v332
        %v334 = vand.u32 %v333, 4294901760
        %335 = vmatpush1.msra.mxu0 %v334
        %336 = vmatprep.subr.mxu0 0.0
        %v337 = vand.u32 %v151, 4294901760
        %v338 = vsub.f32 %v151, %v337
        %v339 = vand.u32 %v338, 4294901760
        %v340 = vsub.f32 %v338, %v339
        %v341 = vand.u32 %v340, 4294901760
        %342 = vmatpush1.msra.mxu0 %v341
        %343 = vmatprep.subr.mxu0 0.0
        %v344 = vand.u32 %v150, 4294901760
        %v345 = vsub.f32 %v150, %v344
        %v346 = vand.u32 %v345, 4294901760
        %v347 = vsub.f32 %v345, %v346
        %v348 = vand.u32 %v347, 4294901760
        %349 = vmatpush1.msra.mxu0 %v348
        %350 = vmatprep.subr.mxu0 0.0
        %v351 = vand.u32 %v149, 4294901760
        %v352 = vsub.f32 %v149, %v351
        %v353 = vand.u32 %v352, 4294901760
        %v354 = vsub.f32 %v352, %v353
        %v355 = vand.u32 %v354, 4294901760
        %356 = vmatpush1.msra.mxu0 %v355
        %357 = vmatprep.subr.mxu0 0.0
        %v358 = vand.u32 %v148, 4294901760
        %v359 = vsub.f32 %v148, %v358
        %v360 = vand.u32 %v359, 4294901760
        %v361 = vsub.f32 %v359, %v360
        %v362 = vand.u32 %v361, 4294901760
        %363 = vmatpush1.msra.mxu0 %v362
        %364 = vmatprep.subr.mxu0 0.0
        %v365 = vand.u32 %v147, 4294901760
        %v366 = vsub.f32 %v147, %v365
        %v367 = vand.u32 %v366, 4294901760
        %v368 = vsub.f32 %v366, %v367
        %v369 = vand.u32 %v368, 4294901760
        %370 = vmatpush1.msra.mxu0 %v369
        %371 = vmatprep.subr.mxu0 0.0
        %v372 = vand.u32 %v146, 4294901760
        %v373 = vsub.f32 %v146, %v372
        %v374 = vand.u32 %v373, 4294901760
        %v375 = vsub.f32 %v373, %v374
        %v376 = vand.u32 %v375, 4294901760
        %377 = vmatpush1.msra.mxu0 %v376
        %378 = vmatprep.subr.mxu0 0.0
        %v379 = vand.u32 %v145, 4294901760
        %v380 = vsub.f32 %v145, %v379
        %v381 = vand.u32 %v380, 4294901760
        %v382 = vsub.f32 %v380, %v381
        %v383 = vand.u32 %v382, 4294901760
        %384 = vmatpush1.msra.mxu0 %v383
        %385 = vmatprep.subr.mxu0 0.0
        %386 = vmatpush2.msra.mxu0 0.0
        %387 = vmatprep.subr.mxu0 0.0
        %388 = vmatpush2.msra.mxu0 0.0
        %389 = vmatprep.subr.mxu0 0.0
        %390 = vmatpush2.msra.mxu0 0.0
        %391 = vmatprep.subr.mxu0 0.0
        %392 = vmatpush2.msra.mxu0 0.0
        %393 = vmatprep.subr.mxu0 0.0
        %394 = vmatpush2.msra.mxu0 0.0
        %395 = vmatprep.subr.mxu0 0.0
        %396 = vmatpush2.msra.mxu0 0.0
        %397 = vmatprep.subr.mxu0 0.0
        %398 = vmatpush2.msra.mxu0 0.0
        %399 = vmatprep.subr.mxu0 0.0
        %400 = vmatpush2.msra.mxu0 0.0
        %401 = vmatprep.subr.mxu0 0.0
        %402 = vmatpush2.msra.mxu0 0.0
        %403 = vmatprep.subr.mxu0 0.0
        %404 = vmatpush2.msra.mxu0 0.0
        %405 = vmatprep.subr.mxu0 0.0
        %406 = vmatpush2.msra.mxu0 0.0
        %407 = vmatprep.subr.mxu0 0.0
        %408 = vmatpush2.msra.mxu0 0.0
        %409 = vmatprep.subr.mxu0 0.0
        %410 = vmatpush2.msra.mxu0 0.0
        %411 = vmatprep.subr.mxu0 0.0
        %412 = vmatpush2.msra.mxu0 0.0
        %413 = vmatprep.subr.mxu0 0.0
        %414 = vmatpush2.msra.mxu0 0.0
        %415 = vmatprep.subr.mxu0 0.0
        %416 = vmatpush2.msra.mxu0 0.0
        %417 = vmatprep.mubr.f32.mxu0 0.0
        %v418 = vand.u32 %v167, 4294901760
        %419 = vmatmul.mubr.f32.gmra.mxu0 %v418
        %v420 = vpop.f32.mrf.mxu0
        %v421 = vadd.f32 %v260, %v420
        %v422 = vpop.f32.mrf.mxu0
        %423 = vmatprep.mubr.f32.mxu0 0.0
        %v424 = vand.u32 %v169, 4294901760
        %425 = vmatmul.mubr.f32.gmra.mxu0 %v424
        %v426 = vpop.f32.mrf.mxu0
        %v427 = vadd.f32 %v270, %v426
        %v428 = vpop.f32.mrf.mxu0
        %429 = vdwg.mxu0
        %430 = vmatprep.subr.mxu0 0.0
        %v431 = vand.u32 %v160, 4294901760
        %v432 = vsub.f32 %v160, %v431
        %433 = vmatpush1.msra.mxu0 %v432
        %434 = vmatprep.subr.mxu0 0.0
        %v435 = vand.u32 %v159, 4294901760
        %v436 = vsub.f32 %v159, %v435
        %437 = vmatpush1.msra.mxu0 %v436
        %438 = vmatprep.subr.mxu0 0.0
        %v439 = vand.u32 %v158, 4294901760
        %v440 = vsub.f32 %v158, %v439
        %441 = vmatpush1.msra.mxu0 %v440
        %442 = vmatprep.subr.mxu0 0.0
        %v443 = vand.u32 %v157, 4294901760
        %v444 = vsub.f32 %v157, %v443
        %445 = vmatpush1.msra.mxu0 %v444
        %446 = vmatprep.subr.mxu0 0.0
        %v447 = vand.u32 %v156, 4294901760
        %v448 = vsub.f32 %v156, %v447
        %449 = vmatpush1.msra.mxu0 %v448
        %450 = vmatprep.subr.mxu0 0.0
        %v451 = vand.u32 %v155, 4294901760
        %v452 = vsub.f32 %v155, %v451
        %453 = vmatpush1.msra.mxu0 %v452
        %454 = vmatprep.subr.mxu0 0.0
        %v455 = vand.u32 %v154, 4294901760
        %v456 = vsub.f32 %v154, %v455
        %457 = vmatpush1.msra.mxu0 %v456
        %458 = vmatprep.subr.mxu0 0.0
        %v459 = vand.u32 %v153, 4294901760
        %v460 = vsub.f32 %v153, %v459
        %461 = vmatpush1.msra.mxu0 %v460
        %462 = vmatprep.subr.mxu0 0.0
        %v463 = vand.u32 %v152, 4294901760
        %v464 = vsub.f32 %v152, %v463
        %465 = vmatpush1.msra.mxu0 %v464
        %466 = vmatprep.subr.mxu0 0.0
        %v467 = vand.u32 %v151, 4294901760
        %v468 = vsub.f32 %v151, %v467
        %469 = vmatpush1.msra.mxu0 %v468
        %470 = vmatprep.subr.mxu0 0.0
        %v471 = vand.u32 %v150, 4294901760
        %v472 = vsub.f32 %v150, %v471
        %473 = vmatpush1.msra.mxu0 %v472
        %474 = vmatprep.subr.mxu0 0.0
        %v475 = vand.u32 %v149, 4294901760
        %v476 = vsub.f32 %v149, %v475
        %477 = vmatpush1.msra.mxu0 %v476
        %478 = vmatprep.subr.mxu0 0.0
        %v479 = vand.u32 %v148, 4294901760
        %v480 = vsub.f32 %v148, %v479
        %481 = vmatpush1.msra.mxu0 %v480
        %482 = vmatprep.subr.mxu0 0.0
        %v483 = vand.u32 %v147, 4294901760
        %v484 = vsub.f32 %v147, %v483
        %485 = vmatpush1.msra.mxu0 %v484
        %486 = vmatprep.subr.mxu0 0.0
        %v487 = vand.u32 %v146, 4294901760
        %v488 = vsub.f32 %v146, %v487
        %489 = vmatpush1.msra.mxu0 %v488
        %490 = vmatprep.subr.mxu0 0.0
        %v491 = vand.u32 %v145, 4294901760
        %v492 = vsub.f32 %v145, %v491
        %493 = vmatpush1.msra.mxu0 %v492
        %494 = vmatprep.subr.mxu0 0.0
        %495 = vmatpush2.msra.mxu0 0.0
        %496 = vmatprep.subr.mxu0 0.0
        %497 = vmatpush2.msra.mxu0 0.0
        %498 = vmatprep.subr.mxu0 0.0
        %499 = vmatpush2.msra.mxu0 0.0
        %500 = vmatprep.subr.mxu0 0.0
        %501 = vmatpush2.msra.mxu0 0.0
        %502 = vmatprep.subr.mxu0 0.0
        %503 = vmatpush2.msra.mxu0 0.0
        %504 = vmatprep.subr.mxu0 0.0
        %505 = vmatpush2.msra.mxu0 0.0
        %506 = vmatprep.subr.mxu0 0.0
        %507 = vmatpush2.msra.mxu0 0.0
        %508 = vmatprep.subr.mxu0 0.0
        %509 = vmatpush2.msra.mxu0 0.0
        %510 = vmatprep.subr.mxu0 0.0
        %511 = vmatpush2.msra.mxu0 0.0
        %512 = vmatprep.subr.mxu0 0.0
        %513 = vmatpush2.msra.mxu0 0.0
        %514 = vmatprep.subr.mxu0 0.0
        %515 = vmatpush2.msra.mxu0 0.0
        %516 = vmatprep.subr.mxu0 0.0
        %517 = vmatpush2.msra.mxu0 0.0
        %518 = vmatprep.subr.mxu0 0.0
        %519 = vmatpush2.msra.mxu0 0.0
        %520 = vmatprep.subr.mxu0 0.0
        %521 = vmatpush2.msra.mxu0 0.0
        %522 = vmatprep.subr.mxu0 0.0
        %523 = vmatpush2.msra.mxu0 0.0
        %524 = vmatprep.subr.mxu0 0.0
        %525 = vmatpush2.msra.mxu0 0.0
        %526 = vmatprep.mubr.f32.mxu0 0.0
        %v527 = vand.u32 %v167, 4294901760
        %v528 = vsub.f32 %v167, %v527
        %529 = vmatmul.mubr.f32.gmra.mxu0 %v528
        %v530 = vpop.f32.mrf.mxu0
        %v531 = vadd.f32 %v421, %v530
        %v532 = vpop.f32.mrf.mxu0
        %533 = vmatprep.mubr.f32.mxu0 0.0
        %v534 = vand.u32 %v169, 4294901760
        %v535 = vsub.f32 %v169, %v534
        %536 = vmatmul.mubr.f32.gmra.mxu0 %v535
        %v537 = vpop.f32.mrf.mxu0
        %v538 = vadd.f32 %v427, %v537
        %v539 = vpop.f32.mrf.mxu0
        %540 = vdwg.mxu0
        %541 = vmatprep.subr.mxu0 0.0
        %v542 = vand.u32 %v160, 4294901760
        %543 = vmatpush1.msra.mxu0 %v542
        %544 = vmatprep.subr.mxu0 0.0
        %v545 = vand.u32 %v159, 4294901760
        %546 = vmatpush1.msra.mxu0 %v545
        %547 = vmatprep.subr.mxu0 0.0
        %v548 = vand.u32 %v158, 4294901760
        %549 = vmatpush1.msra.mxu0 %v548
        %550 = vmatprep.subr.mxu0 0.0
        %v551 = vand.u32 %v157, 4294901760
        %552 = vmatpush1.msra.mxu0 %v551
        %553 = vmatprep.subr.mxu0 0.0
        %v554 = vand.u32 %v156, 4294901760
        %555 = vmatpush1.msra.mxu0 %v554
        %556 = vmatprep.subr.mxu0 0.0
        %v557 = vand.u32 %v155, 4294901760
        %558 = vmatpush1.msra.mxu0 %v557
        %559 = vmatprep.subr.mxu0 0.0
        %v560 = vand.u32 %v154, 4294901760
        %561 = vmatpush1.msra.mxu0 %v560
        %562 = vmatprep.subr.mxu0 0.0
        %v563 = vand.u32 %v153, 4294901760
        %564 = vmatpush1.msra.mxu0 %v563
        %565 = vmatprep.subr.mxu0 0.0
        %v566 = vand.u32 %v152, 4294901760
        %567 = vmatpush1.msra.mxu0 %v566
        %568 = vmatprep.subr.mxu0 0.0
        %v569 = vand.u32 %v151, 4294901760
        %570 = vmatpush1.msra.mxu0 %v569
        %571 = vmatprep.subr.mxu0 0.0
        %v572 = vand.u32 %v150, 4294901760
        %573 = vmatpush1.msra.mxu0 %v572
        %574 = vmatprep.subr.mxu0 0.0
        %v575 = vand.u32 %v149, 4294901760
        %576 = vmatpush1.msra.mxu0 %v575
        %577 = vmatprep.subr.mxu0 0.0
        %v578 = vand.u32 %v148, 4294901760
        %579 = vmatpush1.msra.mxu0 %v578
        %580 = vmatprep.subr.mxu0 0.0
        %v581 = vand.u32 %v147, 4294901760
        %582 = vmatpush1.msra.mxu0 %v581
        %583 = vmatprep.subr.mxu0 0.0
        %v584 = vand.u32 %v146, 4294901760
        %585 = vmatpush1.msra.mxu0 %v584
        %586 = vmatprep.subr.mxu0 0.0
        %v587 = vand.u32 %v145, 4294901760
        %588 = vmatpush1.msra.mxu0 %v587
        %589 = vmatprep.subr.mxu0 0.0
        %590 = vmatpush2.msra.mxu0 0.0
        %591 = vmatprep.subr.mxu0 0.0
        %592 = vmatpush2.msra.mxu0 0.0
        %593 = vmatprep.subr.mxu0 0.0
        %594 = vmatpush2.msra.mxu0 0.0
        %595 = vmatprep.subr.mxu0 0.0
        %596 = vmatpush2.msra.mxu0 0.0
        %597 = vmatprep.subr.mxu0 0.0
        %598 = vmatpush2.msra.mxu0 0.0
        %599 = vmatprep.subr.mxu0 0.0
        %600 = vmatpush2.msra.mxu0 0.0
        %601 = vmatprep.subr.mxu0 0.0
        %602 = vmatpush2.msra.mxu0 0.0
        %603 = vmatprep.subr.mxu0 0.0
        %604 = vmatpush2.msra.mxu0 0.0
        %605 = vmatprep.subr.mxu0 0.0
        %606 = vmatpush2.msra.mxu0 0.0
        %607 = vmatprep.subr.mxu0 0.0
        %608 = vmatpush2.msra.mxu0 0.0
        %609 = vmatprep.subr.mxu0 0.0
        %610 = vmatpush2.msra.mxu0 0.0
        %611 = vmatprep.subr.mxu0 0.0
        %612 = vmatpush2.msra.mxu0 0.0
        %613 = vmatprep.subr.mxu0 0.0
        %614 = vmatpush2.msra.mxu0 0.0
        %615 = vmatprep.subr.mxu0 0.0
        %616 = vmatpush2.msra.mxu0 0.0
        %617 = vmatprep.subr.mxu0 0.0
        %618 = vmatpush2.msra.mxu0 0.0
        %619 = vmatprep.subr.mxu0 0.0
        %620 = vmatpush2.msra.mxu0 0.0
        %621 = vmatprep.mubr.f32.mxu0 0.0
        %v622 = vand.u32 %v167, 4294901760
        %v623 = vsub.f32 %v167, %v622
        %v624 = vand.u32 %v623, 4294901760
        %625 = vmatmul.mubr.f32.gmra.mxu0 %v624
        %v626 = vpop.f32.mrf.mxu0
        %v627 = vadd.f32 %v531, %v626
        %v628 = vpop.f32.mrf.mxu0
        %629 = vmatprep.mubr.f32.mxu0 0.0
        %v630 = vand.u32 %v169, 4294901760
        %v631 = vsub.f32 %v169, %v630
        %v632 = vand.u32 %v631, 4294901760
        %633 = vmatmul.mubr.f32.gmra.mxu0 %v632
        %v634 = vpop.f32.mrf.mxu0
        %v635 = vadd.f32 %v538, %v634
        %v636 = vpop.f32.mrf.mxu0
        %637 = vdwg.mxu0
        %638 = vmatprep.subr.mxu0 0.0
        %v639 = vand.u32 %v160, 4294901760
        %v640 = vsub.f32 %v160, %v639
        %v641 = vand.u32 %v640, 4294901760
        %642 = vmatpush1.msra.mxu0 %v641
        %643 = vmatprep.subr.mxu0 0.0
        %v644 = vand.u32 %v159, 4294901760
        %v645 = vsub.f32 %v159, %v644
        %v646 = vand.u32 %v645, 4294901760
        %647 = vmatpush1.msra.mxu0 %v646
        %648 = vmatprep.subr.mxu0 0.0
        %v649 = vand.u32 %v158, 4294901760
        %v650 = vsub.f32 %v158, %v649
        %v651 = vand.u32 %v650, 4294901760
        %652 = vmatpush1.msra.mxu0 %v651
        %653 = vmatprep.subr.mxu0 0.0
        %v654 = vand.u32 %v157, 4294901760
        %v655 = vsub.f32 %v157, %v654
        %v656 = vand.u32 %v655, 4294901760
        %657 = vmatpush1.msra.mxu0 %v656
        %658 = vmatprep.subr.mxu0 0.0
        %v659 = vand.u32 %v156, 4294901760
        %v660 = vsub.f32 %v156, %v659
        %v661 = vand.u32 %v660, 4294901760
        %662 = vmatpush1.msra.mxu0 %v661
        %663 = vmatprep.subr.mxu0 0.0
        %v664 = vand.u32 %v155, 4294901760
        %v665 = vsub.f32 %v155, %v664
        %v666 = vand.u32 %v665, 4294901760
        %667 = vmatpush1.msra.mxu0 %v666
        %668 = vmatprep.subr.mxu0 0.0
        %v669 = vand.u32 %v154, 4294901760
        %v670 = vsub.f32 %v154, %v669
        %v671 = vand.u32 %v670, 4294901760
        %672 = vmatpush1.msra.mxu0 %v671
        %673 = vmatprep.subr.mxu0 0.0
        %v674 = vand.u32 %v153, 4294901760
        %v675 = vsub.f32 %v153, %v674
        %v676 = vand.u32 %v675, 4294901760
        %677 = vmatpush1.msra.mxu0 %v676
        %678 = vmatprep.subr.mxu0 0.0
        %v679 = vand.u32 %v152, 4294901760
        %v680 = vsub.f32 %v152, %v679
        %v681 = vand.u32 %v680, 4294901760
        %682 = vmatpush1.msra.mxu0 %v681
        %683 = vmatprep.subr.mxu0 0.0
        %v684 = vand.u32 %v151, 4294901760
        %v685 = vsub.f32 %v151, %v684
        %v686 = vand.u32 %v685, 4294901760
        %687 = vmatpush1.msra.mxu0 %v686
        %688 = vmatprep.subr.mxu0 0.0
        %v689 = vand.u32 %v150, 4294901760
        %v690 = vsub.f32 %v150, %v689
        %v691 = vand.u32 %v690, 4294901760
        %692 = vmatpush1.msra.mxu0 %v691
        %693 = vmatprep.subr.mxu0 0.0
        %v694 = vand.u32 %v149, 4294901760
        %v695 = vsub.f32 %v149, %v694
        %v696 = vand.u32 %v695, 4294901760
        %697 = vmatpush1.msra.mxu0 %v696
        %698 = vmatprep.subr.mxu0 0.0
        %v699 = vand.u32 %v148, 4294901760
        %v700 = vsub.f32 %v148, %v699
        %v701 = vand.u32 %v700, 4294901760
        %702 = vmatpush1.msra.mxu0 %v701
        %703 = vmatprep.subr.mxu0 0.0
        %v704 = vand.u32 %v147, 4294901760
        %v705 = vsub.f32 %v147, %v704
        %v706 = vand.u32 %v705, 4294901760
        %707 = vmatpush1.msra.mxu0 %v706
        %708 = vmatprep.subr.mxu0 0.0
        %v709 = vand.u32 %v146, 4294901760
        %v710 = vsub.f32 %v146, %v709
        %v711 = vand.u32 %v710, 4294901760
        %712 = vmatpush1.msra.mxu0 %v711
        %713 = vmatprep.subr.mxu0 0.0
        %v714 = vand.u32 %v145, 4294901760
        %v715 = vsub.f32 %v145, %v714
        %v716 = vand.u32 %v715, 4294901760
        %717 = vmatpush1.msra.mxu0 %v716
        %718 = vmatprep.subr.mxu0 0.0
        %719 = vmatpush2.msra.mxu0 0.0
        %720 = vmatprep.subr.mxu0 0.0
        %721 = vmatpush2.msra.mxu0 0.0
        %722 = vmatprep.subr.mxu0 0.0
        %723 = vmatpush2.msra.mxu0 0.0
        %724 = vmatprep.subr.mxu0 0.0
        %725 = vmatpush2.msra.mxu0 0.0
        %726 = vmatprep.subr.mxu0 0.0
        %727 = vmatpush2.msra.mxu0 0.0
        %728 = vmatprep.subr.mxu0 0.0
        %729 = vmatpush2.msra.mxu0 0.0
        %730 = vmatprep.subr.mxu0 0.0
        %731 = vmatpush2.msra.mxu0 0.0
        %732 = vmatprep.subr.mxu0 0.0
        %733 = vmatpush2.msra.mxu0 0.0
        %734 = vmatprep.subr.mxu0 0.0
        %735 = vmatpush2.msra.mxu0 0.0
        %736 = vmatprep.subr.mxu0 0.0
        %737 = vmatpush2.msra.mxu0 0.0
        %738 = vmatprep.subr.mxu0 0.0
        %739 = vmatpush2.msra.mxu0 0.0
        %740 = vmatprep.subr.mxu0 0.0
        %741 = vmatpush2.msra.mxu0 0.0
        %742 = vmatprep.subr.mxu0 0.0
        %743 = vmatpush2.msra.mxu0 0.0
        %744 = vmatprep.subr.mxu0 0.0
        %745 = vmatpush2.msra.mxu0 0.0
        %746 = vmatprep.subr.mxu0 0.0
        %747 = vmatpush2.msra.mxu0 0.0
        %748 = vmatprep.subr.mxu0 0.0
        %749 = vmatpush2.msra.mxu0 0.0
        %750 = vmatprep.mubr.f32.mxu0 0.0
        %v751 = vand.u32 %v167, 4294901760
        %752 = vmatmul.mubr.f32.gmra.mxu0 %v751
        %v753 = vpop.f32.mrf.mxu0
        %v754 = vadd.f32 %v627, %v753
        %v755 = vpop.f32.mrf.mxu0
        %756 = vmatprep.mubr.f32.mxu0 0.0
        %v757 = vand.u32 %v169, 4294901760
        %758 = vmatmul.mubr.f32.gmra.mxu0 %v757
        %v759 = vpop.f32.mrf.mxu0
        %v760 = vadd.f32 %v635, %v759
        %v761 = vpop.f32.mrf.mxu0
        %762 = vdwg.mxu0
        %763 = vmatprep.subr.mxu0 0.0
        %v764 = vand.u32 %v160, 4294901760
        %765 = vmatpush1.msra.mxu0 %v764
        %766 = vmatprep.subr.mxu0 0.0
        %v767 = vand.u32 %v159, 4294901760
        %768 = vmatpush1.msra.mxu0 %v767
        %769 = vmatprep.subr.mxu0 0.0
        %v770 = vand.u32 %v158, 4294901760
        %771 = vmatpush1.msra.mxu0 %v770
        %772 = vmatprep.subr.mxu0 0.0
        %v773 = vand.u32 %v157, 4294901760
        %774 = vmatpush1.msra.mxu0 %v773
        %775 = vmatprep.subr.mxu0 0.0
        %v776 = vand.u32 %v156, 4294901760
        %777 = vmatpush1.msra.mxu0 %v776
        %778 = vmatprep.subr.mxu0 0.0
        %v779 = vand.u32 %v155, 4294901760
        %780 = vmatpush1.msra.mxu0 %v779
        %781 = vmatprep.subr.mxu0 0.0
        %v782 = vand.u32 %v154, 4294901760
        %783 = vmatpush1.msra.mxu0 %v782
        %784 = vmatprep.subr.mxu0 0.0
        %v785 = vand.u32 %v153, 4294901760
        %786 = vmatpush1.msra.mxu0 %v785
        %787 = vmatprep.subr.mxu0 0.0
        %v788 = vand.u32 %v152, 4294901760
        %789 = vmatpush1.msra.mxu0 %v788
        %790 = vmatprep.subr.mxu0 0.0
        %v791 = vand.u32 %v151, 4294901760
        %792 = vmatpush1.msra.mxu0 %v791
        %793 = vmatprep.subr.mxu0 0.0
        %v794 = vand.u32 %v150, 4294901760
        %795 = vmatpush1.msra.mxu0 %v794
        %796 = vmatprep.subr.mxu0 0.0
        %v797 = vand.u32 %v149, 4294901760
        %798 = vmatpush1.msra.mxu0 %v797
        %799 = vmatprep.subr.mxu0 0.0
        %v800 = vand.u32 %v148, 4294901760
        %801 = vmatpush1.msra.mxu0 %v800
        %802 = vmatprep.subr.mxu0 0.0
        %v803 = vand.u32 %v147, 4294901760
        %804 = vmatpush1.msra.mxu0 %v803
        %805 = vmatprep.subr.mxu0 0.0
        %v806 = vand.u32 %v146, 4294901760
        %807 = vmatpush1.msra.mxu0 %v806
        %808 = vmatprep.subr.mxu0 0.0
        %v809 = vand.u32 %v145, 4294901760
        %810 = vmatpush1.msra.mxu0 %v809
        %811 = vmatprep.subr.mxu0 0.0
        %812 = vmatpush2.msra.mxu0 0.0
        %813 = vmatprep.subr.mxu0 0.0
        %814 = vmatpush2.msra.mxu0 0.0
        %815 = vmatprep.subr.mxu0 0.0
        %816 = vmatpush2.msra.mxu0 0.0
        %817 = vmatprep.subr.mxu0 0.0
        %818 = vmatpush2.msra.mxu0 0.0
        %819 = vmatprep.subr.mxu0 0.0
        %820 = vmatpush2.msra.mxu0 0.0
        %821 = vmatprep.subr.mxu0 0.0
        %822 = vmatpush2.msra.mxu0 0.0
        %823 = vmatprep.subr.mxu0 0.0
        %824 = vmatpush2.msra.mxu0 0.0
        %825 = vmatprep.subr.mxu0 0.0
        %826 = vmatpush2.msra.mxu0 0.0
        %827 = vmatprep.subr.mxu0 0.0
        %828 = vmatpush2.msra.mxu0 0.0
        %829 = vmatprep.subr.mxu0 0.0
        %830 = vmatpush2.msra.mxu0 0.0
        %831 = vmatprep.subr.mxu0 0.0
        %832 = vmatpush2.msra.mxu0 0.0
        %833 = vmatprep.subr.mxu0 0.0
        %834 = vmatpush2.msra.mxu0 0.0
        %835 = vmatprep.subr.mxu0 0.0
        %836 = vmatpush2.msra.mxu0 0.0
        %837 = vmatprep.subr.mxu0 0.0
        %838 = vmatpush2.msra.mxu0 0.0
        %839 = vmatprep.subr.mxu0 0.0
        %840 = vmatpush2.msra.mxu0 0.0
        %841 = vmatprep.subr.mxu0 0.0
        %842 = vmatpush2.msra.mxu0 0.0
        %843 = vmatprep.mubr.f32.mxu0 0.0
        %v844 = vand.u32 %v167, 4294901760
        %845 = vmatmul.mubr.f32.gmra.mxu0 %v844
        %v846 = vpop.f32.mrf.mxu0
        %v847 = vadd.f32 %v754, %v846
        %v848 = vpop.f32.mrf.mxu0
        %849 = vmatprep.mubr.f32.mxu0 0.0
        %v850 = vand.u32 %v169, 4294901760
        %851 = vmatmul.mubr.f32.gmra.mxu0 %v850
        %v852 = vpop.f32.mrf.mxu0
        %v853 = vadd.f32 %v760, %v852
        %v854 = vpop.f32.mrf.mxu0
        %855 = vdwg.mxu0
        %856 = vmatprep.subr.mxu0 0.0
        %v857 = vand.u32 %v143, 4294901760
        %858 = vmatpush1.msra.mxu0 %v857
        %859 = vmatprep.subr.mxu0 0.0
        %v860 = vand.u32 %v142, 4294901760
        %861 = vmatpush1.msra.mxu0 %v860
        %862 = vmatprep.subr.mxu0 0.0
        %v863 = vand.u32 %v141, 4294901760
        %864 = vmatpush1.msra.mxu0 %v863
        %865 = vmatprep.subr.mxu0 0.0
        %v866 = vand.u32 %v140, 4294901760
        %867 = vmatpush1.msra.mxu0 %v866
        %868 = vmatprep.subr.mxu0 0.0
        %v869 = vand.u32 %v139, 4294901760
        %870 = vmatpush1.msra.mxu0 %v869
        %871 = vmatprep.subr.mxu0 0.0
        %v872 = vand.u32 %v138, 4294901760
        %873 = vmatpush1.msra.mxu0 %v872
        %874 = vmatprep.subr.mxu0 0.0
        %v875 = vand.u32 %v137, 4294901760
        %876 = vmatpush1.msra.mxu0 %v875
        %877 = vmatprep.subr.mxu0 0.0
        %v878 = vand.u32 %v136, 4294901760
        %879 = vmatpush1.msra.mxu0 %v878
        %880 = vmatprep.subr.mxu0 0.0
        %v881 = vand.u32 %v135, 4294901760
        %882 = vmatpush1.msra.mxu0 %v881
        %883 = vmatprep.subr.mxu0 0.0
        %v884 = vand.u32 %v134, 4294901760
        %885 = vmatpush1.msra.mxu0 %v884
        %886 = vmatprep.subr.mxu0 0.0
        %v887 = vand.u32 %v133, 4294901760
        %888 = vmatpush1.msra.mxu0 %v887
        %889 = vmatprep.subr.mxu0 0.0
        %v890 = vand.u32 %v132, 4294901760
        %891 = vmatpush1.msra.mxu0 %v890
        %892 = vmatprep.subr.mxu0 0.0
        %v893 = vand.u32 %v131, 4294901760
        %894 = vmatpush1.msra.mxu0 %v893
        %895 = vmatprep.subr.mxu0 0.0
        %v896 = vand.u32 %v130, 4294901760
        %897 = vmatpush1.msra.mxu0 %v896
        %898 = vmatprep.subr.mxu0 0.0
        %v899 = vand.u32 %v129, 4294901760
        %900 = vmatpush1.msra.mxu0 %v899
        %901 = vmatprep.subr.mxu0 0.0
        %v902 = vand.u32 %v128, 4294901760
        %903 = vmatpush1.msra.mxu0 %v902
        %904 = vmatprep.subr.mxu0 0.0
        %905 = vmatpush2.msra.mxu0 0.0
        %906 = vmatprep.subr.mxu0 0.0
        %907 = vmatpush2.msra.mxu0 0.0
        %908 = vmatprep.subr.mxu0 0.0
        %909 = vmatpush2.msra.mxu0 0.0
        %910 = vmatprep.subr.mxu0 0.0
        %911 = vmatpush2.msra.mxu0 0.0
        %912 = vmatprep.subr.mxu0 0.0
        %913 = vmatpush2.msra.mxu0 0.0
        %914 = vmatprep.subr.mxu0 0.0
        %915 = vmatpush2.msra.mxu0 0.0
        %916 = vmatprep.subr.mxu0 0.0
        %917 = vmatpush2.msra.mxu0 0.0
        %918 = vmatprep.subr.mxu0 0.0
        %919 = vmatpush2.msra.mxu0 0.0
        %920 = vmatprep.subr.mxu0 0.0
        %921 = vmatpush2.msra.mxu0 0.0
        %922 = vmatprep.subr.mxu0 0.0
        %923 = vmatpush2.msra.mxu0 0.0
        %924 = vmatprep.subr.mxu0 0.0
        %925 = vmatpush2.msra.mxu0 0.0
        %926 = vmatprep.subr.mxu0 0.0
        %927 = vmatpush2.msra.mxu0 0.0
        %928 = vmatprep.subr.mxu0 0.0
        %929 = vmatpush2.msra.mxu0 0.0
        %930 = vmatprep.subr.mxu0 0.0
        %931 = vmatpush2.msra.mxu0 0.0
        %932 = vmatprep.subr.mxu0 0.0
        %933 = vmatpush2.msra.mxu0 0.0
        %934 = vmatprep.subr.mxu0 0.0
        %935 = vmatpush2.msra.mxu0 0.0
        %936 = vmatprep.mubr.f32.mxu0 0.0
        %v937 = vand.u32 %v125, 4294901760
        %v938 = vsub.f32 %v125, %v937
        %v939 = vand.u32 %v938, 4294901760
        %v940 = vsub.f32 %v938, %v939
        %v941 = vand.u32 %v940, 4294901760
        %942 = vmatmul.mubr.f32.gmra.mxu0 %v941
        %v943 = vpop.f32.mrf.mxu0
        %v944 = vadd.f32 %v847, %v943
        %v945 = vpop.f32.mrf.mxu0
        %946 = vmatprep.mubr.f32.mxu0 0.0
        %v947 = vand.u32 %v126, 4294901760
        %v948 = vsub.f32 %v126, %v947
        %v949 = vand.u32 %v948, 4294901760
        %v950 = vsub.f32 %v948, %v949
        %v951 = vand.u32 %v950, 4294901760
        %952 = vmatmul.mubr.f32.gmra.mxu0 %v951
        %v953 = vpop.f32.mrf.mxu0
        %v954 = vadd.f32 %v853, %v953
        %v955 = vpop.f32.mrf.mxu0
        %956 = vdwg.mxu0
        %957 = vmatprep.subr.mxu0 0.0
        %v958 = vand.u32 %v143, 4294901760
        %v959 = vsub.f32 %v143, %v958
        %v960 = vand.u32 %v959, 4294901760
        %v961 = vsub.f32 %v959, %v960
        %v962 = vand.u32 %v961, 4294901760
        %963 = vmatpush1.msra.mxu0 %v962
        %964 = vmatprep.subr.mxu0 0.0
        %v965 = vand.u32 %v142, 4294901760
        %v966 = vsub.f32 %v142, %v965
        %v967 = vand.u32 %v966, 4294901760
        %v968 = vsub.f32 %v966, %v967
        %v969 = vand.u32 %v968, 4294901760
        %970 = vmatpush1.msra.mxu0 %v969
        %971 = vmatprep.subr.mxu0 0.0
        %v972 = vand.u32 %v141, 4294901760
        %v973 = vsub.f32 %v141, %v972
        %v974 = vand.u32 %v973, 4294901760
        %v975 = vsub.f32 %v973, %v974
        %v976 = vand.u32 %v975, 4294901760
        %977 = vmatpush1.msra.mxu0 %v976
        %978 = vmatprep.subr.mxu0 0.0
        %v979 = vand.u32 %v140, 4294901760
        %v980 = vsub.f32 %v140, %v979
        %v981 = vand.u32 %v980, 4294901760
        %v982 = vsub.f32 %v980, %v981
        %v983 = vand.u32 %v982, 4294901760
        %984 = vmatpush1.msra.mxu0 %v983
        %985 = vmatprep.subr.mxu0 0.0
        %v986 = vand.u32 %v139, 4294901760
        %v987 = vsub.f32 %v139, %v986
        %v988 = vand.u32 %v987, 4294901760
        %v989 = vsub.f32 %v987, %v988
        %v990 = vand.u32 %v989, 4294901760
        %991 = vmatpush1.msra.mxu0 %v990
        %992 = vmatprep.subr.mxu0 0.0
        %v993 = vand.u32 %v138, 4294901760
        %v994 = vsub.f32 %v138, %v993
        %v995 = vand.u32 %v994, 4294901760
        %v996 = vsub.f32 %v994, %v995
        %v997 = vand.u32 %v996, 4294901760
        %998 = vmatpush1.msra.mxu0 %v997
        %999 = vmatprep.subr.mxu0 0.0
        %v1000 = vand.u32 %v137, 4294901760
        %v1001 = vsub.f32 %v137, %v1000
        %v1002 = vand.u32 %v1001, 4294901760
        %v1003 = vsub.f32 %v1001, %v1002
        %v1004 = vand.u32 %v1003, 4294901760
        %1005 = vmatpush1.msra.mxu0 %v1004
        %1006 = vmatprep.subr.mxu0 0.0
        %v1007 = vand.u32 %v136, 4294901760
        %v1008 = vsub.f32 %v136, %v1007
        %v1009 = vand.u32 %v1008, 4294901760
        %v1010 = vsub.f32 %v1008, %v1009
        %v1011 = vand.u32 %v1010, 4294901760
        %1012 = vmatpush1.msra.mxu0 %v1011
        %1013 = vmatprep.subr.mxu0 0.0
        %v1014 = vand.u32 %v135, 4294901760
        %v1015 = vsub.f32 %v135, %v1014
        %v1016 = vand.u32 %v1015, 4294901760
        %v1017 = vsub.f32 %v1015, %v1016
        %v1018 = vand.u32 %v1017, 4294901760
        %1019 = vmatpush1.msra.mxu0 %v1018
        %1020 = vmatprep.subr.mxu0 0.0
        %v1021 = vand.u32 %v134, 4294901760
        %v1022 = vsub.f32 %v134, %v1021
        %v1023 = vand.u32 %v1022, 4294901760
        %v1024 = vsub.f32 %v1022, %v1023
        %v1025 = vand.u32 %v1024, 4294901760
        %1026 = vmatpush1.msra.mxu0 %v1025
        %1027 = vmatprep.subr.mxu0 0.0
        %v1028 = vand.u32 %v133, 4294901760
        %v1029 = vsub.f32 %v133, %v1028
        %v1030 = vand.u32 %v1029, 4294901760
        %v1031 = vsub.f32 %v1029, %v1030
        %v1032 = vand.u32 %v1031, 4294901760
        %1033 = vmatpush1.msra.mxu0 %v1032
        %1034 = vmatprep.subr.mxu0 0.0
        %v1035 = vand.u32 %v132, 4294901760
        %v1036 = vsub.f32 %v132, %v1035
        %v1037 = vand.u32 %v1036, 4294901760
        %v1038 = vsub.f32 %v1036, %v1037
        %v1039 = vand.u32 %v1038, 4294901760
        %1040 = vmatpush1.msra.mxu0 %v1039
        %1041 = vmatprep.subr.mxu0 0.0
        %v1042 = vand.u32 %v131, 4294901760
        %v1043 = vsub.f32 %v131, %v1042
        %v1044 = vand.u32 %v1043, 4294901760
        %v1045 = vsub.f32 %v1043, %v1044
        %v1046 = vand.u32 %v1045, 4294901760
        %1047 = vmatpush1.msra.mxu0 %v1046
        %1048 = vmatprep.subr.mxu0 0.0
        %v1049 = vand.u32 %v130, 4294901760
        %v1050 = vsub.f32 %v130, %v1049
        %v1051 = vand.u32 %v1050, 4294901760
        %v1052 = vsub.f32 %v1050, %v1051
        %v1053 = vand.u32 %v1052, 4294901760
        %1054 = vmatpush1.msra.mxu0 %v1053
        %1055 = vmatprep.subr.mxu0 0.0
        %v1056 = vand.u32 %v129, 4294901760
        %v1057 = vsub.f32 %v129, %v1056
        %v1058 = vand.u32 %v1057, 4294901760
        %v1059 = vsub.f32 %v1057, %v1058
        %v1060 = vand.u32 %v1059, 4294901760
        %1061 = vmatpush1.msra.mxu0 %v1060
        %1062 = vmatprep.subr.mxu0 0.0
        %v1063 = vand.u32 %v128, 4294901760
        %v1064 = vsub.f32 %v128, %v1063
        %v1065 = vand.u32 %v1064, 4294901760
        %v1066 = vsub.f32 %v1064, %v1065
        %v1067 = vand.u32 %v1066, 4294901760
        %1068 = vmatpush1.msra.mxu0 %v1067
        %1069 = vmatprep.subr.mxu0 0.0
        %1070 = vmatpush2.msra.mxu0 0.0
        %1071 = vmatprep.subr.mxu0 0.0
        %1072 = vmatpush2.msra.mxu0 0.0
        %1073 = vmatprep.subr.mxu0 0.0
        %1074 = vmatpush2.msra.mxu0 0.0
        %1075 = vmatprep.subr.mxu0 0.0
        %1076 = vmatpush2.msra.mxu0 0.0
        %1077 = vmatprep.subr.mxu0 0.0
        %1078 = vmatpush2.msra.mxu0 0.0
        %1079 = vmatprep.subr.mxu0 0.0
        %1080 = vmatpush2.msra.mxu0 0.0
        %1081 = vmatprep.subr.mxu0 0.0
        %1082 = vmatpush2.msra.mxu0 0.0
        %1083 = vmatprep.subr.mxu0 0.0
        %1084 = vmatpush2.msra.mxu0 0.0
        %1085 = vmatprep.subr.mxu0 0.0
        %1086 = vmatpush2.msra.mxu0 0.0
        %1087 = vmatprep.subr.mxu0 0.0
        %1088 = vmatpush2.msra.mxu0 0.0
        %1089 = vmatprep.subr.mxu0 0.0
        %1090 = vmatpush2.msra.mxu0 0.0
        %1091 = vmatprep.subr.mxu0 0.0
        %1092 = vmatpush2.msra.mxu0 0.0
        %1093 = vmatprep.subr.mxu0 0.0
        %1094 = vmatpush2.msra.mxu0 0.0
        %1095 = vmatprep.subr.mxu0 0.0
        %1096 = vmatpush2.msra.mxu0 0.0
        %1097 = vmatprep.subr.mxu0 0.0
        %1098 = vmatpush2.msra.mxu0 0.0
        %1099 = vmatprep.subr.mxu0 0.0
        %1100 = vmatpush2.msra.mxu0 0.0
        %1101 = vmatprep.mubr.f32.mxu0 0.0
        %v1102 = vand.u32 %v125, 4294901760
        %1103 = vmatmul.mubr.f32.gmra.mxu0 %v1102
        %v1104 = vpop.f32.mrf.mxu0
        %v1105 = vadd.f32 %v944, %v1104
        %v1106 = vpop.f32.mrf.mxu0
        %1107 = vmatprep.mubr.f32.mxu0 0.0
        %v1108 = vand.u32 %v126, 4294901760
        %1109 = vmatmul.mubr.f32.gmra.mxu0 %v1108
        %v1110 = vpop.f32.mrf.mxu0
        %v1111 = vadd.f32 %v954, %v1110
        %v1112 = vpop.f32.mrf.mxu0
        %1113 = vdwg.mxu0
        %1114 = vmatprep.subr.mxu0 0.0
        %v1115 = vand.u32 %v143, 4294901760
        %v1116 = vsub.f32 %v143, %v1115
        %1117 = vmatpush1.msra.mxu0 %v1116
        %1118 = vmatprep.subr.mxu0 0.0
        %v1119 = vand.u32 %v142, 4294901760
        %v1120 = vsub.f32 %v142, %v1119
        %1121 = vmatpush1.msra.mxu0 %v1120
        %1122 = vmatprep.subr.mxu0 0.0
        %v1123 = vand.u32 %v141, 4294901760
        %v1124 = vsub.f32 %v141, %v1123
        %1125 = vmatpush1.msra.mxu0 %v1124
        %1126 = vmatprep.subr.mxu0 0.0
        %v1127 = vand.u32 %v140, 4294901760
        %v1128 = vsub.f32 %v140, %v1127
        %1129 = vmatpush1.msra.mxu0 %v1128
        %1130 = vmatprep.subr.mxu0 0.0
        %v1131 = vand.u32 %v139, 4294901760
        %v1132 = vsub.f32 %v139, %v1131
        %1133 = vmatpush1.msra.mxu0 %v1132
        %1134 = vmatprep.subr.mxu0 0.0
        %v1135 = vand.u32 %v138, 4294901760
        %v1136 = vsub.f32 %v138, %v1135
        %1137 = vmatpush1.msra.mxu0 %v1136
        %1138 = vmatprep.subr.mxu0 0.0
        %v1139 = vand.u32 %v137, 4294901760
        %v1140 = vsub.f32 %v137, %v1139
        %1141 = vmatpush1.msra.mxu0 %v1140
        %1142 = vmatprep.subr.mxu0 0.0
        %v1143 = vand.u32 %v136, 4294901760
        %v1144 = vsub.f32 %v136, %v1143
        %1145 = vmatpush1.msra.mxu0 %v1144
        %1146 = vmatprep.subr.mxu0 0.0
        %v1147 = vand.u32 %v135, 4294901760
        %v1148 = vsub.f32 %v135, %v1147
        %1149 = vmatpush1.msra.mxu0 %v1148
        %1150 = vmatprep.subr.mxu0 0.0
        %v1151 = vand.u32 %v134, 4294901760
        %v1152 = vsub.f32 %v134, %v1151
        %1153 = vmatpush1.msra.mxu0 %v1152
        %1154 = vmatprep.subr.mxu0 0.0
        %v1155 = vand.u32 %v133, 4294901760
        %v1156 = vsub.f32 %v133, %v1155
        %1157 = vmatpush1.msra.mxu0 %v1156
        %1158 = vmatprep.subr.mxu0 0.0
        %v1159 = vand.u32 %v132, 4294901760
        %v1160 = vsub.f32 %v132, %v1159
        %1161 = vmatpush1.msra.mxu0 %v1160
        %1162 = vmatprep.subr.mxu0 0.0
        %v1163 = vand.u32 %v131, 4294901760
        %v1164 = vsub.f32 %v131, %v1163
        %1165 = vmatpush1.msra.mxu0 %v1164
        %1166 = vmatprep.subr.mxu0 0.0
        %v1167 = vand.u32 %v130, 4294901760
        %v1168 = vsub.f32 %v130, %v1167
        %1169 = vmatpush1.msra.mxu0 %v1168
        %1170 = vmatprep.subr.mxu0 0.0
        %v1171 = vand.u32 %v129, 4294901760
        %v1172 = vsub.f32 %v129, %v1171
        %1173 = vmatpush1.msra.mxu0 %v1172
        %1174 = vmatprep.subr.mxu0 0.0
        %v1175 = vand.u32 %v128, 4294901760
        %v1176 = vsub.f32 %v128, %v1175
        %1177 = vmatpush1.msra.mxu0 %v1176
        %1178 = vmatprep.subr.mxu0 0.0
        %1179 = vmatpush2.msra.mxu0 0.0
        %1180 = vmatprep.subr.mxu0 0.0
        %1181 = vmatpush2.msra.mxu0 0.0
        %1182 = vmatprep.subr.mxu0 0.0
        %1183 = vmatpush2.msra.mxu0 0.0
        %1184 = vmatprep.subr.mxu0 0.0
        %1185 = vmatpush2.msra.mxu0 0.0
        %1186 = vmatprep.subr.mxu0 0.0
        %1187 = vmatpush2.msra.mxu0 0.0
        %1188 = vmatprep.subr.mxu0 0.0
        %1189 = vmatpush2.msra.mxu0 0.0
        %1190 = vmatprep.subr.mxu0 0.0
        %1191 = vmatpush2.msra.mxu0 0.0
        %1192 = vmatprep.subr.mxu0 0.0
        %1193 = vmatpush2.msra.mxu0 0.0
        %1194 = vmatprep.subr.mxu0 0.0
        %1195 = vmatpush2.msra.mxu0 0.0
        %1196 = vmatprep.subr.mxu0 0.0
        %1197 = vmatpush2.msra.mxu0 0.0
        %1198 = vmatprep.subr.mxu0 0.0
        %1199 = vmatpush2.msra.mxu0 0.0
        %1200 = vmatprep.subr.mxu0 0.0
        %1201 = vmatpush2.msra.mxu0 0.0
        %1202 = vmatprep.subr.mxu0 0.0
        %1203 = vmatpush2.msra.mxu0 0.0
        %1204 = vmatprep.subr.mxu0 0.0
        %1205 = vmatpush2.msra.mxu0 0.0
        %1206 = vmatprep.subr.mxu0 0.0
        %1207 = vmatpush2.msra.mxu0 0.0
        %1208 = vmatprep.subr.mxu0 0.0
        %1209 = vmatpush2.msra.mxu0 0.0
        %1210 = vmatprep.mubr.f32.mxu0 0.0
        %v1211 = vand.u32 %v125, 4294901760
        %v1212 = vsub.f32 %v125, %v1211
        %1213 = vmatmul.mubr.f32.gmra.mxu0 %v1212
        %v1214 = vpop.f32.mrf.mxu0
        %v1215 = vadd.f32 %v1105, %v1214
        %v1216 = vpop.f32.mrf.mxu0
        %1217 = vmatprep.mubr.f32.mxu0 0.0
        %v1218 = vand.u32 %v126, 4294901760
        %v1219 = vsub.f32 %v126, %v1218
        %1220 = vmatmul.mubr.f32.gmra.mxu0 %v1219
        %v1221 = vpop.f32.mrf.mxu0
        %v1222 = vadd.f32 %v1111, %v1221
        %v1223 = vpop.f32.mrf.mxu0
        %1224 = vdwg.mxu0
        %1225 = vmatprep.subr.mxu0 0.0
        %v1226 = vand.u32 %v143, 4294901760
        %1227 = vmatpush1.msra.mxu0 %v1226
        %1228 = vmatprep.subr.mxu0 0.0
        %v1229 = vand.u32 %v142, 4294901760
        %1230 = vmatpush1.msra.mxu0 %v1229
        %1231 = vmatprep.subr.mxu0 0.0
        %v1232 = vand.u32 %v141, 4294901760
        %1233 = vmatpush1.msra.mxu0 %v1232
        %1234 = vmatprep.subr.mxu0 0.0
        %v1235 = vand.u32 %v140, 4294901760
        %1236 = vmatpush1.msra.mxu0 %v1235
        %1237 = vmatprep.subr.mxu0 0.0
        %v1238 = vand.u32 %v139, 4294901760
        %1239 = vmatpush1.msra.mxu0 %v1238
        %1240 = vmatprep.subr.mxu0 0.0
        %v1241 = vand.u32 %v138, 4294901760
        %1242 = vmatpush1.msra.mxu0 %v1241
        %1243 = vmatprep.subr.mxu0 0.0
        %v1244 = vand.u32 %v137, 4294901760
        %1245 = vmatpush1.msra.mxu0 %v1244
        %1246 = vmatprep.subr.mxu0 0.0
        %v1247 = vand.u32 %v136, 4294901760
        %1248 = vmatpush1.msra.mxu0 %v1247
        %1249 = vmatprep.subr.mxu0 0.0
        %v1250 = vand.u32 %v135, 4294901760
        %1251 = vmatpush1.msra.mxu0 %v1250
        %1252 = vmatprep.subr.mxu0 0.0
        %v1253 = vand.u32 %v134, 4294901760
        %1254 = vmatpush1.msra.mxu0 %v1253
        %1255 = vmatprep.subr.mxu0 0.0
        %v1256 = vand.u32 %v133, 4294901760
        %1257 = vmatpush1.msra.mxu0 %v1256
        %1258 = vmatprep.subr.mxu0 0.0
        %v1259 = vand.u32 %v132, 4294901760
        %1260 = vmatpush1.msra.mxu0 %v1259
        %1261 = vmatprep.subr.mxu0 0.0
        %v1262 = vand.u32 %v131, 4294901760
        %1263 = vmatpush1.msra.mxu0 %v1262
        %1264 = vmatprep.subr.mxu0 0.0
        %v1265 = vand.u32 %v130, 4294901760
        %1266 = vmatpush1.msra.mxu0 %v1265
        %1267 = vmatprep.subr.mxu0 0.0
        %v1268 = vand.u32 %v129, 4294901760
        %1269 = vmatpush1.msra.mxu0 %v1268
        %1270 = vmatprep.subr.mxu0 0.0
        %v1271 = vand.u32 %v128, 4294901760
        %1272 = vmatpush1.msra.mxu0 %v1271
        %1273 = vmatprep.subr.mxu0 0.0
        %1274 = vmatpush2.msra.mxu0 0.0
        %1275 = vmatprep.subr.mxu0 0.0
        %1276 = vmatpush2.msra.mxu0 0.0
        %1277 = vmatprep.subr.mxu0 0.0
        %1278 = vmatpush2.msra.mxu0 0.0
        %1279 = vmatprep.subr.mxu0 0.0
        %1280 = vmatpush2.msra.mxu0 0.0
        %1281 = vmatprep.subr.mxu0 0.0
        %1282 = vmatpush2.msra.mxu0 0.0
        %1283 = vmatprep.subr.mxu0 0.0
        %1284 = vmatpush2.msra.mxu0 0.0
        %1285 = vmatprep.subr.mxu0 0.0
        %1286 = vmatpush2.msra.mxu0 0.0
        %1287 = vmatprep.subr.mxu0 0.0
        %1288 = vmatpush2.msra.mxu0 0.0
        %1289 = vmatprep.subr.mxu0 0.0
        %1290 = vmatpush2.msra.mxu0 0.0
        %1291 = vmatprep.subr.mxu0 0.0
        %1292 = vmatpush2.msra.mxu0 0.0
        %1293 = vmatprep.subr.mxu0 0.0
        %1294 = vmatpush2.msra.mxu0 0.0
        %1295 = vmatprep.subr.mxu0 0.0
        %1296 = vmatpush2.msra.mxu0 0.0
        %1297 = vmatprep.subr.mxu0 0.0
        %1298 = vmatpush2.msra.mxu0 0.0
        %1299 = vmatprep.subr.mxu0 0.0
        %1300 = vmatpush2.msra.mxu0 0.0
        %1301 = vmatprep.subr.mxu0 0.0
        %1302 = vmatpush2.msra.mxu0 0.0
        %1303 = vmatprep.subr.mxu0 0.0
        %1304 = vmatpush2.msra.mxu0 0.0
        %1305 = vmatprep.mubr.f32.mxu0 0.0
        %v1306 = vand.u32 %v125, 4294901760
        %v1307 = vsub.f32 %v125, %v1306
        %v1308 = vand.u32 %v1307, 4294901760
        %1309 = vmatmul.mubr.f32.gmra.mxu0 %v1308
        %v1310 = vpop.f32.mrf.mxu0
        %v1311 = vadd.f32 %v1215, %v1310
        %v1312 = vpop.f32.mrf.mxu0
        %1313 = vmatprep.mubr.f32.mxu0 0.0
        %v1314 = vand.u32 %v126, 4294901760
        %v1315 = vsub.f32 %v126, %v1314
        %v1316 = vand.u32 %v1315, 4294901760
        %1317 = vmatmul.mubr.f32.gmra.mxu0 %v1316
        %v1318 = vpop.f32.mrf.mxu0
        %v1319 = vadd.f32 %v1222, %v1318
        %v1320 = vpop.f32.mrf.mxu0
        %1321 = vdwg.mxu0
        %1322 = vmatprep.subr.mxu0 0.0
        %v1323 = vand.u32 %v143, 4294901760
        %v1324 = vsub.f32 %v143, %v1323
        %v1325 = vand.u32 %v1324, 4294901760
        %1326 = vmatpush1.msra.mxu0 %v1325
        %1327 = vmatprep.subr.mxu0 0.0
        %v1328 = vand.u32 %v142, 4294901760
        %v1329 = vsub.f32 %v142, %v1328
        %v1330 = vand.u32 %v1329, 4294901760
        %1331 = vmatpush1.msra.mxu0 %v1330
        %1332 = vmatprep.subr.mxu0 0.0
        %v1333 = vand.u32 %v141, 4294901760
        %v1334 = vsub.f32 %v141, %v1333
        %v1335 = vand.u32 %v1334, 4294901760
        %1336 = vmatpush1.msra.mxu0 %v1335
        %1337 = vmatprep.subr.mxu0 0.0
        %v1338 = vand.u32 %v140, 4294901760
        %v1339 = vsub.f32 %v140, %v1338
        %v1340 = vand.u32 %v1339, 4294901760
        %1341 = vmatpush1.msra.mxu0 %v1340
        %1342 = vmatprep.subr.mxu0 0.0
        %v1343 = vand.u32 %v139, 4294901760
        %v1344 = vsub.f32 %v139, %v1343
        %v1345 = vand.u32 %v1344, 4294901760
        %1346 = vmatpush1.msra.mxu0 %v1345
        %1347 = vmatprep.subr.mxu0 0.0
        %v1348 = vand.u32 %v138, 4294901760
        %v1349 = vsub.f32 %v138, %v1348
        %v1350 = vand.u32 %v1349, 4294901760
        %1351 = vmatpush1.msra.mxu0 %v1350
        %1352 = vmatprep.subr.mxu0 0.0
        %v1353 = vand.u32 %v137, 4294901760
        %v1354 = vsub.f32 %v137, %v1353
        %v1355 = vand.u32 %v1354, 4294901760
        %1356 = vmatpush1.msra.mxu0 %v1355
        %1357 = vmatprep.subr.mxu0 0.0
        %v1358 = vand.u32 %v136, 4294901760
        %v1359 = vsub.f32 %v136, %v1358
        %v1360 = vand.u32 %v1359, 4294901760
        %1361 = vmatpush1.msra.mxu0 %v1360
        %1362 = vmatprep.subr.mxu0 0.0
        %v1363 = vand.u32 %v135, 4294901760
        %v1364 = vsub.f32 %v135, %v1363
        %v1365 = vand.u32 %v1364, 4294901760
        %1366 = vmatpush1.msra.mxu0 %v1365
        %1367 = vmatprep.subr.mxu0 0.0
        %v1368 = vand.u32 %v134, 4294901760
        %v1369 = vsub.f32 %v134, %v1368
        %v1370 = vand.u32 %v1369, 4294901760
        %1371 = vmatpush1.msra.mxu0 %v1370
        %1372 = vmatprep.subr.mxu0 0.0
        %v1373 = vand.u32 %v133, 4294901760
        %v1374 = vsub.f32 %v133, %v1373
        %v1375 = vand.u32 %v1374, 4294901760
        %1376 = vmatpush1.msra.mxu0 %v1375
        %1377 = vmatprep.subr.mxu0 0.0
        %v1378 = vand.u32 %v132, 4294901760
        %v1379 = vsub.f32 %v132, %v1378
        %v1380 = vand.u32 %v1379, 4294901760
        %1381 = vmatpush1.msra.mxu0 %v1380
        %1382 = vmatprep.subr.mxu0 0.0
        %v1383 = vand.u32 %v131, 4294901760
        %v1384 = vsub.f32 %v131, %v1383
        %v1385 = vand.u32 %v1384, 4294901760
        %1386 = vmatpush1.msra.mxu0 %v1385
        %1387 = vmatprep.subr.mxu0 0.0
        %v1388 = vand.u32 %v130, 4294901760
        %v1389 = vsub.f32 %v130, %v1388
        %v1390 = vand.u32 %v1389, 4294901760
        %1391 = vmatpush1.msra.mxu0 %v1390
        %1392 = vmatprep.subr.mxu0 0.0
        %v1393 = vand.u32 %v129, 4294901760
        %v1394 = vsub.f32 %v129, %v1393
        %v1395 = vand.u32 %v1394, 4294901760
        %1396 = vmatpush1.msra.mxu0 %v1395
        %1397 = vmatprep.subr.mxu0 0.0
        %v1398 = vand.u32 %v128, 4294901760
        %v1399 = vsub.f32 %v128, %v1398
        %v1400 = vand.u32 %v1399, 4294901760
        %1401 = vmatpush1.msra.mxu0 %v1400
        %1402 = vmatprep.subr.mxu0 0.0
        %1403 = vmatpush2.msra.mxu0 0.0
        %1404 = vmatprep.subr.mxu0 0.0
        %1405 = vmatpush2.msra.mxu0 0.0
        %1406 = vmatprep.subr.mxu0 0.0
        %1407 = vmatpush2.msra.mxu0 0.0
        %1408 = vmatprep.subr.mxu0 0.0
        %1409 = vmatpush2.msra.mxu0 0.0
        %1410 = vmatprep.subr.mxu0 0.0
        %1411 = vmatpush2.msra.mxu0 0.0
        %1412 = vmatprep.subr.mxu0 0.0
        %1413 = vmatpush2.msra.mxu0 0.0
        %1414 = vmatprep.subr.mxu0 0.0
        %1415 = vmatpush2.msra.mxu0 0.0
        %1416 = vmatprep.subr.mxu0 0.0
        %1417 = vmatpush2.msra.mxu0 0.0
        %1418 = vmatprep.subr.mxu0 0.0
        %1419 = vmatpush2.msra.mxu0 0.0
        %1420 = vmatprep.subr.mxu0 0.0
        %1421 = vmatpush2.msra.mxu0 0.0
        %1422 = vmatprep.subr.mxu0 0.0
        %1423 = vmatpush2.msra.mxu0 0.0
        %1424 = vmatprep.subr.mxu0 0.0
        %1425 = vmatpush2.msra.mxu0 0.0
        %1426 = vmatprep.subr.mxu0 0.0
        %1427 = vmatpush2.msra.mxu0 0.0
        %1428 = vmatprep.subr.mxu0 0.0
        %1429 = vmatpush2.msra.mxu0 0.0
        %1430 = vmatprep.subr.mxu0 0.0
        %1431 = vmatpush2.msra.mxu0 0.0
        %1432 = vmatprep.subr.mxu0 0.0
        %1433 = vmatpush2.msra.mxu0 0.0
        %1434 = vmatprep.mubr.f32.mxu0 0.0
        %v1435 = vand.u32 %v125, 4294901760
        %1436 = vmatmul.mubr.f32.gmra.mxu0 %v1435
        %v1437 = vpop.f32.mrf.mxu0
        %v1438 = vadd.f32 %v1311, %v1437
        %v1439 = vpop.f32.mrf.mxu0
        %1440 = vmatprep.mubr.f32.mxu0 0.0
        %v1441 = vand.u32 %v126, 4294901760
        %1442 = vmatmul.mubr.f32.gmra.mxu0 %v1441
        %v1443 = vpop.f32.mrf.mxu0
        %v1444 = vadd.f32 %v1319, %v1443
        %v1445 = vpop.f32.mrf.mxu0
        %1446 = vdwg.mxu0
        %1447 = vmatprep.subr.mxu0 0.0
        %v1448 = vand.u32 %v143, 4294901760
        %1449 = vmatpush1.msra.mxu0 %v1448
        %1450 = vmatprep.subr.mxu0 0.0
        %v1451 = vand.u32 %v142, 4294901760
        %1452 = vmatpush1.msra.mxu0 %v1451
        %1453 = vmatprep.subr.mxu0 0.0
        %v1454 = vand.u32 %v141, 4294901760
        %1455 = vmatpush1.msra.mxu0 %v1454
        %1456 = vmatprep.subr.mxu0 0.0
        %v1457 = vand.u32 %v140, 4294901760
        %1458 = vmatpush1.msra.mxu0 %v1457
        %1459 = vmatprep.subr.mxu0 0.0
        %v1460 = vand.u32 %v139, 4294901760
        %1461 = vmatpush1.msra.mxu0 %v1460
        %1462 = vmatprep.subr.mxu0 0.0
        %v1463 = vand.u32 %v138, 4294901760
        %1464 = vmatpush1.msra.mxu0 %v1463
        %1465 = vmatprep.subr.mxu0 0.0
        %v1466 = vand.u32 %v137, 4294901760
        %1467 = vmatpush1.msra.mxu0 %v1466
        %1468 = vmatprep.subr.mxu0 0.0
        %v1469 = vand.u32 %v136, 4294901760
        %1470 = vmatpush1.msra.mxu0 %v1469
        %1471 = vmatprep.subr.mxu0 0.0
        %v1472 = vand.u32 %v135, 4294901760
        %1473 = vmatpush1.msra.mxu0 %v1472
        %1474 = vmatprep.subr.mxu0 0.0
        %v1475 = vand.u32 %v134, 4294901760
        %1476 = vmatpush1.msra.mxu0 %v1475
        %1477 = vmatprep.subr.mxu0 0.0
        %v1478 = vand.u32 %v133, 4294901760
        %1479 = vmatpush1.msra.mxu0 %v1478
        %1480 = vmatprep.subr.mxu0 0.0
        %v1481 = vand.u32 %v132, 4294901760
        %1482 = vmatpush1.msra.mxu0 %v1481
        %1483 = vmatprep.subr.mxu0 0.0
        %v1484 = vand.u32 %v131, 4294901760
        %1485 = vmatpush1.msra.mxu0 %v1484
        %1486 = vmatprep.subr.mxu0 0.0
        %v1487 = vand.u32 %v130, 4294901760
        %1488 = vmatpush1.msra.mxu0 %v1487
        %1489 = vmatprep.subr.mxu0 0.0
        %v1490 = vand.u32 %v129, 4294901760
        %1491 = vmatpush1.msra.mxu0 %v1490
        %1492 = vmatprep.subr.mxu0 0.0
        %v1493 = vand.u32 %v128, 4294901760
        %1494 = vmatpush1.msra.mxu0 %v1493
        %1495 = vmatprep.subr.mxu0 0.0
        %1496 = vmatpush2.msra.mxu0 0.0
        %1497 = vmatprep.subr.mxu0 0.0
        %1498 = vmatpush2.msra.mxu0 0.0
        %1499 = vmatprep.subr.mxu0 0.0
        %1500 = vmatpush2.msra.mxu0 0.0
        %1501 = vmatprep.subr.mxu0 0.0
        %1502 = vmatpush2.msra.mxu0 0.0
        %1503 = vmatprep.subr.mxu0 0.0
        %1504 = vmatpush2.msra.mxu0 0.0
        %1505 = vmatprep.subr.mxu0 0.0
        %1506 = vmatpush2.msra.mxu0 0.0
        %1507 = vmatprep.subr.mxu0 0.0
        %1508 = vmatpush2.msra.mxu0 0.0
        %1509 = vmatprep.subr.mxu0 0.0
        %1510 = vmatpush2.msra.mxu0 0.0
        %1511 = vmatprep.subr.mxu0 0.0
        %1512 = vmatpush2.msra.mxu0 0.0
        %1513 = vmatprep.subr.mxu0 0.0
        %1514 = vmatpush2.msra.mxu0 0.0
        %1515 = vmatprep.subr.mxu0 0.0
        %1516 = vmatpush2.msra.mxu0 0.0
        %1517 = vmatprep.subr.mxu0 0.0
        %1518 = vmatpush2.msra.mxu0 0.0
        %1519 = vmatprep.subr.mxu0 0.0
        %1520 = vmatpush2.msra.mxu0 0.0
        %1521 = vmatprep.subr.mxu0 0.0
        %1522 = vmatpush2.msra.mxu0 0.0
        %1523 = vmatprep.subr.mxu0 0.0
        %1524 = vmatpush2.msra.mxu0 0.0
        %1525 = vmatprep.subr.mxu0 0.0
        %1526 = vmatpush2.msra.mxu0 0.0
        %1527 = vmatprep.mubr.f32.mxu0 0.0
        %v1528 = vand.u32 %v125, 4294901760
        %1529 = vmatmul.mubr.f32.gmra.mxu0 %v1528
        %v1530 = vpop.f32.mrf.mxu0
        %v1531 = vadd.f32 %v1438, %v1530
        %v1532 = vpop.f32.mrf.mxu0
        %1533 = vmatprep.mubr.f32.mxu0 0.0
        %v1534 = vand.u32 %v126, 4294901760
        %1535 = vmatmul.mubr.f32.gmra.mxu0 %v1534
        %v1536 = vpop.f32.mrf.mxu0
        %v1537 = vadd.f32 %v1444, %v1536
        %v1538 = vpop.f32.mrf.mxu0
        %1539 = vdwg.mxu0
        %s1540 = scalar_lea.vmem %s1, 256
        %v1541 = vld [vmem:[%s1540] sm:$0xff]
        %v1542 = vld [vmem:[%s1540 + $0x8] sm:$0xff]
        %v1543 = vld [vmem:[%s1540 + $0x10] sm:$0xff]
        %v1544 = vld [vmem:[%s1540 + $0x18] sm:$0xff]
        %v1545 = vld [vmem:[%s1540 + $0x20] sm:$0xff]
        %v1546 = vld [vmem:[%s1540 + $0x28] sm:$0xff]
        %v1547 = vld [vmem:[%s1540 + $0x30] sm:$0xff]
        %v1548 = vld [vmem:[%s1540 + $0x38] sm:$0xff]
        %v1549 = vld [vmem:[%s1540 + $0x40] sm:$0xff]
        %v1550 = vld [vmem:[%s1540 + $0x48] sm:$0xff]
        %v1551 = vld [vmem:[%s1540 + $0x50] sm:$0xff]
        %v1552 = vld [vmem:[%s1540 + $0x58] sm:$0xff]
        %v1553 = vld [vmem:[%s1540 + $0x60] sm:$0xff]
        %v1554 = vld [vmem:[%s1540 + $0x68] sm:$0xff]
        %v1555 = vld [vmem:[%s1540 + $0x70] sm:$0xff]
        %v1556 = vld [vmem:[%s1540 + $0x78] sm:$0xff]
        %vm1557 = vcmask 1045504
        %v1558 = vrot.slane %v125, 2
        %v1559 = vrot.slane %v126, 2
        %v1560 = vsel %vm1557, %v1558, %v1559
        %v1561 = vrot.slane %v127, 2
        %v1562 = vsel %vm1557, %v1559, %v1561
        %1565 = vmatprep.subr.mxu0 0.0
        %v1566 = vand.u32 %v1556, 4294901760
        %1567 = vmatpush1.msra.mxu0 %v1566
        %1568 = vmatprep.subr.mxu0 0.0
        %v1569 = vand.u32 %v1555, 4294901760
        %1570 = vmatpush1.msra.mxu0 %v1569
        %1571 = vmatprep.subr.mxu0 0.0
        %v1572 = vand.u32 %v1554, 4294901760
        %1573 = vmatpush1.msra.mxu0 %v1572
        %1574 = vmatprep.subr.mxu0 0.0
        %v1575 = vand.u32 %v1553, 4294901760
        %1576 = vmatpush1.msra.mxu0 %v1575
        %1577 = vmatprep.subr.mxu0 0.0
        %v1578 = vand.u32 %v1552, 4294901760
        %1579 = vmatpush1.msra.mxu0 %v1578
        %1580 = vmatprep.subr.mxu0 0.0
        %v1581 = vand.u32 %v1551, 4294901760
        %1582 = vmatpush1.msra.mxu0 %v1581
        %1583 = vmatprep.subr.mxu0 0.0
        %v1584 = vand.u32 %v1550, 4294901760
        %1585 = vmatpush1.msra.mxu0 %v1584
        %1586 = vmatprep.subr.mxu0 0.0
        %v1587 = vand.u32 %v1549, 4294901760
        %1588 = vmatpush1.msra.mxu0 %v1587
        %1589 = vmatprep.subr.mxu0 0.0
        %v1590 = vand.u32 %v1548, 4294901760
        %1591 = vmatpush1.msra.mxu0 %v1590
        %1592 = vmatprep.subr.mxu0 0.0
        %v1593 = vand.u32 %v1547, 4294901760
        %1594 = vmatpush1.msra.mxu0 %v1593
        %1595 = vmatprep.subr.mxu0 0.0
        %v1596 = vand.u32 %v1546, 4294901760
        %1597 = vmatpush1.msra.mxu0 %v1596
        %1598 = vmatprep.subr.mxu0 0.0
        %v1599 = vand.u32 %v1545, 4294901760
        %1600 = vmatpush1.msra.mxu0 %v1599
        %1601 = vmatprep.subr.mxu0 0.0
        %v1602 = vand.u32 %v1544, 4294901760
        %1603 = vmatpush1.msra.mxu0 %v1602
        %1604 = vmatprep.subr.mxu0 0.0
        %v1605 = vand.u32 %v1543, 4294901760
        %1606 = vmatpush1.msra.mxu0 %v1605
        %1607 = vmatprep.subr.mxu0 0.0
        %v1608 = vand.u32 %v1542, 4294901760
        %1609 = vmatpush1.msra.mxu0 %v1608
        %1610 = vmatprep.subr.mxu0 0.0
        %v1611 = vand.u32 %v1541, 4294901760
        %1612 = vmatpush1.msra.mxu0 %v1611
        %1613 = vmatprep.subr.mxu0 0.0
        %1614 = vmatpush2.msra.mxu0 0.0
        %1615 = vmatprep.subr.mxu0 0.0
        %1616 = vmatpush2.msra.mxu0 0.0
        %1617 = vmatprep.subr.mxu0 0.0
        %1618 = vmatpush2.msra.mxu0 0.0
        %1619 = vmatprep.subr.mxu0 0.0
        %1620 = vmatpush2.msra.mxu0 0.0
        %1621 = vmatprep.subr.mxu0 0.0
        %1622 = vmatpush2.msra.mxu0 0.0
        %1623 = vmatprep.subr.mxu0 0.0
        %1624 = vmatpush2.msra.mxu0 0.0
        %1625 = vmatprep.subr.mxu0 0.0
        %1626 = vmatpush2.msra.mxu0 0.0
        %1627 = vmatprep.subr.mxu0 0.0
        %1628 = vmatpush2.msra.mxu0 0.0
        %1629 = vmatprep.subr.mxu0 0.0
        %1630 = vmatpush2.msra.mxu0 0.0
        %1631 = vmatprep.subr.mxu0 0.0
        %1632 = vmatpush2.msra.mxu0 0.0
        %1633 = vmatprep.subr.mxu0 0.0
        %1634 = vmatpush2.msra.mxu0 0.0
        %1635 = vmatprep.subr.mxu0 0.0
        %1636 = vmatpush2.msra.mxu0 0.0
        %1637 = vmatprep.subr.mxu0 0.0
        %1638 = vmatpush2.msra.mxu0 0.0
        %1639 = vmatprep.subr.mxu0 0.0
        %1640 = vmatpush2.msra.mxu0 0.0
        %1641 = vmatprep.subr.mxu0 0.0
        %1642 = vmatpush2.msra.mxu0 0.0
        %1643 = vmatprep.subr.mxu0 0.0
        %1644 = vmatpush2.msra.mxu0 0.0
        %1645 = vmatprep.mubr.f32.mxu0 0.0
        %v1646 = vand.u32 %v1560, 4294901760
        %v1647 = vsub.f32 %v1560, %v1646
        %v1648 = vand.u32 %v1647, 4294901760
        %v1649 = vsub.f32 %v1647, %v1648
        %v1650 = vand.u32 %v1649, 4294901760
        %1651 = vmatmul.mubr.f32.gmra.mxu0 %v1650
        %v1652 = vpop.f32.mrf.mxu0
        %v1653 = vadd.f32 0.0, %v1652
        %v1654 = vpop.f32.mrf.mxu0
        %1655 = vmatprep.mubr.f32.mxu0 0.0
        %v1656 = vand.u32 %v1562, 4294901760
        %v1657 = vsub.f32 %v1562, %v1656
        %v1658 = vand.u32 %v1657, 4294901760
        %v1659 = vsub.f32 %v1657, %v1658
        %v1660 = vand.u32 %v1659, 4294901760
        %1661 = vmatmul.mubr.f32.gmra.mxu0 %v1660
        %v1662 = vpop.f32.mrf.mxu0
        %v1663 = vadd.f32 0.0, %v1662
        %v1664 = vpop.f32.mrf.mxu0
        %1665 = vdwg.mxu0
        %1666 = vmatprep.subr.mxu0 0.0
        %v1667 = vand.u32 %v1556, 4294901760
        %v1668 = vsub.f32 %v1556, %v1667
        %v1669 = vand.u32 %v1668, 4294901760
        %v1670 = vsub.f32 %v1668, %v1669
        %v1671 = vand.u32 %v1670, 4294901760
        %1672 = vmatpush1.msra.mxu0 %v1671
        %1673 = vmatprep.subr.mxu0 0.0
        %v1674 = vand.u32 %v1555, 4294901760
        %v1675 = vsub.f32 %v1555, %v1674
        %v1676 = vand.u32 %v1675, 4294901760
        %v1677 = vsub.f32 %v1675, %v1676
        %v1678 = vand.u32 %v1677, 4294901760
        %1679 = vmatpush1.msra.mxu0 %v1678
        %1680 = vmatprep.subr.mxu0 0.0
        %v1681 = vand.u32 %v1554, 4294901760
        %v1682 = vsub.f32 %v1554, %v1681
        %v1683 = vand.u32 %v1682, 4294901760
        %v1684 = vsub.f32 %v1682, %v1683
        %v1685 = vand.u32 %v1684, 4294901760
        %1686 = vmatpush1.msra.mxu0 %v1685
        %1687 = vmatprep.subr.mxu0 0.0
        %v1688 = vand.u32 %v1553, 4294901760
        %v1689 = vsub.f32 %v1553, %v1688
        %v1690 = vand.u32 %v1689, 4294901760
        %v1691 = vsub.f32 %v1689, %v1690
        %v1692 = vand.u32 %v1691, 4294901760
        %1693 = vmatpush1.msra.mxu0 %v1692
        %1694 = vmatprep.subr.mxu0 0.0
        %v1695 = vand.u32 %v1552, 4294901760
        %v1696 = vsub.f32 %v1552, %v1695
        %v1697 = vand.u32 %v1696, 4294901760
        %v1698 = vsub.f32 %v1696, %v1697
        %v1699 = vand.u32 %v1698, 4294901760
        %1700 = vmatpush1.msra.mxu0 %v1699
        %1701 = vmatprep.subr.mxu0 0.0
        %v1702 = vand.u32 %v1551, 4294901760
        %v1703 = vsub.f32 %v1551, %v1702
        %v1704 = vand.u32 %v1703, 4294901760
        %v1705 = vsub.f32 %v1703, %v1704
        %v1706 = vand.u32 %v1705, 4294901760
        %1707 = vmatpush1.msra.mxu0 %v1706
        %1708 = vmatprep.subr.mxu0 0.0
        %v1709 = vand.u32 %v1550, 4294901760
        %v1710 = vsub.f32 %v1550, %v1709
        %v1711 = vand.u32 %v1710, 4294901760
        %v1712 = vsub.f32 %v1710, %v1711
        %v1713 = vand.u32 %v1712, 4294901760
        %1714 = vmatpush1.msra.mxu0 %v1713
        %1715 = vmatprep.subr.mxu0 0.0
        %v1716 = vand.u32 %v1549, 4294901760
        %v1717 = vsub.f32 %v1549, %v1716
        %v1718 = vand.u32 %v1717, 4294901760
        %v1719 = vsub.f32 %v1717, %v1718
        %v1720 = vand.u32 %v1719, 4294901760
        %1721 = vmatpush1.msra.mxu0 %v1720
        %1722 = vmatprep.subr.mxu0 0.0
        %v1723 = vand.u32 %v1548, 4294901760
        %v1724 = vsub.f32 %v1548, %v1723
        %v1725 = vand.u32 %v1724, 4294901760
        %v1726 = vsub.f32 %v1724, %v1725
        %v1727 = vand.u32 %v1726, 4294901760
        %1728 = vmatpush1.msra.mxu0 %v1727
        %1729 = vmatprep.subr.mxu0 0.0
        %v1730 = vand.u32 %v1547, 4294901760
        %v1731 = vsub.f32 %v1547, %v1730
        %v1732 = vand.u32 %v1731, 4294901760
        %v1733 = vsub.f32 %v1731, %v1732
        %v1734 = vand.u32 %v1733, 4294901760
        %1735 = vmatpush1.msra.mxu0 %v1734
        %1736 = vmatprep.subr.mxu0 0.0
        %v1737 = vand.u32 %v1546, 4294901760
        %v1738 = vsub.f32 %v1546, %v1737
        %v1739 = vand.u32 %v1738, 4294901760
        %v1740 = vsub.f32 %v1738, %v1739
        %v1741 = vand.u32 %v1740, 4294901760
        %1742 = vmatpush1.msra.mxu0 %v1741
        %1743 = vmatprep.subr.mxu0 0.0
        %v1744 = vand.u32 %v1545, 4294901760
        %v1745 = vsub.f32 %v1545, %v1744
        %v1746 = vand.u32 %v1745, 4294901760
        %v1747 = vsub.f32 %v1745, %v1746
        %v1748 = vand.u32 %v1747, 4294901760
        %1749 = vmatpush1.msra.mxu0 %v1748
        %1750 = vmatprep.subr.mxu0 0.0
        %v1751 = vand.u32 %v1544, 4294901760
        %v1752 = vsub.f32 %v1544, %v1751
        %v1753 = vand.u32 %v1752, 4294901760
        %v1754 = vsub.f32 %v1752, %v1753
        %v1755 = vand.u32 %v1754, 4294901760
        %1756 = vmatpush1.msra.mxu0 %v1755
        %1757 = vmatprep.subr.mxu0 0.0
        %v1758 = vand.u32 %v1543, 4294901760
        %v1759 = vsub.f32 %v1543, %v1758
        %v1760 = vand.u32 %v1759, 4294901760
        %v1761 = vsub.f32 %v1759, %v1760
        %v1762 = vand.u32 %v1761, 4294901760
        %1763 = vmatpush1.msra.mxu0 %v1762
        %1764 = vmatprep.subr.mxu0 0.0
        %v1765 = vand.u32 %v1542, 4294901760
        %v1766 = vsub.f32 %v1542, %v1765
        %v1767 = vand.u32 %v1766, 4294901760
        %v1768 = vsub.f32 %v1766, %v1767
        %v1769 = vand.u32 %v1768, 4294901760
        %1770 = vmatpush1.msra.mxu0 %v1769
        %1771 = vmatprep.subr.mxu0 0.0
        %v1772 = vand.u32 %v1541, 4294901760
        %v1773 = vsub.f32 %v1541, %v1772
        %v1774 = vand.u32 %v1773, 4294901760
        %v1775 = vsub.f32 %v1773, %v1774
        %v1776 = vand.u32 %v1775, 4294901760
        %1777 = vmatpush1.msra.mxu0 %v1776
        %1778 = vmatprep.subr.mxu0 0.0
        %1779 = vmatpush2.msra.mxu0 0.0
        %1780 = vmatprep.subr.mxu0 0.0
        %1781 = vmatpush2.msra.mxu0 0.0
        %1782 = vmatprep.subr.mxu0 0.0
        %1783 = vmatpush2.msra.mxu0 0.0
        %1784 = vmatprep.subr.mxu0 0.0
        %1785 = vmatpush2.msra.mxu0 0.0
        %1786 = vmatprep.subr.mxu0 0.0
        %1787 = vmatpush2.msra.mxu0 0.0
        %1788 = vmatprep.subr.mxu0 0.0
        %1789 = vmatpush2.msra.mxu0 0.0
        %1790 = vmatprep.subr.mxu0 0.0
        %1791 = vmatpush2.msra.mxu0 0.0
        %1792 = vmatprep.subr.mxu0 0.0
        %1793 = vmatpush2.msra.mxu0 0.0
        %1794 = vmatprep.subr.mxu0 0.0
        %1795 = vmatpush2.msra.mxu0 0.0
        %1796 = vmatprep.subr.mxu0 0.0
        %1797 = vmatpush2.msra.mxu0 0.0
        %1798 = vmatprep.subr.mxu0 0.0
        %1799 = vmatpush2.msra.mxu0 0.0
        %1800 = vmatprep.subr.mxu0 0.0
        %1801 = vmatpush2.msra.mxu0 0.0
        %1802 = vmatprep.subr.mxu0 0.0
        %1803 = vmatpush2.msra.mxu0 0.0
        %1804 = vmatprep.subr.mxu0 0.0
        %1805 = vmatpush2.msra.mxu0 0.0
        %1806 = vmatprep.subr.mxu0 0.0
        %1807 = vmatpush2.msra.mxu0 0.0
        %1808 = vmatprep.subr.mxu0 0.0
        %1809 = vmatpush2.msra.mxu0 0.0
        %1810 = vmatprep.mubr.f32.mxu0 0.0
        %v1811 = vand.u32 %v1560, 4294901760
        %1812 = vmatmul.mubr.f32.gmra.mxu0 %v1811
        %v1813 = vpop.f32.mrf.mxu0
        %v1814 = vadd.f32 %v1653, %v1813
        %v1815 = vpop.f32.mrf.mxu0
        %1816 = vmatprep.mubr.f32.mxu0 0.0
        %v1817 = vand.u32 %v1562, 4294901760
        %1818 = vmatmul.mubr.f32.gmra.mxu0 %v1817
        %v1819 = vpop.f32.mrf.mxu0
        %v1820 = vadd.f32 %v1663, %v1819
        %v1821 = vpop.f32.mrf.mxu0
        %1822 = vdwg.mxu0
        %1823 = vmatprep.subr.mxu0 0.0
        %v1824 = vand.u32 %v1556, 4294901760
        %v1825 = vsub.f32 %v1556, %v1824
        %1826 = vmatpush1.msra.mxu0 %v1825
        %1827 = vmatprep.subr.mxu0 0.0
        %v1828 = vand.u32 %v1555, 4294901760
        %v1829 = vsub.f32 %v1555, %v1828
        %1830 = vmatpush1.msra.mxu0 %v1829
        %1831 = vmatprep.subr.mxu0 0.0
        %v1832 = vand.u32 %v1554, 4294901760
        %v1833 = vsub.f32 %v1554, %v1832
        %1834 = vmatpush1.msra.mxu0 %v1833
        %1835 = vmatprep.subr.mxu0 0.0
        %v1836 = vand.u32 %v1553, 4294901760
        %v1837 = vsub.f32 %v1553, %v1836
        %1838 = vmatpush1.msra.mxu0 %v1837
        %1839 = vmatprep.subr.mxu0 0.0
        %v1840 = vand.u32 %v1552, 4294901760
        %v1841 = vsub.f32 %v1552, %v1840
        %1842 = vmatpush1.msra.mxu0 %v1841
        %1843 = vmatprep.subr.mxu0 0.0
        %v1844 = vand.u32 %v1551, 4294901760
        %v1845 = vsub.f32 %v1551, %v1844
        %1846 = vmatpush1.msra.mxu0 %v1845
        %1847 = vmatprep.subr.mxu0 0.0
        %v1848 = vand.u32 %v1550, 4294901760
        %v1849 = vsub.f32 %v1550, %v1848
        %1850 = vmatpush1.msra.mxu0 %v1849
        %1851 = vmatprep.subr.mxu0 0.0
        %v1852 = vand.u32 %v1549, 4294901760
        %v1853 = vsub.f32 %v1549, %v1852
        %1854 = vmatpush1.msra.mxu0 %v1853
        %1855 = vmatprep.subr.mxu0 0.0
        %v1856 = vand.u32 %v1548, 4294901760
        %v1857 = vsub.f32 %v1548, %v1856
        %1858 = vmatpush1.msra.mxu0 %v1857
        %1859 = vmatprep.subr.mxu0 0.0
        %v1860 = vand.u32 %v1547, 4294901760
        %v1861 = vsub.f32 %v1547, %v1860
        %1862 = vmatpush1.msra.mxu0 %v1861
        %1863 = vmatprep.subr.mxu0 0.0
        %v1864 = vand.u32 %v1546, 4294901760
        %v1865 = vsub.f32 %v1546, %v1864
        %1866 = vmatpush1.msra.mxu0 %v1865
        %1867 = vmatprep.subr.mxu0 0.0
        %v1868 = vand.u32 %v1545, 4294901760
        %v1869 = vsub.f32 %v1545, %v1868
        %1870 = vmatpush1.msra.mxu0 %v1869
        %1871 = vmatprep.subr.mxu0 0.0
        %v1872 = vand.u32 %v1544, 4294901760
        %v1873 = vsub.f32 %v1544, %v1872
        %1874 = vmatpush1.msra.mxu0 %v1873
        %1875 = vmatprep.subr.mxu0 0.0
        %v1876 = vand.u32 %v1543, 4294901760
        %v1877 = vsub.f32 %v1543, %v1876
        %1878 = vmatpush1.msra.mxu0 %v1877
        %1879 = vmatprep.subr.mxu0 0.0
        %v1880 = vand.u32 %v1542, 4294901760
        %v1881 = vsub.f32 %v1542, %v1880
        %1882 = vmatpush1.msra.mxu0 %v1881
        %1883 = vmatprep.subr.mxu0 0.0
        %v1884 = vand.u32 %v1541, 4294901760
        %v1885 = vsub.f32 %v1541, %v1884
        %1886 = vmatpush1.msra.mxu0 %v1885
        %1887 = vmatprep.subr.mxu0 0.0
        %1888 = vmatpush2.msra.mxu0 0.0
        %1889 = vmatprep.subr.mxu0 0.0
        %1890 = vmatpush2.msra.mxu0 0.0
        %1891 = vmatprep.subr.mxu0 0.0
        %1892 = vmatpush2.msra.mxu0 0.0
        %1893 = vmatprep.subr.mxu0 0.0
        %1894 = vmatpush2.msra.mxu0 0.0
        %1895 = vmatprep.subr.mxu0 0.0
        %1896 = vmatpush2.msra.mxu0 0.0
        %1897 = vmatprep.subr.mxu0 0.0
        %1898 = vmatpush2.msra.mxu0 0.0
        %1899 = vmatprep.subr.mxu0 0.0
        %1900 = vmatpush2.msra.mxu0 0.0
        %1901 = vmatprep.subr.mxu0 0.0
        %1902 = vmatpush2.msra.mxu0 0.0
        %1903 = vmatprep.subr.mxu0 0.0
        %1904 = vmatpush2.msra.mxu0 0.0
        %1905 = vmatprep.subr.mxu0 0.0
        %1906 = vmatpush2.msra.mxu0 0.0
        %1907 = vmatprep.subr.mxu0 0.0
        %1908 = vmatpush2.msra.mxu0 0.0
        %1909 = vmatprep.subr.mxu0 0.0
        %1910 = vmatpush2.msra.mxu0 0.0
        %1911 = vmatprep.subr.mxu0 0.0
        %1912 = vmatpush2.msra.mxu0 0.0
        %1913 = vmatprep.subr.mxu0 0.0
        %1914 = vmatpush2.msra.mxu0 0.0
        %1915 = vmatprep.subr.mxu0 0.0
        %1916 = vmatpush2.msra.mxu0 0.0
        %1917 = vmatprep.subr.mxu0 0.0
        %1918 = vmatpush2.msra.mxu0 0.0
        %1919 = vmatprep.mubr.f32.mxu0 0.0
        %v1920 = vand.u32 %v1560, 4294901760
        %v1921 = vsub.f32 %v1560, %v1920
        %1922 = vmatmul.mubr.f32.gmra.mxu0 %v1921
        %v1923 = vpop.f32.mrf.mxu0
        %v1924 = vadd.f32 %v1814, %v1923
        %v1925 = vpop.f32.mrf.mxu0
        %1926 = vmatprep.mubr.f32.mxu0 0.0
        %v1927 = vand.u32 %v1562, 4294901760
        %v1928 = vsub.f32 %v1562, %v1927
        %1929 = vmatmul.mubr.f32.gmra.mxu0 %v1928
        %v1930 = vpop.f32.mrf.mxu0
        %v1931 = vadd.f32 %v1820, %v1930
        %v1932 = vpop.f32.mrf.mxu0
        %1933 = vdwg.mxu0
        %1934 = vmatprep.subr.mxu0 0.0
        %v1935 = vand.u32 %v1556, 4294901760
        %1936 = vmatpush1.msra.mxu0 %v1935
        %1937 = vmatprep.subr.mxu0 0.0
        %v1938 = vand.u32 %v1555, 4294901760
        %1939 = vmatpush1.msra.mxu0 %v1938
        %1940 = vmatprep.subr.mxu0 0.0
        %v1941 = vand.u32 %v1554, 4294901760
        %1942 = vmatpush1.msra.mxu0 %v1941
        %1943 = vmatprep.subr.mxu0 0.0
        %v1944 = vand.u32 %v1553, 4294901760
        %1945 = vmatpush1.msra.mxu0 %v1944
        %1946 = vmatprep.subr.mxu0 0.0
        %v1947 = vand.u32 %v1552, 4294901760
        %1948 = vmatpush1.msra.mxu0 %v1947
        %1949 = vmatprep.subr.mxu0 0.0
        %v1950 = vand.u32 %v1551, 4294901760
        %1951 = vmatpush1.msra.mxu0 %v1950
        %1952 = vmatprep.subr.mxu0 0.0
        %v1953 = vand.u32 %v1550, 4294901760
        %1954 = vmatpush1.msra.mxu0 %v1953
        %1955 = vmatprep.subr.mxu0 0.0
        %v1956 = vand.u32 %v1549, 4294901760
        %1957 = vmatpush1.msra.mxu0 %v1956
        %1958 = vmatprep.subr.mxu0 0.0
        %v1959 = vand.u32 %v1548, 4294901760
        %1960 = vmatpush1.msra.mxu0 %v1959
        %1961 = vmatprep.subr.mxu0 0.0
        %v1962 = vand.u32 %v1547, 4294901760
        %1963 = vmatpush1.msra.mxu0 %v1962
        %1964 = vmatprep.subr.mxu0 0.0
        %v1965 = vand.u32 %v1546, 4294901760
        %1966 = vmatpush1.msra.mxu0 %v1965
        %1967 = vmatprep.subr.mxu0 0.0
        %v1968 = vand.u32 %v1545, 4294901760
        %1969 = vmatpush1.msra.mxu0 %v1968
        %1970 = vmatprep.subr.mxu0 0.0
        %v1971 = vand.u32 %v1544, 4294901760
        %1972 = vmatpush1.msra.mxu0 %v1971
        %1973 = vmatprep.subr.mxu0 0.0
        %v1974 = vand.u32 %v1543, 4294901760
        %1975 = vmatpush1.msra.mxu0 %v1974
        %1976 = vmatprep.subr.mxu0 0.0
        %v1977 = vand.u32 %v1542, 4294901760
        %1978 = vmatpush1.msra.mxu0 %v1977
        %1979 = vmatprep.subr.mxu0 0.0
        %v1980 = vand.u32 %v1541, 4294901760
        %1981 = vmatpush1.msra.mxu0 %v1980
        %1982 = vmatprep.subr.mxu0 0.0
        %1983 = vmatpush2.msra.mxu0 0.0
        %1984 = vmatprep.subr.mxu0 0.0
        %1985 = vmatpush2.msra.mxu0 0.0
        %1986 = vmatprep.subr.mxu0 0.0
        %1987 = vmatpush2.msra.mxu0 0.0
        %1988 = vmatprep.subr.mxu0 0.0
        %1989 = vmatpush2.msra.mxu0 0.0
        %1990 = vmatprep.subr.mxu0 0.0
        %1991 = vmatpush2.msra.mxu0 0.0
        %1992 = vmatprep.subr.mxu0 0.0
        %1993 = vmatpush2.msra.mxu0 0.0
        %1994 = vmatprep.subr.mxu0 0.0
        %1995 = vmatpush2.msra.mxu0 0.0
        %1996 = vmatprep.subr.mxu0 0.0
        %1997 = vmatpush2.msra.mxu0 0.0
        %1998 = vmatprep.subr.mxu0 0.0
        %1999 = vmatpush2.msra.mxu0 0.0
        %2000 = vmatprep.subr.mxu0 0.0
        %2001 = vmatpush2.msra.mxu0 0.0
        %2002 = vmatprep.subr.mxu0 0.0
        %2003 = vmatpush2.msra.mxu0 0.0
        %2004 = vmatprep.subr.mxu0 0.0
        %2005 = vmatpush2.msra.mxu0 0.0
        %2006 = vmatprep.subr.mxu0 0.0
        %2007 = vmatpush2.msra.mxu0 0.0
        %2008 = vmatprep.subr.mxu0 0.0
        %2009 = vmatpush2.msra.mxu0 0.0
        %2010 = vmatprep.subr.mxu0 0.0
        %2011 = vmatpush2.msra.mxu0 0.0
        %2012 = vmatprep.subr.mxu0 0.0
        %2013 = vmatpush2.msra.mxu0 0.0
        %2014 = vmatprep.mubr.f32.mxu0 0.0
        %v2015 = vand.u32 %v1560, 4294901760
        %v2016 = vsub.f32 %v1560, %v2015
        %v2017 = vand.u32 %v2016, 4294901760
        %2018 = vmatmul.mubr.f32.gmra.mxu0 %v2017
        %v2019 = vpop.f32.mrf.mxu0
        %v2020 = vadd.f32 %v1924, %v2019
        %v2021 = vpop.f32.mrf.mxu0
        %2022 = vmatprep.mubr.f32.mxu0 0.0
        %v2023 = vand.u32 %v1562, 4294901760
        %v2024 = vsub.f32 %v1562, %v2023
        %v2025 = vand.u32 %v2024, 4294901760
        %2026 = vmatmul.mubr.f32.gmra.mxu0 %v2025
        %v2027 = vpop.f32.mrf.mxu0
        %v2028 = vadd.f32 %v1931, %v2027
        %v2029 = vpop.f32.mrf.mxu0
        %2030 = vdwg.mxu0
        %2031 = vmatprep.subr.mxu0 0.0
        %v2032 = vand.u32 %v1556, 4294901760
        %v2033 = vsub.f32 %v1556, %v2032
        %v2034 = vand.u32 %v2033, 4294901760
        %2035 = vmatpush1.msra.mxu0 %v2034
        %2036 = vmatprep.subr.mxu0 0.0
        %v2037 = vand.u32 %v1555, 4294901760
        %v2038 = vsub.f32 %v1555, %v2037
        %v2039 = vand.u32 %v2038, 4294901760
        %2040 = vmatpush1.msra.mxu0 %v2039
        %2041 = vmatprep.subr.mxu0 0.0
        %v2042 = vand.u32 %v1554, 4294901760
        %v2043 = vsub.f32 %v1554, %v2042
        %v2044 = vand.u32 %v2043, 4294901760
        %2045 = vmatpush1.msra.mxu0 %v2044
        %2046 = vmatprep.subr.mxu0 0.0
        %v2047 = vand.u32 %v1553, 4294901760
        %v2048 = vsub.f32 %v1553, %v2047
        %v2049 = vand.u32 %v2048, 4294901760
        %2050 = vmatpush1.msra.mxu0 %v2049
        %2051 = vmatprep.subr.mxu0 0.0
        %v2052 = vand.u32 %v1552, 4294901760
        %v2053 = vsub.f32 %v1552, %v2052
        %v2054 = vand.u32 %v2053, 4294901760
        %2055 = vmatpush1.msra.mxu0 %v2054
        %2056 = vmatprep.subr.mxu0 0.0
        %v2057 = vand.u32 %v1551, 4294901760
        %v2058 = vsub.f32 %v1551, %v2057
        %v2059 = vand.u32 %v2058, 4294901760
        %2060 = vmatpush1.msra.mxu0 %v2059
        %2061 = vmatprep.subr.mxu0 0.0
        %v2062 = vand.u32 %v1550, 4294901760
        %v2063 = vsub.f32 %v1550, %v2062
        %v2064 = vand.u32 %v2063, 4294901760
        %2065 = vmatpush1.msra.mxu0 %v2064
        %2066 = vmatprep.subr.mxu0 0.0
        %v2067 = vand.u32 %v1549, 4294901760
        %v2068 = vsub.f32 %v1549, %v2067
        %v2069 = vand.u32 %v2068, 4294901760
        %2070 = vmatpush1.msra.mxu0 %v2069
        %2071 = vmatprep.subr.mxu0 0.0
        %v2072 = vand.u32 %v1548, 4294901760
        %v2073 = vsub.f32 %v1548, %v2072
        %v2074 = vand.u32 %v2073, 4294901760
        %2075 = vmatpush1.msra.mxu0 %v2074
        %2076 = vmatprep.subr.mxu0 0.0
        %v2077 = vand.u32 %v1547, 4294901760
        %v2078 = vsub.f32 %v1547, %v2077
        %v2079 = vand.u32 %v2078, 4294901760
        %2080 = vmatpush1.msra.mxu0 %v2079
        %2081 = vmatprep.subr.mxu0 0.0
        %v2082 = vand.u32 %v1546, 4294901760
        %v2083 = vsub.f32 %v1546, %v2082
        %v2084 = vand.u32 %v2083, 4294901760
        %2085 = vmatpush1.msra.mxu0 %v2084
        %2086 = vmatprep.subr.mxu0 0.0
        %v2087 = vand.u32 %v1545, 4294901760
        %v2088 = vsub.f32 %v1545, %v2087
        %v2089 = vand.u32 %v2088, 4294901760
        %2090 = vmatpush1.msra.mxu0 %v2089
        %2091 = vmatprep.subr.mxu0 0.0
        %v2092 = vand.u32 %v1544, 4294901760
        %v2093 = vsub.f32 %v1544, %v2092
        %v2094 = vand.u32 %v2093, 4294901760
        %2095 = vmatpush1.msra.mxu0 %v2094
        %2096 = vmatprep.subr.mxu0 0.0
        %v2097 = vand.u32 %v1543, 4294901760
        %v2098 = vsub.f32 %v1543, %v2097
        %v2099 = vand.u32 %v2098, 4294901760
        %2100 = vmatpush1.msra.mxu0 %v2099
        %2101 = vmatprep.subr.mxu0 0.0
        %v2102 = vand.u32 %v1542, 4294901760
        %v2103 = vsub.f32 %v1542, %v2102
        %v2104 = vand.u32 %v2103, 4294901760
        %2105 = vmatpush1.msra.mxu0 %v2104
        %2106 = vmatprep.subr.mxu0 0.0
        %v2107 = vand.u32 %v1541, 4294901760
        %v2108 = vsub.f32 %v1541, %v2107
        %v2109 = vand.u32 %v2108, 4294901760
        %2110 = vmatpush1.msra.mxu0 %v2109
        %2111 = vmatprep.subr.mxu0 0.0
        %2112 = vmatpush2.msra.mxu0 0.0
        %2113 = vmatprep.subr.mxu0 0.0
        %2114 = vmatpush2.msra.mxu0 0.0
        %2115 = vmatprep.subr.mxu0 0.0
        %2116 = vmatpush2.msra.mxu0 0.0
        %2117 = vmatprep.subr.mxu0 0.0
        %2118 = vmatpush2.msra.mxu0 0.0
        %2119 = vmatprep.subr.mxu0 0.0
        %2120 = vmatpush2.msra.mxu0 0.0
        %2121 = vmatprep.subr.mxu0 0.0
        %2122 = vmatpush2.msra.mxu0 0.0
        %2123 = vmatprep.subr.mxu0 0.0
        %2124 = vmatpush2.msra.mxu0 0.0
        %2125 = vmatprep.subr.mxu0 0.0
        %2126 = vmatpush2.msra.mxu0 0.0
        %2127 = vmatprep.subr.mxu0 0.0
        %2128 = vmatpush2.msra.mxu0 0.0
        %2129 = vmatprep.subr.mxu0 0.0
        %2130 = vmatpush2.msra.mxu0 0.0
        %2131 = vmatprep.subr.mxu0 0.0
        %2132 = vmatpush2.msra.mxu0 0.0
        %2133 = vmatprep.subr.mxu0 0.0
        %2134 = vmatpush2.msra.mxu0 0.0
        %2135 = vmatprep.subr.mxu0 0.0
        %2136 = vmatpush2.msra.mxu0 0.0
        %2137 = vmatprep.subr.mxu0 0.0
        %2138 = vmatpush2.msra.mxu0 0.0
        %2139 = vmatprep.subr.mxu0 0.0
        %2140 = vmatpush2.msra.mxu0 0.0
        %2141 = vmatprep.subr.mxu0 0.0
        %2142 = vmatpush2.msra.mxu0 0.0
        %2143 = vmatprep.mubr.f32.mxu0 0.0
        %v2144 = vand.u32 %v1560, 4294901760
        %2145 = vmatmul.mubr.f32.gmra.mxu0 %v2144
        %v2146 = vpop.f32.mrf.mxu0
        %v2147 = vadd.f32 %v2020, %v2146
        %v2148 = vpop.f32.mrf.mxu0
        %2149 = vmatprep.mubr.f32.mxu0 0.0
        %v2150 = vand.u32 %v1562, 4294901760
        %2151 = vmatmul.mubr.f32.gmra.mxu0 %v2150
        %v2152 = vpop.f32.mrf.mxu0
        %v2153 = vadd.f32 %v2028, %v2152
        %v2154 = vpop.f32.mrf.mxu0
        %2155 = vdwg.mxu0
        %2156 = vmatprep.subr.mxu0 0.0
        %v2157 = vand.u32 %v1556, 4294901760
        %2158 = vmatpush1.msra.mxu0 %v2157
        %2159 = vmatprep.subr.mxu0 0.0
        %v2160 = vand.u32 %v1555, 4294901760
        %2161 = vmatpush1.msra.mxu0 %v2160
        %2162 = vmatprep.subr.mxu0 0.0
        %v2163 = vand.u32 %v1554, 4294901760
        %2164 = vmatpush1.msra.mxu0 %v2163
        %2165 = vmatprep.subr.mxu0 0.0
        %v2166 = vand.u32 %v1553, 4294901760
        %2167 = vmatpush1.msra.mxu0 %v2166
        %2168 = vmatprep.subr.mxu0 0.0
        %v2169 = vand.u32 %v1552, 4294901760
        %2170 = vmatpush1.msra.mxu0 %v2169
        %2171 = vmatprep.subr.mxu0 0.0
        %v2172 = vand.u32 %v1551, 4294901760
        %2173 = vmatpush1.msra.mxu0 %v2172
        %2174 = vmatprep.subr.mxu0 0.0
        %v2175 = vand.u32 %v1550, 4294901760
        %2176 = vmatpush1.msra.mxu0 %v2175
        %2177 = vmatprep.subr.mxu0 0.0
        %v2178 = vand.u32 %v1549, 4294901760
        %2179 = vmatpush1.msra.mxu0 %v2178
        %2180 = vmatprep.subr.mxu0 0.0
        %v2181 = vand.u32 %v1548, 4294901760
        %2182 = vmatpush1.msra.mxu0 %v2181
        %2183 = vmatprep.subr.mxu0 0.0
        %v2184 = vand.u32 %v1547, 4294901760
        %2185 = vmatpush1.msra.mxu0 %v2184
        %2186 = vmatprep.subr.mxu0 0.0
        %v2187 = vand.u32 %v1546, 4294901760
        %2188 = vmatpush1.msra.mxu0 %v2187
        %2189 = vmatprep.subr.mxu0 0.0
        %v2190 = vand.u32 %v1545, 4294901760
        %2191 = vmatpush1.msra.mxu0 %v2190
        %2192 = vmatprep.subr.mxu0 0.0
        %v2193 = vand.u32 %v1544, 4294901760
        %2194 = vmatpush1.msra.mxu0 %v2193
        %2195 = vmatprep.subr.mxu0 0.0
        %v2196 = vand.u32 %v1543, 4294901760
        %2197 = vmatpush1.msra.mxu0 %v2196
        %2198 = vmatprep.subr.mxu0 0.0
        %v2199 = vand.u32 %v1542, 4294901760
        %2200 = vmatpush1.msra.mxu0 %v2199
        %2201 = vmatprep.subr.mxu0 0.0
        %v2202 = vand.u32 %v1541, 4294901760
        %2203 = vmatpush1.msra.mxu0 %v2202
        %2204 = vmatprep.subr.mxu0 0.0
        %2205 = vmatpush2.msra.mxu0 0.0
        %2206 = vmatprep.subr.mxu0 0.0
        %2207 = vmatpush2.msra.mxu0 0.0
        %2208 = vmatprep.subr.mxu0 0.0
        %2209 = vmatpush2.msra.mxu0 0.0
        %2210 = vmatprep.subr.mxu0 0.0
        %2211 = vmatpush2.msra.mxu0 0.0
        %2212 = vmatprep.subr.mxu0 0.0
        %2213 = vmatpush2.msra.mxu0 0.0
        %2214 = vmatprep.subr.mxu0 0.0
        %2215 = vmatpush2.msra.mxu0 0.0
        %2216 = vmatprep.subr.mxu0 0.0
        %2217 = vmatpush2.msra.mxu0 0.0
        %2218 = vmatprep.subr.mxu0 0.0
        %2219 = vmatpush2.msra.mxu0 0.0
        %2220 = vmatprep.subr.mxu0 0.0
        %2221 = vmatpush2.msra.mxu0 0.0
        %2222 = vmatprep.subr.mxu0 0.0
        %2223 = vmatpush2.msra.mxu0 0.0
        %2224 = vmatprep.subr.mxu0 0.0
        %2225 = vmatpush2.msra.mxu0 0.0
        %2226 = vmatprep.subr.mxu0 0.0
        %2227 = vmatpush2.msra.mxu0 0.0
        %2228 = vmatprep.subr.mxu0 0.0
        %2229 = vmatpush2.msra.mxu0 0.0
        %2230 = vmatprep.subr.mxu0 0.0
        %2231 = vmatpush2.msra.mxu0 0.0
        %2232 = vmatprep.subr.mxu0 0.0
        %2233 = vmatpush2.msra.mxu0 0.0
        %2234 = vmatprep.subr.mxu0 0.0
        %2235 = vmatpush2.msra.mxu0 0.0
        %2236 = vmatprep.mubr.f32.mxu0 0.0
        %v2237 = vand.u32 %v1560, 4294901760
        %2238 = vmatmul.mubr.f32.gmra.mxu0 %v2237
        %v2239 = vpop.f32.mrf.mxu0
        %v2240 = vadd.f32 %v2147, %v2239
        %v2241 = vpop.f32.mrf.mxu0
        %2242 = vmatprep.mubr.f32.mxu0 0.0
        %v2243 = vand.u32 %v1562, 4294901760
        %2244 = vmatmul.mubr.f32.gmra.mxu0 %v2243
        %v2245 = vpop.f32.mrf.mxu0
        %v2246 = vadd.f32 %v2153, %v2245
        %v2247 = vpop.f32.mrf.mxu0
        %2248 = vdwg.mxu0
        %v2249 = vadd.f32 %v1531, %v2240
        %v2250 = vadd.f32 %v1537, %v2246
        %s2251 = scalar_lea.vmem %s1, 384
        %v2252 = vld [vmem:[%s2251] sm:$0xff]
        %v2253 = vld [vmem:[%s2251 + $0x8] sm:$0xff]
        %v2254 = vld [vmem:[%s2251 + $0x10] sm:$0xff]
        %v2255 = vld [vmem:[%s2251 + $0x18] sm:$0xff]
        %v2256 = vld [vmem:[%s2251 + $0x20] sm:$0xff]
        %v2257 = vld [vmem:[%s2251 + $0x28] sm:$0xff]
        %v2258 = vld [vmem:[%s2251 + $0x30] sm:$0xff]
        %v2259 = vld [vmem:[%s2251 + $0x38] sm:$0xff]
        %v2260 = vld [vmem:[%s2251 + $0x40] sm:$0xff]
        %v2261 = vld [vmem:[%s2251 + $0x48] sm:$0xff]
        %v2262 = vld [vmem:[%s2251 + $0x50] sm:$0xff]
        %v2263 = vld [vmem:[%s2251 + $0x58] sm:$0xff]
        %v2264 = vld [vmem:[%s2251 + $0x60] sm:$0xff]
        %v2265 = vld [vmem:[%s2251 + $0x68] sm:$0xff]
        %v2266 = vld [vmem:[%s2251 + $0x70] sm:$0xff]
        %v2267 = vld [vmem:[%s2251 + $0x78] sm:$0xff]
        %vm2268 = vcmask 1044480
        %v2269 = vrot.slane %v125, 3
        %v2270 = vrot.slane %v126, 3
        %v2271 = vsel %vm2268, %v2269, %v2270
        %v2272 = vrot.slane %v127, 3
        %v2273 = vsel %vm2268, %v2270, %v2272
        %2276 = vmatprep.subr.mxu0 0.0
        %v2277 = vand.u32 %v2267, 4294901760
        %2278 = vmatpush1.msra.mxu0 %v2277
        %2279 = vmatprep.subr.mxu0 0.0
        %v2280 = vand.u32 %v2266, 4294901760
        %2281 = vmatpush1.msra.mxu0 %v2280
        %2282 = vmatprep.subr.mxu0 0.0
        %v2283 = vand.u32 %v2265, 4294901760
        %2284 = vmatpush1.msra.mxu0 %v2283
        %2285 = vmatprep.subr.mxu0 0.0
        %v2286 = vand.u32 %v2264, 4294901760
        %2287 = vmatpush1.msra.mxu0 %v2286
        %2288 = vmatprep.subr.mxu0 0.0
        %v2289 = vand.u32 %v2263, 4294901760
        %2290 = vmatpush1.msra.mxu0 %v2289
        %2291 = vmatprep.subr.mxu0 0.0
        %v2292 = vand.u32 %v2262, 4294901760
        %2293 = vmatpush1.msra.mxu0 %v2292
        %2294 = vmatprep.subr.mxu0 0.0
        %v2295 = vand.u32 %v2261, 4294901760
        %2296 = vmatpush1.msra.mxu0 %v2295
        %2297 = vmatprep.subr.mxu0 0.0
        %v2298 = vand.u32 %v2260, 4294901760
        %2299 = vmatpush1.msra.mxu0 %v2298
        %2300 = vmatprep.subr.mxu0 0.0
        %v2301 = vand.u32 %v2259, 4294901760
        %2302 = vmatpush1.msra.mxu0 %v2301
        %2303 = vmatprep.subr.mxu0 0.0
        %v2304 = vand.u32 %v2258, 4294901760
        %2305 = vmatpush1.msra.mxu0 %v2304
        %2306 = vmatprep.subr.mxu0 0.0
        %v2307 = vand.u32 %v2257, 4294901760
        %2308 = vmatpush1.msra.mxu0 %v2307
        %2309 = vmatprep.subr.mxu0 0.0
        %v2310 = vand.u32 %v2256, 4294901760
        %2311 = vmatpush1.msra.mxu0 %v2310
        %2312 = vmatprep.subr.mxu0 0.0
        %v2313 = vand.u32 %v2255, 4294901760
        %2314 = vmatpush1.msra.mxu0 %v2313
        %2315 = vmatprep.subr.mxu0 0.0
        %v2316 = vand.u32 %v2254, 4294901760
        %2317 = vmatpush1.msra.mxu0 %v2316
        %2318 = vmatprep.subr.mxu0 0.0
        %v2319 = vand.u32 %v2253, 4294901760
        %2320 = vmatpush1.msra.mxu0 %v2319
        %2321 = vmatprep.subr.mxu0 0.0
        %v2322 = vand.u32 %v2252, 4294901760
        %2323 = vmatpush1.msra.mxu0 %v2322
        %2324 = vmatprep.subr.mxu0 0.0
        %2325 = vmatpush2.msra.mxu0 0.0
        %2326 = vmatprep.subr.mxu0 0.0
        %2327 = vmatpush2.msra.mxu0 0.0
        %2328 = vmatprep.subr.mxu0 0.0
        %2329 = vmatpush2.msra.mxu0 0.0
        %2330 = vmatprep.subr.mxu0 0.0
        %2331 = vmatpush2.msra.mxu0 0.0
        %2332 = vmatprep.subr.mxu0 0.0
        %2333 = vmatpush2.msra.mxu0 0.0
        %2334 = vmatprep.subr.mxu0 0.0
        %2335 = vmatpush2.msra.mxu0 0.0
        %2336 = vmatprep.subr.mxu0 0.0
        %2337 = vmatpush2.msra.mxu0 0.0
        %2338 = vmatprep.subr.mxu0 0.0
        %2339 = vmatpush2.msra.mxu0 0.0
        %2340 = vmatprep.subr.mxu0 0.0
        %2341 = vmatpush2.msra.mxu0 0.0
        %2342 = vmatprep.subr.mxu0 0.0
        %2343 = vmatpush2.msra.mxu0 0.0
        %2344 = vmatprep.subr.mxu0 0.0
        %2345 = vmatpush2.msra.mxu0 0.0
        %2346 = vmatprep.subr.mxu0 0.0
        %2347 = vmatpush2.msra.mxu0 0.0
        %2348 = vmatprep.subr.mxu0 0.0
        %2349 = vmatpush2.msra.mxu0 0.0
        %2350 = vmatprep.subr.mxu0 0.0
        %2351 = vmatpush2.msra.mxu0 0.0
        %2352 = vmatprep.subr.mxu0 0.0
        %2353 = vmatpush2.msra.mxu0 0.0
        %2354 = vmatprep.subr.mxu0 0.0
        %2355 = vmatpush2.msra.mxu0 0.0
        %2356 = vmatprep.mubr.f32.mxu0 0.0
        %v2357 = vand.u32 %v2271, 4294901760
        %v2358 = vsub.f32 %v2271, %v2357
        %v2359 = vand.u32 %v2358, 4294901760
        %v2360 = vsub.f32 %v2358, %v2359
        %v2361 = vand.u32 %v2360, 4294901760
        %2362 = vmatmul.mubr.f32.gmra.mxu0 %v2361
        %v2363 = vpop.f32.mrf.mxu0
        %v2364 = vadd.f32 0.0, %v2363
        %v2365 = vpop.f32.mrf.mxu0
        %2366 = vmatprep.mubr.f32.mxu0 0.0
        %v2367 = vand.u32 %v2273, 4294901760
        %v2368 = vsub.f32 %v2273, %v2367
        %v2369 = vand.u32 %v2368, 4294901760
        %v2370 = vsub.f32 %v2368, %v2369
        %v2371 = vand.u32 %v2370, 4294901760
        %2372 = vmatmul.mubr.f32.gmra.mxu0 %v2371
        %v2373 = vpop.f32.mrf.mxu0
        %v2374 = vadd.f32 0.0, %v2373
        %v2375 = vpop.f32.mrf.mxu0
        %2376 = vdwg.mxu0
        %2377 = vmatprep.subr.mxu0 0.0
        %v2378 = vand.u32 %v2267, 4294901760
        %v2379 = vsub.f32 %v2267, %v2378
        %v2380 = vand.u32 %v2379, 4294901760
        %v2381 = vsub.f32 %v2379, %v2380
        %v2382 = vand.u32 %v2381, 4294901760
        %2383 = vmatpush1.msra.mxu0 %v2382
        %2384 = vmatprep.subr.mxu0 0.0
        %v2385 = vand.u32 %v2266, 4294901760
        %v2386 = vsub.f32 %v2266, %v2385
        %v2387 = vand.u32 %v2386, 4294901760
        %v2388 = vsub.f32 %v2386, %v2387
        %v2389 = vand.u32 %v2388, 4294901760
        %2390 = vmatpush1.msra.mxu0 %v2389
        %2391 = vmatprep.subr.mxu0 0.0
        %v2392 = vand.u32 %v2265, 4294901760
        %v2393 = vsub.f32 %v2265, %v2392
        %v2394 = vand.u32 %v2393, 4294901760
        %v2395 = vsub.f32 %v2393, %v2394
        %v2396 = vand.u32 %v2395, 4294901760
        %2397 = vmatpush1.msra.mxu0 %v2396
        %2398 = vmatprep.subr.mxu0 0.0
        %v2399 = vand.u32 %v2264, 4294901760
        %v2400 = vsub.f32 %v2264, %v2399
        %v2401 = vand.u32 %v2400, 4294901760
        %v2402 = vsub.f32 %v2400, %v2401
        %v2403 = vand.u32 %v2402, 4294901760
        %2404 = vmatpush1.msra.mxu0 %v2403
        %2405 = vmatprep.subr.mxu0 0.0
        %v2406 = vand.u32 %v2263, 4294901760
        %v2407 = vsub.f32 %v2263, %v2406
        %v2408 = vand.u32 %v2407, 4294901760
        %v2409 = vsub.f32 %v2407, %v2408
        %v2410 = vand.u32 %v2409, 4294901760
        %2411 = vmatpush1.msra.mxu0 %v2410
        %2412 = vmatprep.subr.mxu0 0.0
        %v2413 = vand.u32 %v2262, 4294901760
        %v2414 = vsub.f32 %v2262, %v2413
        %v2415 = vand.u32 %v2414, 4294901760
        %v2416 = vsub.f32 %v2414, %v2415
        %v2417 = vand.u32 %v2416, 4294901760
        %2418 = vmatpush1.msra.mxu0 %v2417
        %2419 = vmatprep.subr.mxu0 0.0
        %v2420 = vand.u32 %v2261, 4294901760
        %v2421 = vsub.f32 %v2261, %v2420
        %v2422 = vand.u32 %v2421, 4294901760
        %v2423 = vsub.f32 %v2421, %v2422
        %v2424 = vand.u32 %v2423, 4294901760
        %2425 = vmatpush1.msra.mxu0 %v2424
        %2426 = vmatprep.subr.mxu0 0.0
        %v2427 = vand.u32 %v2260, 4294901760
        %v2428 = vsub.f32 %v2260, %v2427
        %v2429 = vand.u32 %v2428, 4294901760
        %v2430 = vsub.f32 %v2428, %v2429
        %v2431 = vand.u32 %v2430, 4294901760
        %2432 = vmatpush1.msra.mxu0 %v2431
        %2433 = vmatprep.subr.mxu0 0.0
        %v2434 = vand.u32 %v2259, 4294901760
        %v2435 = vsub.f32 %v2259, %v2434
        %v2436 = vand.u32 %v2435, 4294901760
        %v2437 = vsub.f32 %v2435, %v2436
        %v2438 = vand.u32 %v2437, 4294901760
        %2439 = vmatpush1.msra.mxu0 %v2438
        %2440 = vmatprep.subr.mxu0 0.0
        %v2441 = vand.u32 %v2258, 4294901760
        %v2442 = vsub.f32 %v2258, %v2441
        %v2443 = vand.u32 %v2442, 4294901760
        %v2444 = vsub.f32 %v2442, %v2443
        %v2445 = vand.u32 %v2444, 4294901760
        %2446 = vmatpush1.msra.mxu0 %v2445
        %2447 = vmatprep.subr.mxu0 0.0
        %v2448 = vand.u32 %v2257, 4294901760
        %v2449 = vsub.f32 %v2257, %v2448
        %v2450 = vand.u32 %v2449, 4294901760
        %v2451 = vsub.f32 %v2449, %v2450
        %v2452 = vand.u32 %v2451, 4294901760
        %2453 = vmatpush1.msra.mxu0 %v2452
        %2454 = vmatprep.subr.mxu0 0.0
        %v2455 = vand.u32 %v2256, 4294901760
        %v2456 = vsub.f32 %v2256, %v2455
        %v2457 = vand.u32 %v2456, 4294901760
        %v2458 = vsub.f32 %v2456, %v2457
        %v2459 = vand.u32 %v2458, 4294901760
        %2460 = vmatpush1.msra.mxu0 %v2459
        %2461 = vmatprep.subr.mxu0 0.0
        %v2462 = vand.u32 %v2255, 4294901760
        %v2463 = vsub.f32 %v2255, %v2462
        %v2464 = vand.u32 %v2463, 4294901760
        %v2465 = vsub.f32 %v2463, %v2464
        %v2466 = vand.u32 %v2465, 4294901760
        %2467 = vmatpush1.msra.mxu0 %v2466
        %2468 = vmatprep.subr.mxu0 0.0
        %v2469 = vand.u32 %v2254, 4294901760
        %v2470 = vsub.f32 %v2254, %v2469
        %v2471 = vand.u32 %v2470, 4294901760
        %v2472 = vsub.f32 %v2470, %v2471
        %v2473 = vand.u32 %v2472, 4294901760
        %2474 = vmatpush1.msra.mxu0 %v2473
        %2475 = vmatprep.subr.mxu0 0.0
        %v2476 = vand.u32 %v2253, 4294901760
        %v2477 = vsub.f32 %v2253, %v2476
        %v2478 = vand.u32 %v2477, 4294901760
        %v2479 = vsub.f32 %v2477, %v2478
        %v2480 = vand.u32 %v2479, 4294901760
        %2481 = vmatpush1.msra.mxu0 %v2480
        %2482 = vmatprep.subr.mxu0 0.0
        %v2483 = vand.u32 %v2252, 4294901760
        %v2484 = vsub.f32 %v2252, %v2483
        %v2485 = vand.u32 %v2484, 4294901760
        %v2486 = vsub.f32 %v2484, %v2485
        %v2487 = vand.u32 %v2486, 4294901760
        %2488 = vmatpush1.msra.mxu0 %v2487
        %2489 = vmatprep.subr.mxu0 0.0
        %2490 = vmatpush2.msra.mxu0 0.0
        %2491 = vmatprep.subr.mxu0 0.0
        %2492 = vmatpush2.msra.mxu0 0.0
        %2493 = vmatprep.subr.mxu0 0.0
        %2494 = vmatpush2.msra.mxu0 0.0
        %2495 = vmatprep.subr.mxu0 0.0
        %2496 = vmatpush2.msra.mxu0 0.0
        %2497 = vmatprep.subr.mxu0 0.0
        %2498 = vmatpush2.msra.mxu0 0.0
        %2499 = vmatprep.subr.mxu0 0.0
        %2500 = vmatpush2.msra.mxu0 0.0
        %2501 = vmatprep.subr.mxu0 0.0
        %2502 = vmatpush2.msra.mxu0 0.0
        %2503 = vmatprep.subr.mxu0 0.0
        %2504 = vmatpush2.msra.mxu0 0.0
        %2505 = vmatprep.subr.mxu0 0.0
        %2506 = vmatpush2.msra.mxu0 0.0
        %2507 = vmatprep.subr.mxu0 0.0
        %2508 = vmatpush2.msra.mxu0 0.0
        %2509 = vmatprep.subr.mxu0 0.0
        %2510 = vmatpush2.msra.mxu0 0.0
        %2511 = vmatprep.subr.mxu0 0.0
        %2512 = vmatpush2.msra.mxu0 0.0
        %2513 = vmatprep.subr.mxu0 0.0
        %2514 = vmatpush2.msra.mxu0 0.0
        %2515 = vmatprep.subr.mxu0 0.0
        %2516 = vmatpush2.msra.mxu0 0.0
        %2517 = vmatprep.subr.mxu0 0.0
        %2518 = vmatpush2.msra.mxu0 0.0
        %2519 = vmatprep.subr.mxu0 0.0
        %2520 = vmatpush2.msra.mxu0 0.0
        %2521 = vmatprep.mubr.f32.mxu0 0.0
        %v2522 = vand.u32 %v2271, 4294901760
        %2523 = vmatmul.mubr.f32.gmra.mxu0 %v2522
        %v2524 = vpop.f32.mrf.mxu0
        %v2525 = vadd.f32 %v2364, %v2524
        %v2526 = vpop.f32.mrf.mxu0
        %2527 = vmatprep.mubr.f32.mxu0 0.0
        %v2528 = vand.u32 %v2273, 4294901760
        %2529 = vmatmul.mubr.f32.gmra.mxu0 %v2528
        %v2530 = vpop.f32.mrf.mxu0
        %v2531 = vadd.f32 %v2374, %v2530
        %v2532 = vpop.f32.mrf.mxu0
        %2533 = vdwg.mxu0
        %2534 = vmatprep.subr.mxu0 0.0
        %v2535 = vand.u32 %v2267, 4294901760
        %v2536 = vsub.f32 %v2267, %v2535
        %2537 = vmatpush1.msra.mxu0 %v2536
        %2538 = vmatprep.subr.mxu0 0.0
        %v2539 = vand.u32 %v2266, 4294901760
        %v2540 = vsub.f32 %v2266, %v2539
        %2541 = vmatpush1.msra.mxu0 %v2540
        %2542 = vmatprep.subr.mxu0 0.0
        %v2543 = vand.u32 %v2265, 4294901760
        %v2544 = vsub.f32 %v2265, %v2543
        %2545 = vmatpush1.msra.mxu0 %v2544
        %2546 = vmatprep.subr.mxu0 0.0
        %v2547 = vand.u32 %v2264, 4294901760
        %v2548 = vsub.f32 %v2264, %v2547
        %2549 = vmatpush1.msra.mxu0 %v2548
        %2550 = vmatprep.subr.mxu0 0.0
        %v2551 = vand.u32 %v2263, 4294901760
        %v2552 = vsub.f32 %v2263, %v2551
        %2553 = vmatpush1.msra.mxu0 %v2552
        %2554 = vmatprep.subr.mxu0 0.0
        %v2555 = vand.u32 %v2262, 4294901760
        %v2556 = vsub.f32 %v2262, %v2555
        %2557 = vmatpush1.msra.mxu0 %v2556
        %2558 = vmatprep.subr.mxu0 0.0
        %v2559 = vand.u32 %v2261, 4294901760
        %v2560 = vsub.f32 %v2261, %v2559
        %2561 = vmatpush1.msra.mxu0 %v2560
        %2562 = vmatprep.subr.mxu0 0.0
        %v2563 = vand.u32 %v2260, 4294901760
        %v2564 = vsub.f32 %v2260, %v2563
        %2565 = vmatpush1.msra.mxu0 %v2564
        %2566 = vmatprep.subr.mxu0 0.0
        %v2567 = vand.u32 %v2259, 4294901760
        %v2568 = vsub.f32 %v2259, %v2567
        %2569 = vmatpush1.msra.mxu0 %v2568
        %2570 = vmatprep.subr.mxu0 0.0
        %v2571 = vand.u32 %v2258, 4294901760
        %v2572 = vsub.f32 %v2258, %v2571
        %2573 = vmatpush1.msra.mxu0 %v2572
        %2574 = vmatprep.subr.mxu0 0.0
        %v2575 = vand.u32 %v2257, 4294901760
        %v2576 = vsub.f32 %v2257, %v2575
        %2577 = vmatpush1.msra.mxu0 %v2576
        %2578 = vmatprep.subr.mxu0 0.0
        %v2579 = vand.u32 %v2256, 4294901760
        %v2580 = vsub.f32 %v2256, %v2579
        %2581 = vmatpush1.msra.mxu0 %v2580
        %2582 = vmatprep.subr.mxu0 0.0
        %v2583 = vand.u32 %v2255, 4294901760
        %v2584 = vsub.f32 %v2255, %v2583
        %2585 = vmatpush1.msra.mxu0 %v2584
        %2586 = vmatprep.subr.mxu0 0.0
        %v2587 = vand.u32 %v2254, 4294901760
        %v2588 = vsub.f32 %v2254, %v2587
        %2589 = vmatpush1.msra.mxu0 %v2588
        %2590 = vmatprep.subr.mxu0 0.0
        %v2591 = vand.u32 %v2253, 4294901760
        %v2592 = vsub.f32 %v2253, %v2591
        %2593 = vmatpush1.msra.mxu0 %v2592
        %2594 = vmatprep.subr.mxu0 0.0
        %v2595 = vand.u32 %v2252, 4294901760
        %v2596 = vsub.f32 %v2252, %v2595
        %2597 = vmatpush1.msra.mxu0 %v2596
        %2598 = vmatprep.subr.mxu0 0.0
        %2599 = vmatpush2.msra.mxu0 0.0
        %2600 = vmatprep.subr.mxu0 0.0
        %2601 = vmatpush2.msra.mxu0 0.0
        %2602 = vmatprep.subr.mxu0 0.0
        %2603 = vmatpush2.msra.mxu0 0.0
        %2604 = vmatprep.subr.mxu0 0.0
        %2605 = vmatpush2.msra.mxu0 0.0
        %2606 = vmatprep.subr.mxu0 0.0
        %2607 = vmatpush2.msra.mxu0 0.0
        %2608 = vmatprep.subr.mxu0 0.0
        %2609 = vmatpush2.msra.mxu0 0.0
        %2610 = vmatprep.subr.mxu0 0.0
        %2611 = vmatpush2.msra.mxu0 0.0
        %2612 = vmatprep.subr.mxu0 0.0
        %2613 = vmatpush2.msra.mxu0 0.0
        %2614 = vmatprep.subr.mxu0 0.0
        %2615 = vmatpush2.msra.mxu0 0.0
        %2616 = vmatprep.subr.mxu0 0.0
        %2617 = vmatpush2.msra.mxu0 0.0
        %2618 = vmatprep.subr.mxu0 0.0
        %2619 = vmatpush2.msra.mxu0 0.0
        %2620 = vmatprep.subr.mxu0 0.0
        %2621 = vmatpush2.msra.mxu0 0.0
        %2622 = vmatprep.subr.mxu0 0.0
        %2623 = vmatpush2.msra.mxu0 0.0
        %2624 = vmatprep.subr.mxu0 0.0
        %2625 = vmatpush2.msra.mxu0 0.0
        %2626 = vmatprep.subr.mxu0 0.0
        %2627 = vmatpush2.msra.mxu0 0.0
        %2628 = vmatprep.subr.mxu0 0.0
        %2629 = vmatpush2.msra.mxu0 0.0
        %2630 = vmatprep.mubr.f32.mxu0 0.0
        %v2631 = vand.u32 %v2271, 4294901760
        %v2632 = vsub.f32 %v2271, %v2631
        %2633 = vmatmul.mubr.f32.gmra.mxu0 %v2632
        %v2634 = vpop.f32.mrf.mxu0
        %v2635 = vadd.f32 %v2525, %v2634
        %v2636 = vpop.f32.mrf.mxu0
        %2637 = vmatprep.mubr.f32.mxu0 0.0
        %v2638 = vand.u32 %v2273, 4294901760
        %v2639 = vsub.f32 %v2273, %v2638
        %2640 = vmatmul.mubr.f32.gmra.mxu0 %v2639
        %v2641 = vpop.f32.mrf.mxu0
        %v2642 = vadd.f32 %v2531, %v2641
        %v2643 = vpop.f32.mrf.mxu0
        %2644 = vdwg.mxu0
        %2645 = vmatprep.subr.mxu0 0.0
        %v2646 = vand.u32 %v2267, 4294901760
        %2647 = vmatpush1.msra.mxu0 %v2646
        %2648 = vmatprep.subr.mxu0 0.0
        %v2649 = vand.u32 %v2266, 4294901760
        %2650 = vmatpush1.msra.mxu0 %v2649
        %2651 = vmatprep.subr.mxu0 0.0
        %v2652 = vand.u32 %v2265, 4294901760
        %2653 = vmatpush1.msra.mxu0 %v2652
        %2654 = vmatprep.subr.mxu0 0.0
        %v2655 = vand.u32 %v2264, 4294901760
        %2656 = vmatpush1.msra.mxu0 %v2655
        %2657 = vmatprep.subr.mxu0 0.0
        %v2658 = vand.u32 %v2263, 4294901760
        %2659 = vmatpush1.msra.mxu0 %v2658
        %2660 = vmatprep.subr.mxu0 0.0
        %v2661 = vand.u32 %v2262, 4294901760
        %2662 = vmatpush1.msra.mxu0 %v2661
        %2663 = vmatprep.subr.mxu0 0.0
        %v2664 = vand.u32 %v2261, 4294901760
        %2665 = vmatpush1.msra.mxu0 %v2664
        %2666 = vmatprep.subr.mxu0 0.0
        %v2667 = vand.u32 %v2260, 4294901760
        %2668 = vmatpush1.msra.mxu0 %v2667
        %2669 = vmatprep.subr.mxu0 0.0
        %v2670 = vand.u32 %v2259, 4294901760
        %2671 = vmatpush1.msra.mxu0 %v2670
        %2672 = vmatprep.subr.mxu0 0.0
        %v2673 = vand.u32 %v2258, 4294901760
        %2674 = vmatpush1.msra.mxu0 %v2673
        %2675 = vmatprep.subr.mxu0 0.0
        %v2676 = vand.u32 %v2257, 4294901760
        %2677 = vmatpush1.msra.mxu0 %v2676
        %2678 = vmatprep.subr.mxu0 0.0
        %v2679 = vand.u32 %v2256, 4294901760
        %2680 = vmatpush1.msra.mxu0 %v2679
        %2681 = vmatprep.subr.mxu0 0.0
        %v2682 = vand.u32 %v2255, 4294901760
        %2683 = vmatpush1.msra.mxu0 %v2682
        %2684 = vmatprep.subr.mxu0 0.0
        %v2685 = vand.u32 %v2254, 4294901760
        %2686 = vmatpush1.msra.mxu0 %v2685
        %2687 = vmatprep.subr.mxu0 0.0
        %v2688 = vand.u32 %v2253, 4294901760
        %2689 = vmatpush1.msra.mxu0 %v2688
        %2690 = vmatprep.subr.mxu0 0.0
        %v2691 = vand.u32 %v2252, 4294901760
        %2692 = vmatpush1.msra.mxu0 %v2691
        %2693 = vmatprep.subr.mxu0 0.0
        %2694 = vmatpush2.msra.mxu0 0.0
        %2695 = vmatprep.subr.mxu0 0.0
        %2696 = vmatpush2.msra.mxu0 0.0
        %2697 = vmatprep.subr.mxu0 0.0
        %2698 = vmatpush2.msra.mxu0 0.0
        %2699 = vmatprep.subr.mxu0 0.0
        %2700 = vmatpush2.msra.mxu0 0.0
        %2701 = vmatprep.subr.mxu0 0.0
        %2702 = vmatpush2.msra.mxu0 0.0
        %2703 = vmatprep.subr.mxu0 0.0
        %2704 = vmatpush2.msra.mxu0 0.0
        %2705 = vmatprep.subr.mxu0 0.0
        %2706 = vmatpush2.msra.mxu0 0.0
        %2707 = vmatprep.subr.mxu0 0.0
        %2708 = vmatpush2.msra.mxu0 0.0
        %2709 = vmatprep.subr.mxu0 0.0
        %2710 = vmatpush2.msra.mxu0 0.0
        %2711 = vmatprep.subr.mxu0 0.0
        %2712 = vmatpush2.msra.mxu0 0.0
        %2713 = vmatprep.subr.mxu0 0.0
        %2714 = vmatpush2.msra.mxu0 0.0
        %2715 = vmatprep.subr.mxu0 0.0
        %2716 = vmatpush2.msra.mxu0 0.0
        %2717 = vmatprep.subr.mxu0 0.0
        %2718 = vmatpush2.msra.mxu0 0.0
        %2719 = vmatprep.subr.mxu0 0.0
        %2720 = vmatpush2.msra.mxu0 0.0
        %2721 = vmatprep.subr.mxu0 0.0
        %2722 = vmatpush2.msra.mxu0 0.0
        %2723 = vmatprep.subr.mxu0 0.0
        %2724 = vmatpush2.msra.mxu0 0.0
        %2725 = vmatprep.mubr.f32.mxu0 0.0
        %v2726 = vand.u32 %v2271, 4294901760
        %v2727 = vsub.f32 %v2271, %v2726
        %v2728 = vand.u32 %v2727, 4294901760
        %2729 = vmatmul.mubr.f32.gmra.mxu0 %v2728
        %v2730 = vpop.f32.mrf.mxu0
        %v2731 = vadd.f32 %v2635, %v2730
        %v2732 = vpop.f32.mrf.mxu0
        %2733 = vmatprep.mubr.f32.mxu0 0.0
        %v2734 = vand.u32 %v2273, 4294901760
        %v2735 = vsub.f32 %v2273, %v2734
        %v2736 = vand.u32 %v2735, 4294901760
        %2737 = vmatmul.mubr.f32.gmra.mxu0 %v2736
        %v2738 = vpop.f32.mrf.mxu0
        %v2739 = vadd.f32 %v2642, %v2738
        %v2740 = vpop.f32.mrf.mxu0
        %2741 = vdwg.mxu0
        %2742 = vmatprep.subr.mxu0 0.0
        %v2743 = vand.u32 %v2267, 4294901760
        %v2744 = vsub.f32 %v2267, %v2743
        %v2745 = vand.u32 %v2744, 4294901760
        %2746 = vmatpush1.msra.mxu0 %v2745
        %2747 = vmatprep.subr.mxu0 0.0
        %v2748 = vand.u32 %v2266, 4294901760
        %v2749 = vsub.f32 %v2266, %v2748
        %v2750 = vand.u32 %v2749, 4294901760
        %2751 = vmatpush1.msra.mxu0 %v2750
        %2752 = vmatprep.subr.mxu0 0.0
        %v2753 = vand.u32 %v2265, 4294901760
        %v2754 = vsub.f32 %v2265, %v2753
        %v2755 = vand.u32 %v2754, 4294901760
        %2756 = vmatpush1.msra.mxu0 %v2755
        %2757 = vmatprep.subr.mxu0 0.0
        %v2758 = vand.u32 %v2264, 4294901760
        %v2759 = vsub.f32 %v2264, %v2758
        %v2760 = vand.u32 %v2759, 4294901760
        %2761 = vmatpush1.msra.mxu0 %v2760
        %2762 = vmatprep.subr.mxu0 0.0
        %v2763 = vand.u32 %v2263, 4294901760
        %v2764 = vsub.f32 %v2263, %v2763
        %v2765 = vand.u32 %v2764, 4294901760
        %2766 = vmatpush1.msra.mxu0 %v2765
        %2767 = vmatprep.subr.mxu0 0.0
        %v2768 = vand.u32 %v2262, 4294901760
        %v2769 = vsub.f32 %v2262, %v2768
        %v2770 = vand.u32 %v2769, 4294901760
        %2771 = vmatpush1.msra.mxu0 %v2770
        %2772 = vmatprep.subr.mxu0 0.0
        %v2773 = vand.u32 %v2261, 4294901760
        %v2774 = vsub.f32 %v2261, %v2773
        %v2775 = vand.u32 %v2774, 4294901760
        %2776 = vmatpush1.msra.mxu0 %v2775
        %2777 = vmatprep.subr.mxu0 0.0
        %v2778 = vand.u32 %v2260, 4294901760
        %v2779 = vsub.f32 %v2260, %v2778
        %v2780 = vand.u32 %v2779, 4294901760
        %2781 = vmatpush1.msra.mxu0 %v2780
        %2782 = vmatprep.subr.mxu0 0.0
        %v2783 = vand.u32 %v2259, 4294901760
        %v2784 = vsub.f32 %v2259, %v2783
        %v2785 = vand.u32 %v2784, 4294901760
        %2786 = vmatpush1.msra.mxu0 %v2785
        %2787 = vmatprep.subr.mxu0 0.0
        %v2788 = vand.u32 %v2258, 4294901760
        %v2789 = vsub.f32 %v2258, %v2788
        %v2790 = vand.u32 %v2789, 4294901760
        %2791 = vmatpush1.msra.mxu0 %v2790
        %2792 = vmatprep.subr.mxu0 0.0
        %v2793 = vand.u32 %v2257, 4294901760
        %v2794 = vsub.f32 %v2257, %v2793
        %v2795 = vand.u32 %v2794, 4294901760
        %2796 = vmatpush1.msra.mxu0 %v2795
        %2797 = vmatprep.subr.mxu0 0.0
        %v2798 = vand.u32 %v2256, 4294901760
        %v2799 = vsub.f32 %v2256, %v2798
        %v2800 = vand.u32 %v2799, 4294901760
        %2801 = vmatpush1.msra.mxu0 %v2800
        %2802 = vmatprep.subr.mxu0 0.0
        %v2803 = vand.u32 %v2255, 4294901760
        %v2804 = vsub.f32 %v2255, %v2803
        %v2805 = vand.u32 %v2804, 4294901760
        %2806 = vmatpush1.msra.mxu0 %v2805
        %2807 = vmatprep.subr.mxu0 0.0
        %v2808 = vand.u32 %v2254, 4294901760
        %v2809 = vsub.f32 %v2254, %v2808
        %v2810 = vand.u32 %v2809, 4294901760
        %2811 = vmatpush1.msra.mxu0 %v2810
        %2812 = vmatprep.subr.mxu0 0.0
        %v2813 = vand.u32 %v2253, 4294901760
        %v2814 = vsub.f32 %v2253, %v2813
        %v2815 = vand.u32 %v2814, 4294901760
        %2816 = vmatpush1.msra.mxu0 %v2815
        %2817 = vmatprep.subr.mxu0 0.0
        %v2818 = vand.u32 %v2252, 4294901760
        %v2819 = vsub.f32 %v2252, %v2818
        %v2820 = vand.u32 %v2819, 4294901760
        %2821 = vmatpush1.msra.mxu0 %v2820
        %2822 = vmatprep.subr.mxu0 0.0
        %2823 = vmatpush2.msra.mxu0 0.0
        %2824 = vmatprep.subr.mxu0 0.0
        %2825 = vmatpush2.msra.mxu0 0.0
        %2826 = vmatprep.subr.mxu0 0.0
        %2827 = vmatpush2.msra.mxu0 0.0
        %2828 = vmatprep.subr.mxu0 0.0
        %2829 = vmatpush2.msra.mxu0 0.0
        %2830 = vmatprep.subr.mxu0 0.0
        %2831 = vmatpush2.msra.mxu0 0.0
        %2832 = vmatprep.subr.mxu0 0.0
        %2833 = vmatpush2.msra.mxu0 0.0
        %2834 = vmatprep.subr.mxu0 0.0
        %2835 = vmatpush2.msra.mxu0 0.0
        %2836 = vmatprep.subr.mxu0 0.0
        %2837 = vmatpush2.msra.mxu0 0.0
        %2838 = vmatprep.subr.mxu0 0.0
        %2839 = vmatpush2.msra.mxu0 0.0
        %2840 = vmatprep.subr.mxu0 0.0
        %2841 = vmatpush2.msra.mxu0 0.0
        %2842 = vmatprep.subr.mxu0 0.0
        %2843 = vmatpush2.msra.mxu0 0.0
        %2844 = vmatprep.subr.mxu0 0.0
        %2845 = vmatpush2.msra.mxu0 0.0
        %2846 = vmatprep.subr.mxu0 0.0
        %2847 = vmatpush2.msra.mxu0 0.0
        %2848 = vmatprep.subr.mxu0 0.0
        %2849 = vmatpush2.msra.mxu0 0.0
        %2850 = vmatprep.subr.mxu0 0.0
        %2851 = vmatpush2.msra.mxu0 0.0
        %2852 = vmatprep.subr.mxu0 0.0
        %2853 = vmatpush2.msra.mxu0 0.0
        %2854 = vmatprep.mubr.f32.mxu0 0.0
        %v2855 = vand.u32 %v2271, 4294901760
        %2856 = vmatmul.mubr.f32.gmra.mxu0 %v2855
        %v2857 = vpop.f32.mrf.mxu0
        %v2858 = vadd.f32 %v2731, %v2857
        %v2859 = vpop.f32.mrf.mxu0
        %2860 = vmatprep.mubr.f32.mxu0 0.0
        %v2861 = vand.u32 %v2273, 4294901760
        %2862 = vmatmul.mubr.f32.gmra.mxu0 %v2861
        %v2863 = vpop.f32.mrf.mxu0
        %v2864 = vadd.f32 %v2739, %v2863
        %v2865 = vpop.f32.mrf.mxu0
        %2866 = vdwg.mxu0
        %2867 = vmatprep.subr.mxu0 0.0
        %v2868 = vand.u32 %v2267, 4294901760
        %2869 = vmatpush1.msra.mxu0 %v2868
        %2870 = vmatprep.subr.mxu0 0.0
        %v2871 = vand.u32 %v2266, 4294901760
        %2872 = vmatpush1.msra.mxu0 %v2871
        %2873 = vmatprep.subr.mxu0 0.0
        %v2874 = vand.u32 %v2265, 4294901760
        %2875 = vmatpush1.msra.mxu0 %v2874
        %2876 = vmatprep.subr.mxu0 0.0
        %v2877 = vand.u32 %v2264, 4294901760
        %2878 = vmatpush1.msra.mxu0 %v2877
        %2879 = vmatprep.subr.mxu0 0.0
        %v2880 = vand.u32 %v2263, 4294901760
        %2881 = vmatpush1.msra.mxu0 %v2880
        %2882 = vmatprep.subr.mxu0 0.0
        %v2883 = vand.u32 %v2262, 4294901760
        %2884 = vmatpush1.msra.mxu0 %v2883
        %2885 = vmatprep.subr.mxu0 0.0
        %v2886 = vand.u32 %v2261, 4294901760
        %2887 = vmatpush1.msra.mxu0 %v2886
        %2888 = vmatprep.subr.mxu0 0.0
        %v2889 = vand.u32 %v2260, 4294901760
        %2890 = vmatpush1.msra.mxu0 %v2889
        %2891 = vmatprep.subr.mxu0 0.0
        %v2892 = vand.u32 %v2259, 4294901760
        %2893 = vmatpush1.msra.mxu0 %v2892
        %2894 = vmatprep.subr.mxu0 0.0
        %v2895 = vand.u32 %v2258, 4294901760
        %2896 = vmatpush1.msra.mxu0 %v2895
        %2897 = vmatprep.subr.mxu0 0.0
        %v2898 = vand.u32 %v2257, 4294901760
        %2899 = vmatpush1.msra.mxu0 %v2898
        %2900 = vmatprep.subr.mxu0 0.0
        %v2901 = vand.u32 %v2256, 4294901760
        %2902 = vmatpush1.msra.mxu0 %v2901
        %2903 = vmatprep.subr.mxu0 0.0
        %v2904 = vand.u32 %v2255, 4294901760
        %2905 = vmatpush1.msra.mxu0 %v2904
        %2906 = vmatprep.subr.mxu0 0.0
        %v2907 = vand.u32 %v2254, 4294901760
        %2908 = vmatpush1.msra.mxu0 %v2907
        %2909 = vmatprep.subr.mxu0 0.0
        %v2910 = vand.u32 %v2253, 4294901760
        %2911 = vmatpush1.msra.mxu0 %v2910
        %2912 = vmatprep.subr.mxu0 0.0
        %v2913 = vand.u32 %v2252, 4294901760
        %2914 = vmatpush1.msra.mxu0 %v2913
        %2915 = vmatprep.subr.mxu0 0.0
        %2916 = vmatpush2.msra.mxu0 0.0
        %2917 = vmatprep.subr.mxu0 0.0
        %2918 = vmatpush2.msra.mxu0 0.0
        %2919 = vmatprep.subr.mxu0 0.0
        %2920 = vmatpush2.msra.mxu0 0.0
        %2921 = vmatprep.subr.mxu0 0.0
        %2922 = vmatpush2.msra.mxu0 0.0
        %2923 = vmatprep.subr.mxu0 0.0
        %2924 = vmatpush2.msra.mxu0 0.0
        %2925 = vmatprep.subr.mxu0 0.0
        %2926 = vmatpush2.msra.mxu0 0.0
        %2927 = vmatprep.subr.mxu0 0.0
        %2928 = vmatpush2.msra.mxu0 0.0
        %2929 = vmatprep.subr.mxu0 0.0
        %2930 = vmatpush2.msra.mxu0 0.0
        %2931 = vmatprep.subr.mxu0 0.0
        %2932 = vmatpush2.msra.mxu0 0.0
        %2933 = vmatprep.subr.mxu0 0.0
        %2934 = vmatpush2.msra.mxu0 0.0
        %2935 = vmatprep.subr.mxu0 0.0
        %2936 = vmatpush2.msra.mxu0 0.0
        %2937 = vmatprep.subr.mxu0 0.0
        %2938 = vmatpush2.msra.mxu0 0.0
        %2939 = vmatprep.subr.mxu0 0.0
        %2940 = vmatpush2.msra.mxu0 0.0
        %2941 = vmatprep.subr.mxu0 0.0
        %2942 = vmatpush2.msra.mxu0 0.0
        %2943 = vmatprep.subr.mxu0 0.0
        %2944 = vmatpush2.msra.mxu0 0.0
        %2945 = vmatprep.subr.mxu0 0.0
        %2946 = vmatpush2.msra.mxu0 0.0
        %2947 = vmatprep.mubr.f32.mxu0 0.0
        %v2948 = vand.u32 %v2271, 4294901760
        %2949 = vmatmul.mubr.f32.gmra.mxu0 %v2948
        %v2950 = vpop.f32.mrf.mxu0
        %v2951 = vadd.f32 %v2858, %v2950
        %v2952 = vpop.f32.mrf.mxu0
        %2953 = vmatprep.mubr.f32.mxu0 0.0
        %v2954 = vand.u32 %v2273, 4294901760
        %2955 = vmatmul.mubr.f32.gmra.mxu0 %v2954
        %v2956 = vpop.f32.mrf.mxu0
        %v2957 = vadd.f32 %v2864, %v2956
        %v2958 = vpop.f32.mrf.mxu0
        %2959 = vdwg.mxu0
        %v2960 = vadd.f32 %v2249, %v2951
        %v2961 = vadd.f32 %v2250, %v2957
        %s2962 = scalar_lea.vmem %s1, 512
        %v2963 = vld [vmem:[%s2962] sm:$0xff]
        %v2964 = vld [vmem:[%s2962 + $0x8] sm:$0xff]
        %v2965 = vld [vmem:[%s2962 + $0x10] sm:$0xff]
        %v2966 = vld [vmem:[%s2962 + $0x18] sm:$0xff]
        %v2967 = vld [vmem:[%s2962 + $0x20] sm:$0xff]
        %v2968 = vld [vmem:[%s2962 + $0x28] sm:$0xff]
        %v2969 = vld [vmem:[%s2962 + $0x30] sm:$0xff]
        %v2970 = vld [vmem:[%s2962 + $0x38] sm:$0xff]
        %v2971 = vld [vmem:[%s2962 + $0x40] sm:$0xff]
        %v2972 = vld [vmem:[%s2962 + $0x48] sm:$0xff]
        %v2973 = vld [vmem:[%s2962 + $0x50] sm:$0xff]
        %v2974 = vld [vmem:[%s2962 + $0x58] sm:$0xff]
        %v2975 = vld [vmem:[%s2962 + $0x60] sm:$0xff]
        %v2976 = vld [vmem:[%s2962 + $0x68] sm:$0xff]
        %v2977 = vld [vmem:[%s2962 + $0x70] sm:$0xff]
        %v2978 = vld [vmem:[%s2962 + $0x78] sm:$0xff]
        %vm2979 = vcmask 1043456
        %v2980 = vrot.slane %v125, 4
        %v2981 = vrot.slane %v126, 4
        %v2982 = vsel %vm2979, %v2980, %v2981
        %v2983 = vrot.slane %v127, 4
        %v2984 = vsel %vm2979, %v2981, %v2983
        %2987 = vmatprep.subr.mxu0 0.0
        %v2988 = vand.u32 %v2978, 4294901760
        %2989 = vmatpush1.msra.mxu0 %v2988
        %2990 = vmatprep.subr.mxu0 0.0
        %v2991 = vand.u32 %v2977, 4294901760
        %2992 = vmatpush1.msra.mxu0 %v2991
        %2993 = vmatprep.subr.mxu0 0.0
        %v2994 = vand.u32 %v2976, 4294901760
        %2995 = vmatpush1.msra.mxu0 %v2994
        %2996 = vmatprep.subr.mxu0 0.0
        %v2997 = vand.u32 %v2975, 4294901760
        %2998 = vmatpush1.msra.mxu0 %v2997
        %2999 = vmatprep.subr.mxu0 0.0
        %v3000 = vand.u32 %v2974, 4294901760
        %3001 = vmatpush1.msra.mxu0 %v3000
        %3002 = vmatprep.subr.mxu0 0.0
        %v3003 = vand.u32 %v2973, 4294901760
        %3004 = vmatpush1.msra.mxu0 %v3003
        %3005 = vmatprep.subr.mxu0 0.0
        %v3006 = vand.u32 %v2972, 4294901760
        %3007 = vmatpush1.msra.mxu0 %v3006
        %3008 = vmatprep.subr.mxu0 0.0
        %v3009 = vand.u32 %v2971, 4294901760
        %3010 = vmatpush1.msra.mxu0 %v3009
        %3011 = vmatprep.subr.mxu0 0.0
        %v3012 = vand.u32 %v2970, 4294901760
        %3013 = vmatpush1.msra.mxu0 %v3012
        %3014 = vmatprep.subr.mxu0 0.0
        %v3015 = vand.u32 %v2969, 4294901760
        %3016 = vmatpush1.msra.mxu0 %v3015
        %3017 = vmatprep.subr.mxu0 0.0
        %v3018 = vand.u32 %v2968, 4294901760
        %3019 = vmatpush1.msra.mxu0 %v3018
        %3020 = vmatprep.subr.mxu0 0.0
        %v3021 = vand.u32 %v2967, 4294901760
        %3022 = vmatpush1.msra.mxu0 %v3021
        %3023 = vmatprep.subr.mxu0 0.0
        %v3024 = vand.u32 %v2966, 4294901760
        %3025 = vmatpush1.msra.mxu0 %v3024
        %3026 = vmatprep.subr.mxu0 0.0
        %v3027 = vand.u32 %v2965, 4294901760
        %3028 = vmatpush1.msra.mxu0 %v3027
        %3029 = vmatprep.subr.mxu0 0.0
        %v3030 = vand.u32 %v2964, 4294901760
        %3031 = vmatpush1.msra.mxu0 %v3030
        %3032 = vmatprep.subr.mxu0 0.0
        %v3033 = vand.u32 %v2963, 4294901760
        %3034 = vmatpush1.msra.mxu0 %v3033
        %3035 = vmatprep.subr.mxu0 0.0
        %3036 = vmatpush2.msra.mxu0 0.0
        %3037 = vmatprep.subr.mxu0 0.0
        %3038 = vmatpush2.msra.mxu0 0.0
        %3039 = vmatprep.subr.mxu0 0.0
        %3040 = vmatpush2.msra.mxu0 0.0
        %3041 = vmatprep.subr.mxu0 0.0
        %3042 = vmatpush2.msra.mxu0 0.0
        %3043 = vmatprep.subr.mxu0 0.0
        %3044 = vmatpush2.msra.mxu0 0.0
        %3045 = vmatprep.subr.mxu0 0.0
        %3046 = vmatpush2.msra.mxu0 0.0
        %3047 = vmatprep.subr.mxu0 0.0
        %3048 = vmatpush2.msra.mxu0 0.0
        %3049 = vmatprep.subr.mxu0 0.0
        %3050 = vmatpush2.msra.mxu0 0.0
        %3051 = vmatprep.subr.mxu0 0.0
        %3052 = vmatpush2.msra.mxu0 0.0
        %3053 = vmatprep.subr.mxu0 0.0
        %3054 = vmatpush2.msra.mxu0 0.0
        %3055 = vmatprep.subr.mxu0 0.0
        %3056 = vmatpush2.msra.mxu0 0.0
        %3057 = vmatprep.subr.mxu0 0.0
        %3058 = vmatpush2.msra.mxu0 0.0
        %3059 = vmatprep.subr.mxu0 0.0
        %3060 = vmatpush2.msra.mxu0 0.0
        %3061 = vmatprep.subr.mxu0 0.0
        %3062 = vmatpush2.msra.mxu0 0.0
        %3063 = vmatprep.subr.mxu0 0.0
        %3064 = vmatpush2.msra.mxu0 0.0
        %3065 = vmatprep.subr.mxu0 0.0
        %3066 = vmatpush2.msra.mxu0 0.0
        %3067 = vmatprep.mubr.f32.mxu0 0.0
        %v3068 = vand.u32 %v2982, 4294901760
        %v3069 = vsub.f32 %v2982, %v3068
        %v3070 = vand.u32 %v3069, 4294901760
        %v3071 = vsub.f32 %v3069, %v3070
        %v3072 = vand.u32 %v3071, 4294901760
        %3073 = vmatmul.mubr.f32.gmra.mxu0 %v3072
        %v3074 = vpop.f32.mrf.mxu0
        %v3075 = vadd.f32 0.0, %v3074
        %v3076 = vpop.f32.mrf.mxu0
        %3077 = vmatprep.mubr.f32.mxu0 0.0
        %v3078 = vand.u32 %v2984, 4294901760
        %v3079 = vsub.f32 %v2984, %v3078
        %v3080 = vand.u32 %v3079, 4294901760
        %v3081 = vsub.f32 %v3079, %v3080
        %v3082 = vand.u32 %v3081, 4294901760
        %3083 = vmatmul.mubr.f32.gmra.mxu0 %v3082
        %v3084 = vpop.f32.mrf.mxu0
        %v3085 = vadd.f32 0.0, %v3084
        %v3086 = vpop.f32.mrf.mxu0
        %3087 = vdwg.mxu0
        %3088 = vmatprep.subr.mxu0 0.0
        %v3089 = vand.u32 %v2978, 4294901760
        %v3090 = vsub.f32 %v2978, %v3089
        %v3091 = vand.u32 %v3090, 4294901760
        %v3092 = vsub.f32 %v3090, %v3091
        %v3093 = vand.u32 %v3092, 4294901760
        %3094 = vmatpush1.msra.mxu0 %v3093
        %3095 = vmatprep.subr.mxu0 0.0
        %v3096 = vand.u32 %v2977, 4294901760
        %v3097 = vsub.f32 %v2977, %v3096
        %v3098 = vand.u32 %v3097, 4294901760
        %v3099 = vsub.f32 %v3097, %v3098
        %v3100 = vand.u32 %v3099, 4294901760
        %3101 = vmatpush1.msra.mxu0 %v3100
        %3102 = vmatprep.subr.mxu0 0.0
        %v3103 = vand.u32 %v2976, 4294901760
        %v3104 = vsub.f32 %v2976, %v3103
        %v3105 = vand.u32 %v3104, 4294901760
        %v3106 = vsub.f32 %v3104, %v3105
        %v3107 = vand.u32 %v3106, 4294901760
        %3108 = vmatpush1.msra.mxu0 %v3107
        %3109 = vmatprep.subr.mxu0 0.0
        %v3110 = vand.u32 %v2975, 4294901760
        %v3111 = vsub.f32 %v2975, %v3110
        %v3112 = vand.u32 %v3111, 4294901760
        %v3113 = vsub.f32 %v3111, %v3112
        %v3114 = vand.u32 %v3113, 4294901760
        %3115 = vmatpush1.msra.mxu0 %v3114
        %3116 = vmatprep.subr.mxu0 0.0
        %v3117 = vand.u32 %v2974, 4294901760
        %v3118 = vsub.f32 %v2974, %v3117
        %v3119 = vand.u32 %v3118, 4294901760
        %v3120 = vsub.f32 %v3118, %v3119
        %v3121 = vand.u32 %v3120, 4294901760
        %3122 = vmatpush1.msra.mxu0 %v3121
        %3123 = vmatprep.subr.mxu0 0.0
        %v3124 = vand.u32 %v2973, 4294901760
        %v3125 = vsub.f32 %v2973, %v3124
        %v3126 = vand.u32 %v3125, 4294901760
        %v3127 = vsub.f32 %v3125, %v3126
        %v3128 = vand.u32 %v3127, 4294901760
        %3129 = vmatpush1.msra.mxu0 %v3128
        %3130 = vmatprep.subr.mxu0 0.0
        %v3131 = vand.u32 %v2972, 4294901760
        %v3132 = vsub.f32 %v2972, %v3131
        %v3133 = vand.u32 %v3132, 4294901760
        %v3134 = vsub.f32 %v3132, %v3133
        %v3135 = vand.u32 %v3134, 4294901760
        %3136 = vmatpush1.msra.mxu0 %v3135
        %3137 = vmatprep.subr.mxu0 0.0
        %v3138 = vand.u32 %v2971, 4294901760
        %v3139 = vsub.f32 %v2971, %v3138
        %v3140 = vand.u32 %v3139, 4294901760
        %v3141 = vsub.f32 %v3139, %v3140
        %v3142 = vand.u32 %v3141, 4294901760
        %3143 = vmatpush1.msra.mxu0 %v3142
        %3144 = vmatprep.subr.mxu0 0.0
        %v3145 = vand.u32 %v2970, 4294901760
        %v3146 = vsub.f32 %v2970, %v3145
        %v3147 = vand.u32 %v3146, 4294901760
        %v3148 = vsub.f32 %v3146, %v3147
        %v3149 = vand.u32 %v3148, 4294901760
        %3150 = vmatpush1.msra.mxu0 %v3149
        %3151 = vmatprep.subr.mxu0 0.0
        %v3152 = vand.u32 %v2969, 4294901760
        %v3153 = vsub.f32 %v2969, %v3152
        %v3154 = vand.u32 %v3153, 4294901760
        %v3155 = vsub.f32 %v3153, %v3154
        %v3156 = vand.u32 %v3155, 4294901760
        %3157 = vmatpush1.msra.mxu0 %v3156
        %3158 = vmatprep.subr.mxu0 0.0
        %v3159 = vand.u32 %v2968, 4294901760
        %v3160 = vsub.f32 %v2968, %v3159
        %v3161 = vand.u32 %v3160, 4294901760
        %v3162 = vsub.f32 %v3160, %v3161
        %v3163 = vand.u32 %v3162, 4294901760
        %3164 = vmatpush1.msra.mxu0 %v3163
        %3165 = vmatprep.subr.mxu0 0.0
        %v3166 = vand.u32 %v2967, 4294901760
        %v3167 = vsub.f32 %v2967, %v3166
        %v3168 = vand.u32 %v3167, 4294901760
        %v3169 = vsub.f32 %v3167, %v3168
        %v3170 = vand.u32 %v3169, 4294901760
        %3171 = vmatpush1.msra.mxu0 %v3170
        %3172 = vmatprep.subr.mxu0 0.0
        %v3173 = vand.u32 %v2966, 4294901760
        %v3174 = vsub.f32 %v2966, %v3173
        %v3175 = vand.u32 %v3174, 4294901760
        %v3176 = vsub.f32 %v3174, %v3175
        %v3177 = vand.u32 %v3176, 4294901760
        %3178 = vmatpush1.msra.mxu0 %v3177
        %3179 = vmatprep.subr.mxu0 0.0
        %v3180 = vand.u32 %v2965, 4294901760
        %v3181 = vsub.f32 %v2965, %v3180
        %v3182 = vand.u32 %v3181, 4294901760
        %v3183 = vsub.f32 %v3181, %v3182
        %v3184 = vand.u32 %v3183, 4294901760
        %3185 = vmatpush1.msra.mxu0 %v3184
        %3186 = vmatprep.subr.mxu0 0.0
        %v3187 = vand.u32 %v2964, 4294901760
        %v3188 = vsub.f32 %v2964, %v3187
        %v3189 = vand.u32 %v3188, 4294901760
        %v3190 = vsub.f32 %v3188, %v3189
        %v3191 = vand.u32 %v3190, 4294901760
        %3192 = vmatpush1.msra.mxu0 %v3191
        %3193 = vmatprep.subr.mxu0 0.0
        %v3194 = vand.u32 %v2963, 4294901760
        %v3195 = vsub.f32 %v2963, %v3194
        %v3196 = vand.u32 %v3195, 4294901760
        %v3197 = vsub.f32 %v3195, %v3196
        %v3198 = vand.u32 %v3197, 4294901760
        %3199 = vmatpush1.msra.mxu0 %v3198
        %3200 = vmatprep.subr.mxu0 0.0
        %3201 = vmatpush2.msra.mxu0 0.0
        %3202 = vmatprep.subr.mxu0 0.0
        %3203 = vmatpush2.msra.mxu0 0.0
        %3204 = vmatprep.subr.mxu0 0.0
        %3205 = vmatpush2.msra.mxu0 0.0
        %3206 = vmatprep.subr.mxu0 0.0
        %3207 = vmatpush2.msra.mxu0 0.0
        %3208 = vmatprep.subr.mxu0 0.0
        %3209 = vmatpush2.msra.mxu0 0.0
        %3210 = vmatprep.subr.mxu0 0.0
        %3211 = vmatpush2.msra.mxu0 0.0
        %3212 = vmatprep.subr.mxu0 0.0
        %3213 = vmatpush2.msra.mxu0 0.0
        %3214 = vmatprep.subr.mxu0 0.0
        %3215 = vmatpush2.msra.mxu0 0.0
        %3216 = vmatprep.subr.mxu0 0.0
        %3217 = vmatpush2.msra.mxu0 0.0
        %3218 = vmatprep.subr.mxu0 0.0
        %3219 = vmatpush2.msra.mxu0 0.0
        %3220 = vmatprep.subr.mxu0 0.0
        %3221 = vmatpush2.msra.mxu0 0.0
        %3222 = vmatprep.subr.mxu0 0.0
        %3223 = vmatpush2.msra.mxu0 0.0
        %3224 = vmatprep.subr.mxu0 0.0
        %3225 = vmatpush2.msra.mxu0 0.0
        %3226 = vmatprep.subr.mxu0 0.0
        %3227 = vmatpush2.msra.mxu0 0.0
        %3228 = vmatprep.subr.mxu0 0.0
        %3229 = vmatpush2.msra.mxu0 0.0
        %3230 = vmatprep.subr.mxu0 0.0
        %3231 = vmatpush2.msra.mxu0 0.0
        %3232 = vmatprep.mubr.f32.mxu0 0.0
        %v3233 = vand.u32 %v2982, 4294901760
        %3234 = vmatmul.mubr.f32.gmra.mxu0 %v3233
        %v3235 = vpop.f32.mrf.mxu0
        %v3236 = vadd.f32 %v3075, %v3235
        %v3237 = vpop.f32.mrf.mxu0
        %3238 = vmatprep.mubr.f32.mxu0 0.0
        %v3239 = vand.u32 %v2984, 4294901760
        %3240 = vmatmul.mubr.f32.gmra.mxu0 %v3239
        %v3241 = vpop.f32.mrf.mxu0
        %v3242 = vadd.f32 %v3085, %v3241
        %v3243 = vpop.f32.mrf.mxu0
        %3244 = vdwg.mxu0
        %3245 = vmatprep.subr.mxu0 0.0
        %v3246 = vand.u32 %v2978, 4294901760
        %v3247 = vsub.f32 %v2978, %v3246
        %3248 = vmatpush1.msra.mxu0 %v3247
        %3249 = vmatprep.subr.mxu0 0.0
        %v3250 = vand.u32 %v2977, 4294901760
        %v3251 = vsub.f32 %v2977, %v3250
        %3252 = vmatpush1.msra.mxu0 %v3251
        %3253 = vmatprep.subr.mxu0 0.0
        %v3254 = vand.u32 %v2976, 4294901760
        %v3255 = vsub.f32 %v2976, %v3254
        %3256 = vmatpush1.msra.mxu0 %v3255
        %3257 = vmatprep.subr.mxu0 0.0
        %v3258 = vand.u32 %v2975, 4294901760
        %v3259 = vsub.f32 %v2975, %v3258
        %3260 = vmatpush1.msra.mxu0 %v3259
        %3261 = vmatprep.subr.mxu0 0.0
        %v3262 = vand.u32 %v2974, 4294901760
        %v3263 = vsub.f32 %v2974, %v3262
        %3264 = vmatpush1.msra.mxu0 %v3263
        %3265 = vmatprep.subr.mxu0 0.0
        %v3266 = vand.u32 %v2973, 4294901760
        %v3267 = vsub.f32 %v2973, %v3266
        %3268 = vmatpush1.msra.mxu0 %v3267
        %3269 = vmatprep.subr.mxu0 0.0
        %v3270 = vand.u32 %v2972, 4294901760
        %v3271 = vsub.f32 %v2972, %v3270
        %3272 = vmatpush1.msra.mxu0 %v3271
        %3273 = vmatprep.subr.mxu0 0.0
        %v3274 = vand.u32 %v2971, 4294901760
        %v3275 = vsub.f32 %v2971, %v3274
        %3276 = vmatpush1.msra.mxu0 %v3275
        %3277 = vmatprep.subr.mxu0 0.0
        %v3278 = vand.u32 %v2970, 4294901760
        %v3279 = vsub.f32 %v2970, %v3278
        %3280 = vmatpush1.msra.mxu0 %v3279
        %3281 = vmatprep.subr.mxu0 0.0
        %v3282 = vand.u32 %v2969, 4294901760
        %v3283 = vsub.f32 %v2969, %v3282
        %3284 = vmatpush1.msra.mxu0 %v3283
        %3285 = vmatprep.subr.mxu0 0.0
        %v3286 = vand.u32 %v2968, 4294901760
        %v3287 = vsub.f32 %v2968, %v3286
        %3288 = vmatpush1.msra.mxu0 %v3287
        %3289 = vmatprep.subr.mxu0 0.0
        %v3290 = vand.u32 %v2967, 4294901760
        %v3291 = vsub.f32 %v2967, %v3290
        %3292 = vmatpush1.msra.mxu0 %v3291
        %3293 = vmatprep.subr.mxu0 0.0
        %v3294 = vand.u32 %v2966, 4294901760
        %v3295 = vsub.f32 %v2966, %v3294
        %3296 = vmatpush1.msra.mxu0 %v3295
        %3297 = vmatprep.subr.mxu0 0.0
        %v3298 = vand.u32 %v2965, 4294901760
        %v3299 = vsub.f32 %v2965, %v3298
        %3300 = vmatpush1.msra.mxu0 %v3299
        %3301 = vmatprep.subr.mxu0 0.0
        %v3302 = vand.u32 %v2964, 4294901760
        %v3303 = vsub.f32 %v2964, %v3302
        %3304 = vmatpush1.msra.mxu0 %v3303
        %3305 = vmatprep.subr.mxu0 0.0
        %v3306 = vand.u32 %v2963, 4294901760
        %v3307 = vsub.f32 %v2963, %v3306
        %3308 = vmatpush1.msra.mxu0 %v3307
        %3309 = vmatprep.subr.mxu0 0.0
        %3310 = vmatpush2.msra.mxu0 0.0
        %3311 = vmatprep.subr.mxu0 0.0
        %3312 = vmatpush2.msra.mxu0 0.0
        %3313 = vmatprep.subr.mxu0 0.0
        %3314 = vmatpush2.msra.mxu0 0.0
        %3315 = vmatprep.subr.mxu0 0.0
        %3316 = vmatpush2.msra.mxu0 0.0
        %3317 = vmatprep.subr.mxu0 0.0
        %3318 = vmatpush2.msra.mxu0 0.0
        %3319 = vmatprep.subr.mxu0 0.0
        %3320 = vmatpush2.msra.mxu0 0.0
        %3321 = vmatprep.subr.mxu0 0.0
        %3322 = vmatpush2.msra.mxu0 0.0
        %3323 = vmatprep.subr.mxu0 0.0
        %3324 = vmatpush2.msra.mxu0 0.0
        %3325 = vmatprep.subr.mxu0 0.0
        %3326 = vmatpush2.msra.mxu0 0.0
        %3327 = vmatprep.subr.mxu0 0.0
        %3328 = vmatpush2.msra.mxu0 0.0
        %3329 = vmatprep.subr.mxu0 0.0
        %3330 = vmatpush2.msra.mxu0 0.0
        %3331 = vmatprep.subr.mxu0 0.0
        %3332 = vmatpush2.msra.mxu0 0.0
        %3333 = vmatprep.subr.mxu0 0.0
        %3334 = vmatpush2.msra.mxu0 0.0
        %3335 = vmatprep.subr.mxu0 0.0
        %3336 = vmatpush2.msra.mxu0 0.0
        %3337 = vmatprep.subr.mxu0 0.0
        %3338 = vmatpush2.msra.mxu0 0.0
        %3339 = vmatprep.subr.mxu0 0.0
        %3340 = vmatpush2.msra.mxu0 0.0
        %3341 = vmatprep.mubr.f32.mxu0 0.0
        %v3342 = vand.u32 %v2982, 4294901760
        %v3343 = vsub.f32 %v2982, %v3342
        %3344 = vmatmul.mubr.f32.gmra.mxu0 %v3343
        %v3345 = vpop.f32.mrf.mxu0
        %v3346 = vadd.f32 %v3236, %v3345
        %v3347 = vpop.f32.mrf.mxu0
        %3348 = vmatprep.mubr.f32.mxu0 0.0
        %v3349 = vand.u32 %v2984, 4294901760
        %v3350 = vsub.f32 %v2984, %v3349
        %3351 = vmatmul.mubr.f32.gmra.mxu0 %v3350
        %v3352 = vpop.f32.mrf.mxu0
        %v3353 = vadd.f32 %v3242, %v3352
        %v3354 = vpop.f32.mrf.mxu0
        %3355 = vdwg.mxu0
        %3356 = vmatprep.subr.mxu0 0.0
        %v3357 = vand.u32 %v2978, 4294901760
        %3358 = vmatpush1.msra.mxu0 %v3357
        %3359 = vmatprep.subr.mxu0 0.0
        %v3360 = vand.u32 %v2977, 4294901760
        %3361 = vmatpush1.msra.mxu0 %v3360
        %3362 = vmatprep.subr.mxu0 0.0
        %v3363 = vand.u32 %v2976, 4294901760
        %3364 = vmatpush1.msra.mxu0 %v3363
        %3365 = vmatprep.subr.mxu0 0.0
        %v3366 = vand.u32 %v2975, 4294901760
        %3367 = vmatpush1.msra.mxu0 %v3366
        %3368 = vmatprep.subr.mxu0 0.0
        %v3369 = vand.u32 %v2974, 4294901760
        %3370 = vmatpush1.msra.mxu0 %v3369
        %3371 = vmatprep.subr.mxu0 0.0
        %v3372 = vand.u32 %v2973, 4294901760
        %3373 = vmatpush1.msra.mxu0 %v3372
        %3374 = vmatprep.subr.mxu0 0.0
        %v3375 = vand.u32 %v2972, 4294901760
        %3376 = vmatpush1.msra.mxu0 %v3375
        %3377 = vmatprep.subr.mxu0 0.0
        %v3378 = vand.u32 %v2971, 4294901760
        %3379 = vmatpush1.msra.mxu0 %v3378
        %3380 = vmatprep.subr.mxu0 0.0
        %v3381 = vand.u32 %v2970, 4294901760
        %3382 = vmatpush1.msra.mxu0 %v3381
        %3383 = vmatprep.subr.mxu0 0.0
        %v3384 = vand.u32 %v2969, 4294901760
        %3385 = vmatpush1.msra.mxu0 %v3384
        %3386 = vmatprep.subr.mxu0 0.0
        %v3387 = vand.u32 %v2968, 4294901760
        %3388 = vmatpush1.msra.mxu0 %v3387
        %3389 = vmatprep.subr.mxu0 0.0
        %v3390 = vand.u32 %v2967, 4294901760
        %3391 = vmatpush1.msra.mxu0 %v3390
        %3392 = vmatprep.subr.mxu0 0.0
        %v3393 = vand.u32 %v2966, 4294901760
        %3394 = vmatpush1.msra.mxu0 %v3393
        %3395 = vmatprep.subr.mxu0 0.0
        %v3396 = vand.u32 %v2965, 4294901760
        %3397 = vmatpush1.msra.mxu0 %v3396
        %3398 = vmatprep.subr.mxu0 0.0
        %v3399 = vand.u32 %v2964, 4294901760
        %3400 = vmatpush1.msra.mxu0 %v3399
        %3401 = vmatprep.subr.mxu0 0.0
        %v3402 = vand.u32 %v2963, 4294901760
        %3403 = vmatpush1.msra.mxu0 %v3402
        %3404 = vmatprep.subr.mxu0 0.0
        %3405 = vmatpush2.msra.mxu0 0.0
        %3406 = vmatprep.subr.mxu0 0.0
        %3407 = vmatpush2.msra.mxu0 0.0
        %3408 = vmatprep.subr.mxu0 0.0
        %3409 = vmatpush2.msra.mxu0 0.0
        %3410 = vmatprep.subr.mxu0 0.0
        %3411 = vmatpush2.msra.mxu0 0.0
        %3412 = vmatprep.subr.mxu0 0.0
        %3413 = vmatpush2.msra.mxu0 0.0
        %3414 = vmatprep.subr.mxu0 0.0
        %3415 = vmatpush2.msra.mxu0 0.0
        %3416 = vmatprep.subr.mxu0 0.0
        %3417 = vmatpush2.msra.mxu0 0.0
        %3418 = vmatprep.subr.mxu0 0.0
        %3419 = vmatpush2.msra.mxu0 0.0
        %3420 = vmatprep.subr.mxu0 0.0
        %3421 = vmatpush2.msra.mxu0 0.0
        %3422 = vmatprep.subr.mxu0 0.0
        %3423 = vmatpush2.msra.mxu0 0.0
        %3424 = vmatprep.subr.mxu0 0.0
        %3425 = vmatpush2.msra.mxu0 0.0
        %3426 = vmatprep.subr.mxu0 0.0
        %3427 = vmatpush2.msra.mxu0 0.0
        %3428 = vmatprep.subr.mxu0 0.0
        %3429 = vmatpush2.msra.mxu0 0.0
        %3430 = vmatprep.subr.mxu0 0.0
        %3431 = vmatpush2.msra.mxu0 0.0
        %3432 = vmatprep.subr.mxu0 0.0
        %3433 = vmatpush2.msra.mxu0 0.0
        %3434 = vmatprep.subr.mxu0 0.0
        %3435 = vmatpush2.msra.mxu0 0.0
        %3436 = vmatprep.mubr.f32.mxu0 0.0
        %v3437 = vand.u32 %v2982, 4294901760
        %v3438 = vsub.f32 %v2982, %v3437
        %v3439 = vand.u32 %v3438, 4294901760
        %3440 = vmatmul.mubr.f32.gmra.mxu0 %v3439
        %v3441 = vpop.f32.mrf.mxu0
        %v3442 = vadd.f32 %v3346, %v3441
        %v3443 = vpop.f32.mrf.mxu0
        %3444 = vmatprep.mubr.f32.mxu0 0.0
        %v3445 = vand.u32 %v2984, 4294901760
        %v3446 = vsub.f32 %v2984, %v3445
        %v3447 = vand.u32 %v3446, 4294901760
        %3448 = vmatmul.mubr.f32.gmra.mxu0 %v3447
        %v3449 = vpop.f32.mrf.mxu0
        %v3450 = vadd.f32 %v3353, %v3449
        %v3451 = vpop.f32.mrf.mxu0
        %3452 = vdwg.mxu0
        %3453 = vmatprep.subr.mxu0 0.0
        %v3454 = vand.u32 %v2978, 4294901760
        %v3455 = vsub.f32 %v2978, %v3454
        %v3456 = vand.u32 %v3455, 4294901760
        %3457 = vmatpush1.msra.mxu0 %v3456
        %3458 = vmatprep.subr.mxu0 0.0
        %v3459 = vand.u32 %v2977, 4294901760
        %v3460 = vsub.f32 %v2977, %v3459
        %v3461 = vand.u32 %v3460, 4294901760
        %3462 = vmatpush1.msra.mxu0 %v3461
        %3463 = vmatprep.subr.mxu0 0.0
        %v3464 = vand.u32 %v2976, 4294901760
        %v3465 = vsub.f32 %v2976, %v3464
        %v3466 = vand.u32 %v3465, 4294901760
        %3467 = vmatpush1.msra.mxu0 %v3466
        %3468 = vmatprep.subr.mxu0 0.0
        %v3469 = vand.u32 %v2975, 4294901760
        %v3470 = vsub.f32 %v2975, %v3469
        %v3471 = vand.u32 %v3470, 4294901760
        %3472 = vmatpush1.msra.mxu0 %v3471
        %3473 = vmatprep.subr.mxu0 0.0
        %v3474 = vand.u32 %v2974, 4294901760
        %v3475 = vsub.f32 %v2974, %v3474
        %v3476 = vand.u32 %v3475, 4294901760
        %3477 = vmatpush1.msra.mxu0 %v3476
        %3478 = vmatprep.subr.mxu0 0.0
        %v3479 = vand.u32 %v2973, 4294901760
        %v3480 = vsub.f32 %v2973, %v3479
        %v3481 = vand.u32 %v3480, 4294901760
        %3482 = vmatpush1.msra.mxu0 %v3481
        %3483 = vmatprep.subr.mxu0 0.0
        %v3484 = vand.u32 %v2972, 4294901760
        %v3485 = vsub.f32 %v2972, %v3484
        %v3486 = vand.u32 %v3485, 4294901760
        %3487 = vmatpush1.msra.mxu0 %v3486
        %3488 = vmatprep.subr.mxu0 0.0
        %v3489 = vand.u32 %v2971, 4294901760
        %v3490 = vsub.f32 %v2971, %v3489
        %v3491 = vand.u32 %v3490, 4294901760
        %3492 = vmatpush1.msra.mxu0 %v3491
        %3493 = vmatprep.subr.mxu0 0.0
        %v3494 = vand.u32 %v2970, 4294901760
        %v3495 = vsub.f32 %v2970, %v3494
        %v3496 = vand.u32 %v3495, 4294901760
        %3497 = vmatpush1.msra.mxu0 %v3496
        %3498 = vmatprep.subr.mxu0 0.0
        %v3499 = vand.u32 %v2969, 4294901760
        %v3500 = vsub.f32 %v2969, %v3499
        %v3501 = vand.u32 %v3500, 4294901760
        %3502 = vmatpush1.msra.mxu0 %v3501
        %3503 = vmatprep.subr.mxu0 0.0
        %v3504 = vand.u32 %v2968, 4294901760
        %v3505 = vsub.f32 %v2968, %v3504
        %v3506 = vand.u32 %v3505, 4294901760
        %3507 = vmatpush1.msra.mxu0 %v3506
        %3508 = vmatprep.subr.mxu0 0.0
        %v3509 = vand.u32 %v2967, 4294901760
        %v3510 = vsub.f32 %v2967, %v3509
        %v3511 = vand.u32 %v3510, 4294901760
        %3512 = vmatpush1.msra.mxu0 %v3511
        %3513 = vmatprep.subr.mxu0 0.0
        %v3514 = vand.u32 %v2966, 4294901760
        %v3515 = vsub.f32 %v2966, %v3514
        %v3516 = vand.u32 %v3515, 4294901760
        %3517 = vmatpush1.msra.mxu0 %v3516
        %3518 = vmatprep.subr.mxu0 0.0
        %v3519 = vand.u32 %v2965, 4294901760
        %v3520 = vsub.f32 %v2965, %v3519
        %v3521 = vand.u32 %v3520, 4294901760
        %3522 = vmatpush1.msra.mxu0 %v3521
        %3523 = vmatprep.subr.mxu0 0.0
        %v3524 = vand.u32 %v2964, 4294901760
        %v3525 = vsub.f32 %v2964, %v3524
        %v3526 = vand.u32 %v3525, 4294901760
        %3527 = vmatpush1.msra.mxu0 %v3526
        %3528 = vmatprep.subr.mxu0 0.0
        %v3529 = vand.u32 %v2963, 4294901760
        %v3530 = vsub.f32 %v2963, %v3529
        %v3531 = vand.u32 %v3530, 4294901760
        %3532 = vmatpush1.msra.mxu0 %v3531
        %3533 = vmatprep.subr.mxu0 0.0
        %3534 = vmatpush2.msra.mxu0 0.0
        %3535 = vmatprep.subr.mxu0 0.0
        %3536 = vmatpush2.msra.mxu0 0.0
        %3537 = vmatprep.subr.mxu0 0.0
        %3538 = vmatpush2.msra.mxu0 0.0
        %3539 = vmatprep.subr.mxu0 0.0
        %3540 = vmatpush2.msra.mxu0 0.0
        %3541 = vmatprep.subr.mxu0 0.0
        %3542 = vmatpush2.msra.mxu0 0.0
        %3543 = vmatprep.subr.mxu0 0.0
        %3544 = vmatpush2.msra.mxu0 0.0
        %3545 = vmatprep.subr.mxu0 0.0
        %3546 = vmatpush2.msra.mxu0 0.0
        %3547 = vmatprep.subr.mxu0 0.0
        %3548 = vmatpush2.msra.mxu0 0.0
        %3549 = vmatprep.subr.mxu0 0.0
        %3550 = vmatpush2.msra.mxu0 0.0
        %3551 = vmatprep.subr.mxu0 0.0
        %3552 = vmatpush2.msra.mxu0 0.0
        %3553 = vmatprep.subr.mxu0 0.0
        %3554 = vmatpush2.msra.mxu0 0.0
        %3555 = vmatprep.subr.mxu0 0.0
        %3556 = vmatpush2.msra.mxu0 0.0
        %3557 = vmatprep.subr.mxu0 0.0
        %3558 = vmatpush2.msra.mxu0 0.0
        %3559 = vmatprep.subr.mxu0 0.0
        %3560 = vmatpush2.msra.mxu0 0.0
        %3561 = vmatprep.subr.mxu0 0.0
        %3562 = vmatpush2.msra.mxu0 0.0
        %3563 = vmatprep.subr.mxu0 0.0
        %3564 = vmatpush2.msra.mxu0 0.0
        %3565 = vmatprep.mubr.f32.mxu0 0.0
        %v3566 = vand.u32 %v2982, 4294901760
        %3567 = vmatmul.mubr.f32.gmra.mxu0 %v3566
        %v3568 = vpop.f32.mrf.mxu0
        %v3569 = vadd.f32 %v3442, %v3568
        %v3570 = vpop.f32.mrf.mxu0
        %3571 = vmatprep.mubr.f32.mxu0 0.0
        %v3572 = vand.u32 %v2984, 4294901760
        %3573 = vmatmul.mubr.f32.gmra.mxu0 %v3572
        %v3574 = vpop.f32.mrf.mxu0
        %v3575 = vadd.f32 %v3450, %v3574
        %v3576 = vpop.f32.mrf.mxu0
        %3577 = vdwg.mxu0
        %3578 = vmatprep.subr.mxu0 0.0
        %v3579 = vand.u32 %v2978, 4294901760
        %3580 = vmatpush1.msra.mxu0 %v3579
        %3581 = vmatprep.subr.mxu0 0.0
        %v3582 = vand.u32 %v2977, 4294901760
        %3583 = vmatpush1.msra.mxu0 %v3582
        %3584 = vmatprep.subr.mxu0 0.0
        %v3585 = vand.u32 %v2976, 4294901760
        %3586 = vmatpush1.msra.mxu0 %v3585
        %3587 = vmatprep.subr.mxu0 0.0
        %v3588 = vand.u32 %v2975, 4294901760
        %3589 = vmatpush1.msra.mxu0 %v3588
        %3590 = vmatprep.subr.mxu0 0.0
        %v3591 = vand.u32 %v2974, 4294901760
        %3592 = vmatpush1.msra.mxu0 %v3591
        %3593 = vmatprep.subr.mxu0 0.0
        %v3594 = vand.u32 %v2973, 4294901760
        %3595 = vmatpush1.msra.mxu0 %v3594
        %3596 = vmatprep.subr.mxu0 0.0
        %v3597 = vand.u32 %v2972, 4294901760
        %3598 = vmatpush1.msra.mxu0 %v3597
        %3599 = vmatprep.subr.mxu0 0.0
        %v3600 = vand.u32 %v2971, 4294901760
        %3601 = vmatpush1.msra.mxu0 %v3600
        %3602 = vmatprep.subr.mxu0 0.0
        %v3603 = vand.u32 %v2970, 4294901760
        %3604 = vmatpush1.msra.mxu0 %v3603
        %3605 = vmatprep.subr.mxu0 0.0
        %v3606 = vand.u32 %v2969, 4294901760
        %3607 = vmatpush1.msra.mxu0 %v3606
        %3608 = vmatprep.subr.mxu0 0.0
        %v3609 = vand.u32 %v2968, 4294901760
        %3610 = vmatpush1.msra.mxu0 %v3609
        %3611 = vmatprep.subr.mxu0 0.0
        %v3612 = vand.u32 %v2967, 4294901760
        %3613 = vmatpush1.msra.mxu0 %v3612
        %3614 = vmatprep.subr.mxu0 0.0
        %v3615 = vand.u32 %v2966, 4294901760
        %3616 = vmatpush1.msra.mxu0 %v3615
        %3617 = vmatprep.subr.mxu0 0.0
        %v3618 = vand.u32 %v2965, 4294901760
        %3619 = vmatpush1.msra.mxu0 %v3618
        %3620 = vmatprep.subr.mxu0 0.0
        %v3621 = vand.u32 %v2964, 4294901760
        %3622 = vmatpush1.msra.mxu0 %v3621
        %3623 = vmatprep.subr.mxu0 0.0
        %v3624 = vand.u32 %v2963, 4294901760
        %3625 = vmatpush1.msra.mxu0 %v3624
        %3626 = vmatprep.subr.mxu0 0.0
        %3627 = vmatpush2.msra.mxu0 0.0
        %3628 = vmatprep.subr.mxu0 0.0
        %3629 = vmatpush2.msra.mxu0 0.0
        %3630 = vmatprep.subr.mxu0 0.0
        %3631 = vmatpush2.msra.mxu0 0.0
        %3632 = vmatprep.subr.mxu0 0.0
        %3633 = vmatpush2.msra.mxu0 0.0
        %3634 = vmatprep.subr.mxu0 0.0
        %3635 = vmatpush2.msra.mxu0 0.0
        %3636 = vmatprep.subr.mxu0 0.0
        %3637 = vmatpush2.msra.mxu0 0.0
        %3638 = vmatprep.subr.mxu0 0.0
        %3639 = vmatpush2.msra.mxu0 0.0
        %3640 = vmatprep.subr.mxu0 0.0
        %3641 = vmatpush2.msra.mxu0 0.0
        %3642 = vmatprep.subr.mxu0 0.0
        %3643 = vmatpush2.msra.mxu0 0.0
        %3644 = vmatprep.subr.mxu0 0.0
        %3645 = vmatpush2.msra.mxu0 0.0
        %3646 = vmatprep.subr.mxu0 0.0
        %3647 = vmatpush2.msra.mxu0 0.0
        %3648 = vmatprep.subr.mxu0 0.0
        %3649 = vmatpush2.msra.mxu0 0.0
        %3650 = vmatprep.subr.mxu0 0.0
        %3651 = vmatpush2.msra.mxu0 0.0
        %3652 = vmatprep.subr.mxu0 0.0
        %3653 = vmatpush2.msra.mxu0 0.0
        %3654 = vmatprep.subr.mxu0 0.0
        %3655 = vmatpush2.msra.mxu0 0.0
        %3656 = vmatprep.subr.mxu0 0.0
        %3657 = vmatpush2.msra.mxu0 0.0
        %3658 = vmatprep.mubr.f32.mxu0 0.0
        %v3659 = vand.u32 %v2982, 4294901760
        %3660 = vmatmul.mubr.f32.gmra.mxu0 %v3659
        %v3661 = vpop.f32.mrf.mxu0
        %v3662 = vadd.f32 %v3569, %v3661
        %v3663 = vpop.f32.mrf.mxu0
        %3664 = vmatprep.mubr.f32.mxu0 0.0
        %v3665 = vand.u32 %v2984, 4294901760
        %3666 = vmatmul.mubr.f32.gmra.mxu0 %v3665
        %v3667 = vpop.f32.mrf.mxu0
        %v3668 = vadd.f32 %v3575, %v3667
        %v3669 = vpop.f32.mrf.mxu0
        %3670 = vdwg.mxu0
        %v3671 = vadd.f32 %v2960, %v3662
        %v3672 = vadd.f32 %v2961, %v3668
        %s3673 = scalar_lea.vmem %s1, 640
        %v3674 = vld [vmem:[%s3673] sm:$0xff]
        %v3675 = vld [vmem:[%s3673 + $0x8] sm:$0xff]
        %v3676 = vld [vmem:[%s3673 + $0x10] sm:$0xff]
        %v3677 = vld [vmem:[%s3673 + $0x18] sm:$0xff]
        %v3678 = vld [vmem:[%s3673 + $0x20] sm:$0xff]
        %v3679 = vld [vmem:[%s3673 + $0x28] sm:$0xff]
        %v3680 = vld [vmem:[%s3673 + $0x30] sm:$0xff]
        %v3681 = vld [vmem:[%s3673 + $0x38] sm:$0xff]
        %v3682 = vld [vmem:[%s3673 + $0x40] sm:$0xff]
        %v3683 = vld [vmem:[%s3673 + $0x48] sm:$0xff]
        %v3684 = vld [vmem:[%s3673 + $0x50] sm:$0xff]
        %v3685 = vld [vmem:[%s3673 + $0x58] sm:$0xff]
        %v3686 = vld [vmem:[%s3673 + $0x60] sm:$0xff]
        %v3687 = vld [vmem:[%s3673 + $0x68] sm:$0xff]
        %v3688 = vld [vmem:[%s3673 + $0x70] sm:$0xff]
        %v3689 = vld [vmem:[%s3673 + $0x78] sm:$0xff]
        %vm3690 = vcmask 1042432
        %v3691 = vrot.slane %v125, 5
        %v3692 = vrot.slane %v126, 5
        %v3693 = vsel %vm3690, %v3691, %v3692
        %v3694 = vrot.slane %v127, 5
        %v3695 = vsel %vm3690, %v3692, %v3694
        %3698 = vmatprep.subr.mxu0 0.0
        %v3699 = vand.u32 %v3689, 4294901760
        %3700 = vmatpush1.msra.mxu0 %v3699
        %3701 = vmatprep.subr.mxu0 0.0
        %v3702 = vand.u32 %v3688, 4294901760
        %3703 = vmatpush1.msra.mxu0 %v3702
        %3704 = vmatprep.subr.mxu0 0.0
        %v3705 = vand.u32 %v3687, 4294901760
        %3706 = vmatpush1.msra.mxu0 %v3705
        %3707 = vmatprep.subr.mxu0 0.0
        %v3708 = vand.u32 %v3686, 4294901760
        %3709 = vmatpush1.msra.mxu0 %v3708
        %3710 = vmatprep.subr.mxu0 0.0
        %v3711 = vand.u32 %v3685, 4294901760
        %3712 = vmatpush1.msra.mxu0 %v3711
        %3713 = vmatprep.subr.mxu0 0.0
        %v3714 = vand.u32 %v3684, 4294901760
        %3715 = vmatpush1.msra.mxu0 %v3714
        %3716 = vmatprep.subr.mxu0 0.0
        %v3717 = vand.u32 %v3683, 4294901760
        %3718 = vmatpush1.msra.mxu0 %v3717
        %3719 = vmatprep.subr.mxu0 0.0
        %v3720 = vand.u32 %v3682, 4294901760
        %3721 = vmatpush1.msra.mxu0 %v3720
        %3722 = vmatprep.subr.mxu0 0.0
        %v3723 = vand.u32 %v3681, 4294901760
        %3724 = vmatpush1.msra.mxu0 %v3723
        %3725 = vmatprep.subr.mxu0 0.0
        %v3726 = vand.u32 %v3680, 4294901760
        %3727 = vmatpush1.msra.mxu0 %v3726
        %3728 = vmatprep.subr.mxu0 0.0
        %v3729 = vand.u32 %v3679, 4294901760
        %3730 = vmatpush1.msra.mxu0 %v3729
        %3731 = vmatprep.subr.mxu0 0.0
        %v3732 = vand.u32 %v3678, 4294901760
        %3733 = vmatpush1.msra.mxu0 %v3732
        %3734 = vmatprep.subr.mxu0 0.0
        %v3735 = vand.u32 %v3677, 4294901760
        %3736 = vmatpush1.msra.mxu0 %v3735
        %3737 = vmatprep.subr.mxu0 0.0
        %v3738 = vand.u32 %v3676, 4294901760
        %3739 = vmatpush1.msra.mxu0 %v3738
        %3740 = vmatprep.subr.mxu0 0.0
        %v3741 = vand.u32 %v3675, 4294901760
        %3742 = vmatpush1.msra.mxu0 %v3741
        %3743 = vmatprep.subr.mxu0 0.0
        %v3744 = vand.u32 %v3674, 4294901760
        %3745 = vmatpush1.msra.mxu0 %v3744
        %3746 = vmatprep.subr.mxu0 0.0
        %3747 = vmatpush2.msra.mxu0 0.0
        %3748 = vmatprep.subr.mxu0 0.0
        %3749 = vmatpush2.msra.mxu0 0.0
        %3750 = vmatprep.subr.mxu0 0.0
        %3751 = vmatpush2.msra.mxu0 0.0
        %3752 = vmatprep.subr.mxu0 0.0
        %3753 = vmatpush2.msra.mxu0 0.0
        %3754 = vmatprep.subr.mxu0 0.0
        %3755 = vmatpush2.msra.mxu0 0.0
        %3756 = vmatprep.subr.mxu0 0.0
        %3757 = vmatpush2.msra.mxu0 0.0
        %3758 = vmatprep.subr.mxu0 0.0
        %3759 = vmatpush2.msra.mxu0 0.0
        %3760 = vmatprep.subr.mxu0 0.0
        %3761 = vmatpush2.msra.mxu0 0.0
        %3762 = vmatprep.subr.mxu0 0.0
        %3763 = vmatpush2.msra.mxu0 0.0
        %3764 = vmatprep.subr.mxu0 0.0
        %3765 = vmatpush2.msra.mxu0 0.0
        %3766 = vmatprep.subr.mxu0 0.0
        %3767 = vmatpush2.msra.mxu0 0.0
        %3768 = vmatprep.subr.mxu0 0.0
        %3769 = vmatpush2.msra.mxu0 0.0
        %3770 = vmatprep.subr.mxu0 0.0
        %3771 = vmatpush2.msra.mxu0 0.0
        %3772 = vmatprep.subr.mxu0 0.0
        %3773 = vmatpush2.msra.mxu0 0.0
        %3774 = vmatprep.subr.mxu0 0.0
        %3775 = vmatpush2.msra.mxu0 0.0
        %3776 = vmatprep.subr.mxu0 0.0
        %3777 = vmatpush2.msra.mxu0 0.0
        %3778 = vmatprep.mubr.f32.mxu0 0.0
        %v3779 = vand.u32 %v3693, 4294901760
        %v3780 = vsub.f32 %v3693, %v3779
        %v3781 = vand.u32 %v3780, 4294901760
        %v3782 = vsub.f32 %v3780, %v3781
        %v3783 = vand.u32 %v3782, 4294901760
        %3784 = vmatmul.mubr.f32.gmra.mxu0 %v3783
        %v3785 = vpop.f32.mrf.mxu0
        %v3786 = vadd.f32 0.0, %v3785
        %v3787 = vpop.f32.mrf.mxu0
        %3788 = vmatprep.mubr.f32.mxu0 0.0
        %v3789 = vand.u32 %v3695, 4294901760
        %v3790 = vsub.f32 %v3695, %v3789
        %v3791 = vand.u32 %v3790, 4294901760
        %v3792 = vsub.f32 %v3790, %v3791
        %v3793 = vand.u32 %v3792, 4294901760
        %3794 = vmatmul.mubr.f32.gmra.mxu0 %v3793
        %v3795 = vpop.f32.mrf.mxu0
        %v3796 = vadd.f32 0.0, %v3795
        %v3797 = vpop.f32.mrf.mxu0
        %3798 = vdwg.mxu0
        %3799 = vmatprep.subr.mxu0 0.0
        %v3800 = vand.u32 %v3689, 4294901760
        %v3801 = vsub.f32 %v3689, %v3800
        %v3802 = vand.u32 %v3801, 4294901760
        %v3803 = vsub.f32 %v3801, %v3802
        %v3804 = vand.u32 %v3803, 4294901760
        %3805 = vmatpush1.msra.mxu0 %v3804
        %3806 = vmatprep.subr.mxu0 0.0
        %v3807 = vand.u32 %v3688, 4294901760
        %v3808 = vsub.f32 %v3688, %v3807
        %v3809 = vand.u32 %v3808, 4294901760
        %v3810 = vsub.f32 %v3808, %v3809
        %v3811 = vand.u32 %v3810, 4294901760
        %3812 = vmatpush1.msra.mxu0 %v3811
        %3813 = vmatprep.subr.mxu0 0.0
        %v3814 = vand.u32 %v3687, 4294901760
        %v3815 = vsub.f32 %v3687, %v3814
        %v3816 = vand.u32 %v3815, 4294901760
        %v3817 = vsub.f32 %v3815, %v3816
        %v3818 = vand.u32 %v3817, 4294901760
        %3819 = vmatpush1.msra.mxu0 %v3818
        %3820 = vmatprep.subr.mxu0 0.0
        %v3821 = vand.u32 %v3686, 4294901760
        %v3822 = vsub.f32 %v3686, %v3821
        %v3823 = vand.u32 %v3822, 4294901760
        %v3824 = vsub.f32 %v3822, %v3823
        %v3825 = vand.u32 %v3824, 4294901760
        %3826 = vmatpush1.msra.mxu0 %v3825
        %3827 = vmatprep.subr.mxu0 0.0
        %v3828 = vand.u32 %v3685, 4294901760
        %v3829 = vsub.f32 %v3685, %v3828
        %v3830 = vand.u32 %v3829, 4294901760
        %v3831 = vsub.f32 %v3829, %v3830
        %v3832 = vand.u32 %v3831, 4294901760
        %3833 = vmatpush1.msra.mxu0 %v3832
        %3834 = vmatprep.subr.mxu0 0.0
        %v3835 = vand.u32 %v3684, 4294901760
        %v3836 = vsub.f32 %v3684, %v3835
        %v3837 = vand.u32 %v3836, 4294901760
        %v3838 = vsub.f32 %v3836, %v3837
        %v3839 = vand.u32 %v3838, 4294901760
        %3840 = vmatpush1.msra.mxu0 %v3839
        %3841 = vmatprep.subr.mxu0 0.0
        %v3842 = vand.u32 %v3683, 4294901760
        %v3843 = vsub.f32 %v3683, %v3842
        %v3844 = vand.u32 %v3843, 4294901760
        %v3845 = vsub.f32 %v3843, %v3844
        %v3846 = vand.u32 %v3845, 4294901760
        %3847 = vmatpush1.msra.mxu0 %v3846
        %3848 = vmatprep.subr.mxu0 0.0
        %v3849 = vand.u32 %v3682, 4294901760
        %v3850 = vsub.f32 %v3682, %v3849
        %v3851 = vand.u32 %v3850, 4294901760
        %v3852 = vsub.f32 %v3850, %v3851
        %v3853 = vand.u32 %v3852, 4294901760
        %3854 = vmatpush1.msra.mxu0 %v3853
        %3855 = vmatprep.subr.mxu0 0.0
        %v3856 = vand.u32 %v3681, 4294901760
        %v3857 = vsub.f32 %v3681, %v3856
        %v3858 = vand.u32 %v3857, 4294901760
        %v3859 = vsub.f32 %v3857, %v3858
        %v3860 = vand.u32 %v3859, 4294901760
        %3861 = vmatpush1.msra.mxu0 %v3860
        %3862 = vmatprep.subr.mxu0 0.0
        %v3863 = vand.u32 %v3680, 4294901760
        %v3864 = vsub.f32 %v3680, %v3863
        %v3865 = vand.u32 %v3864, 4294901760
        %v3866 = vsub.f32 %v3864, %v3865
        %v3867 = vand.u32 %v3866, 4294901760
        %3868 = vmatpush1.msra.mxu0 %v3867
        %3869 = vmatprep.subr.mxu0 0.0
        %v3870 = vand.u32 %v3679, 4294901760
        %v3871 = vsub.f32 %v3679, %v3870
        %v3872 = vand.u32 %v3871, 4294901760
        %v3873 = vsub.f32 %v3871, %v3872
        %v3874 = vand.u32 %v3873, 4294901760
        %3875 = vmatpush1.msra.mxu0 %v3874
        %3876 = vmatprep.subr.mxu0 0.0
        %v3877 = vand.u32 %v3678, 4294901760
        %v3878 = vsub.f32 %v3678, %v3877
        %v3879 = vand.u32 %v3878, 4294901760
        %v3880 = vsub.f32 %v3878, %v3879
        %v3881 = vand.u32 %v3880, 4294901760
        %3882 = vmatpush1.msra.mxu0 %v3881
        %3883 = vmatprep.subr.mxu0 0.0
        %v3884 = vand.u32 %v3677, 4294901760
        %v3885 = vsub.f32 %v3677, %v3884
        %v3886 = vand.u32 %v3885, 4294901760
        %v3887 = vsub.f32 %v3885, %v3886
        %v3888 = vand.u32 %v3887, 4294901760
        %3889 = vmatpush1.msra.mxu0 %v3888
        %3890 = vmatprep.subr.mxu0 0.0
        %v3891 = vand.u32 %v3676, 4294901760
        %v3892 = vsub.f32 %v3676, %v3891
        %v3893 = vand.u32 %v3892, 4294901760
        %v3894 = vsub.f32 %v3892, %v3893
        %v3895 = vand.u32 %v3894, 4294901760
        %3896 = vmatpush1.msra.mxu0 %v3895
        %3897 = vmatprep.subr.mxu0 0.0
        %v3898 = vand.u32 %v3675, 4294901760
        %v3899 = vsub.f32 %v3675, %v3898
        %v3900 = vand.u32 %v3899, 4294901760
        %v3901 = vsub.f32 %v3899, %v3900
        %v3902 = vand.u32 %v3901, 4294901760
        %3903 = vmatpush1.msra.mxu0 %v3902
        %3904 = vmatprep.subr.mxu0 0.0
        %v3905 = vand.u32 %v3674, 4294901760
        %v3906 = vsub.f32 %v3674, %v3905
        %v3907 = vand.u32 %v3906, 4294901760
        %v3908 = vsub.f32 %v3906, %v3907
        %v3909 = vand.u32 %v3908, 4294901760
        %3910 = vmatpush1.msra.mxu0 %v3909
        %3911 = vmatprep.subr.mxu0 0.0
        %3912 = vmatpush2.msra.mxu0 0.0
        %3913 = vmatprep.subr.mxu0 0.0
        %3914 = vmatpush2.msra.mxu0 0.0
        %3915 = vmatprep.subr.mxu0 0.0
        %3916 = vmatpush2.msra.mxu0 0.0
        %3917 = vmatprep.subr.mxu0 0.0
        %3918 = vmatpush2.msra.mxu0 0.0
        %3919 = vmatprep.subr.mxu0 0.0
        %3920 = vmatpush2.msra.mxu0 0.0
        %3921 = vmatprep.subr.mxu0 0.0
        %3922 = vmatpush2.msra.mxu0 0.0
        %3923 = vmatprep.subr.mxu0 0.0
        %3924 = vmatpush2.msra.mxu0 0.0
        %3925 = vmatprep.subr.mxu0 0.0
        %3926 = vmatpush2.msra.mxu0 0.0
        %3927 = vmatprep.subr.mxu0 0.0
        %3928 = vmatpush2.msra.mxu0 0.0
        %3929 = vmatprep.subr.mxu0 0.0
        %3930 = vmatpush2.msra.mxu0 0.0
        %3931 = vmatprep.subr.mxu0 0.0
        %3932 = vmatpush2.msra.mxu0 0.0
        %3933 = vmatprep.subr.mxu0 0.0
        %3934 = vmatpush2.msra.mxu0 0.0
        %3935 = vmatprep.subr.mxu0 0.0
        %3936 = vmatpush2.msra.mxu0 0.0
        %3937 = vmatprep.subr.mxu0 0.0
        %3938 = vmatpush2.msra.mxu0 0.0
        %3939 = vmatprep.subr.mxu0 0.0
        %3940 = vmatpush2.msra.mxu0 0.0
        %3941 = vmatprep.subr.mxu0 0.0
        %3942 = vmatpush2.msra.mxu0 0.0
        %3943 = vmatprep.mubr.f32.mxu0 0.0
        %v3944 = vand.u32 %v3693, 4294901760
        %3945 = vmatmul.mubr.f32.gmra.mxu0 %v3944
        %v3946 = vpop.f32.mrf.mxu0
        %v3947 = vadd.f32 %v3786, %v3946
        %v3948 = vpop.f32.mrf.mxu0
        %3949 = vmatprep.mubr.f32.mxu0 0.0
        %v3950 = vand.u32 %v3695, 4294901760
        %3951 = vmatmul.mubr.f32.gmra.mxu0 %v3950
        %v3952 = vpop.f32.mrf.mxu0
        %v3953 = vadd.f32 %v3796, %v3952
        %v3954 = vpop.f32.mrf.mxu0
        %3955 = vdwg.mxu0
        %3956 = vmatprep.subr.mxu0 0.0
        %v3957 = vand.u32 %v3689, 4294901760
        %v3958 = vsub.f32 %v3689, %v3957
        %3959 = vmatpush1.msra.mxu0 %v3958
        %3960 = vmatprep.subr.mxu0 0.0
        %v3961 = vand.u32 %v3688, 4294901760
        %v3962 = vsub.f32 %v3688, %v3961
        %3963 = vmatpush1.msra.mxu0 %v3962
        %3964 = vmatprep.subr.mxu0 0.0
        %v3965 = vand.u32 %v3687, 4294901760
        %v3966 = vsub.f32 %v3687, %v3965
        %3967 = vmatpush1.msra.mxu0 %v3966
        %3968 = vmatprep.subr.mxu0 0.0
        %v3969 = vand.u32 %v3686, 4294901760
        %v3970 = vsub.f32 %v3686, %v3969
        %3971 = vmatpush1.msra.mxu0 %v3970
        %3972 = vmatprep.subr.mxu0 0.0
        %v3973 = vand.u32 %v3685, 4294901760
        %v3974 = vsub.f32 %v3685, %v3973
        %3975 = vmatpush1.msra.mxu0 %v3974
        %3976 = vmatprep.subr.mxu0 0.0
        %v3977 = vand.u32 %v3684, 4294901760
        %v3978 = vsub.f32 %v3684, %v3977
        %3979 = vmatpush1.msra.mxu0 %v3978
        %3980 = vmatprep.subr.mxu0 0.0
        %v3981 = vand.u32 %v3683, 4294901760
        %v3982 = vsub.f32 %v3683, %v3981
        %3983 = vmatpush1.msra.mxu0 %v3982
        %3984 = vmatprep.subr.mxu0 0.0
        %v3985 = vand.u32 %v3682, 4294901760
        %v3986 = vsub.f32 %v3682, %v3985
        %3987 = vmatpush1.msra.mxu0 %v3986
        %3988 = vmatprep.subr.mxu0 0.0
        %v3989 = vand.u32 %v3681, 4294901760
        %v3990 = vsub.f32 %v3681, %v3989
        %3991 = vmatpush1.msra.mxu0 %v3990
        %3992 = vmatprep.subr.mxu0 0.0
        %v3993 = vand.u32 %v3680, 4294901760
        %v3994 = vsub.f32 %v3680, %v3993
        %3995 = vmatpush1.msra.mxu0 %v3994
        %3996 = vmatprep.subr.mxu0 0.0
        %v3997 = vand.u32 %v3679, 4294901760
        %v3998 = vsub.f32 %v3679, %v3997
        %3999 = vmatpush1.msra.mxu0 %v3998
        %4000 = vmatprep.subr.mxu0 0.0
        %v4001 = vand.u32 %v3678, 4294901760
        %v4002 = vsub.f32 %v3678, %v4001
        %4003 = vmatpush1.msra.mxu0 %v4002
        %4004 = vmatprep.subr.mxu0 0.0
        %v4005 = vand.u32 %v3677, 4294901760
        %v4006 = vsub.f32 %v3677, %v4005
        %4007 = vmatpush1.msra.mxu0 %v4006
        %4008 = vmatprep.subr.mxu0 0.0
        %v4009 = vand.u32 %v3676, 4294901760
        %v4010 = vsub.f32 %v3676, %v4009
        %4011 = vmatpush1.msra.mxu0 %v4010
        %4012 = vmatprep.subr.mxu0 0.0
        %v4013 = vand.u32 %v3675, 4294901760
        %v4014 = vsub.f32 %v3675, %v4013
        %4015 = vmatpush1.msra.mxu0 %v4014
        %4016 = vmatprep.subr.mxu0 0.0
        %v4017 = vand.u32 %v3674, 4294901760
        %v4018 = vsub.f32 %v3674, %v4017
        %4019 = vmatpush1.msra.mxu0 %v4018
        %4020 = vmatprep.subr.mxu0 0.0
        %4021 = vmatpush2.msra.mxu0 0.0
        %4022 = vmatprep.subr.mxu0 0.0
        %4023 = vmatpush2.msra.mxu0 0.0
        %4024 = vmatprep.subr.mxu0 0.0
        %4025 = vmatpush2.msra.mxu0 0.0
        %4026 = vmatprep.subr.mxu0 0.0
        %4027 = vmatpush2.msra.mxu0 0.0
        %4028 = vmatprep.subr.mxu0 0.0
        %4029 = vmatpush2.msra.mxu0 0.0
        %4030 = vmatprep.subr.mxu0 0.0
        %4031 = vmatpush2.msra.mxu0 0.0
        %4032 = vmatprep.subr.mxu0 0.0
        %4033 = vmatpush2.msra.mxu0 0.0
        %4034 = vmatprep.subr.mxu0 0.0
        %4035 = vmatpush2.msra.mxu0 0.0
        %4036 = vmatprep.subr.mxu0 0.0
        %4037 = vmatpush2.msra.mxu0 0.0
        %4038 = vmatprep.subr.mxu0 0.0
        %4039 = vmatpush2.msra.mxu0 0.0
        %4040 = vmatprep.subr.mxu0 0.0
        %4041 = vmatpush2.msra.mxu0 0.0
        %4042 = vmatprep.subr.mxu0 0.0
        %4043 = vmatpush2.msra.mxu0 0.0
        %4044 = vmatprep.subr.mxu0 0.0
        %4045 = vmatpush2.msra.mxu0 0.0
        %4046 = vmatprep.subr.mxu0 0.0
        %4047 = vmatpush2.msra.mxu0 0.0
        %4048 = vmatprep.subr.mxu0 0.0
        %4049 = vmatpush2.msra.mxu0 0.0
        %4050 = vmatprep.subr.mxu0 0.0
        %4051 = vmatpush2.msra.mxu0 0.0
        %4052 = vmatprep.mubr.f32.mxu0 0.0
        %v4053 = vand.u32 %v3693, 4294901760
        %v4054 = vsub.f32 %v3693, %v4053
        %4055 = vmatmul.mubr.f32.gmra.mxu0 %v4054
        %v4056 = vpop.f32.mrf.mxu0
        %v4057 = vadd.f32 %v3947, %v4056
        %v4058 = vpop.f32.mrf.mxu0
        %4059 = vmatprep.mubr.f32.mxu0 0.0
        %v4060 = vand.u32 %v3695, 4294901760
        %v4061 = vsub.f32 %v3695, %v4060
        %4062 = vmatmul.mubr.f32.gmra.mxu0 %v4061
        %v4063 = vpop.f32.mrf.mxu0
        %v4064 = vadd.f32 %v3953, %v4063
        %v4065 = vpop.f32.mrf.mxu0
        %4066 = vdwg.mxu0
        %4067 = vmatprep.subr.mxu0 0.0
        %v4068 = vand.u32 %v3689, 4294901760
        %4069 = vmatpush1.msra.mxu0 %v4068
        %4070 = vmatprep.subr.mxu0 0.0
        %v4071 = vand.u32 %v3688, 4294901760
        %4072 = vmatpush1.msra.mxu0 %v4071
        %4073 = vmatprep.subr.mxu0 0.0
        %v4074 = vand.u32 %v3687, 4294901760
        %4075 = vmatpush1.msra.mxu0 %v4074
        %4076 = vmatprep.subr.mxu0 0.0
        %v4077 = vand.u32 %v3686, 4294901760
        %4078 = vmatpush1.msra.mxu0 %v4077
        %4079 = vmatprep.subr.mxu0 0.0
        %v4080 = vand.u32 %v3685, 4294901760
        %4081 = vmatpush1.msra.mxu0 %v4080
        %4082 = vmatprep.subr.mxu0 0.0
        %v4083 = vand.u32 %v3684, 4294901760
        %4084 = vmatpush1.msra.mxu0 %v4083
        %4085 = vmatprep.subr.mxu0 0.0
        %v4086 = vand.u32 %v3683, 4294901760
        %4087 = vmatpush1.msra.mxu0 %v4086
        %4088 = vmatprep.subr.mxu0 0.0
        %v4089 = vand.u32 %v3682, 4294901760
        %4090 = vmatpush1.msra.mxu0 %v4089
        %4091 = vmatprep.subr.mxu0 0.0
        %v4092 = vand.u32 %v3681, 4294901760
        %4093 = vmatpush1.msra.mxu0 %v4092
        %4094 = vmatprep.subr.mxu0 0.0
        %v4095 = vand.u32 %v3680, 4294901760
        %4096 = vmatpush1.msra.mxu0 %v4095
        %4097 = vmatprep.subr.mxu0 0.0
        %v4098 = vand.u32 %v3679, 4294901760
        %4099 = vmatpush1.msra.mxu0 %v4098
        %4100 = vmatprep.subr.mxu0 0.0
        %v4101 = vand.u32 %v3678, 4294901760
        %4102 = vmatpush1.msra.mxu0 %v4101
        %4103 = vmatprep.subr.mxu0 0.0
        %v4104 = vand.u32 %v3677, 4294901760
        %4105 = vmatpush1.msra.mxu0 %v4104
        %4106 = vmatprep.subr.mxu0 0.0
        %v4107 = vand.u32 %v3676, 4294901760
        %4108 = vmatpush1.msra.mxu0 %v4107
        %4109 = vmatprep.subr.mxu0 0.0
        %v4110 = vand.u32 %v3675, 4294901760
        %4111 = vmatpush1.msra.mxu0 %v4110
        %4112 = vmatprep.subr.mxu0 0.0
        %v4113 = vand.u32 %v3674, 4294901760
        %4114 = vmatpush1.msra.mxu0 %v4113
        %4115 = vmatprep.subr.mxu0 0.0
        %4116 = vmatpush2.msra.mxu0 0.0
        %4117 = vmatprep.subr.mxu0 0.0
        %4118 = vmatpush2.msra.mxu0 0.0
        %4119 = vmatprep.subr.mxu0 0.0
        %4120 = vmatpush2.msra.mxu0 0.0
        %4121 = vmatprep.subr.mxu0 0.0
        %4122 = vmatpush2.msra.mxu0 0.0
        %4123 = vmatprep.subr.mxu0 0.0
        %4124 = vmatpush2.msra.mxu0 0.0
        %4125 = vmatprep.subr.mxu0 0.0
        %4126 = vmatpush2.msra.mxu0 0.0
        %4127 = vmatprep.subr.mxu0 0.0
        %4128 = vmatpush2.msra.mxu0 0.0
        %4129 = vmatprep.subr.mxu0 0.0
        %4130 = vmatpush2.msra.mxu0 0.0
        %4131 = vmatprep.subr.mxu0 0.0
        %4132 = vmatpush2.msra.mxu0 0.0
        %4133 = vmatprep.subr.mxu0 0.0
        %4134 = vmatpush2.msra.mxu0 0.0
        %4135 = vmatprep.subr.mxu0 0.0
        %4136 = vmatpush2.msra.mxu0 0.0
        %4137 = vmatprep.subr.mxu0 0.0
        %4138 = vmatpush2.msra.mxu0 0.0
        %4139 = vmatprep.subr.mxu0 0.0
        %4140 = vmatpush2.msra.mxu0 0.0
        %4141 = vmatprep.subr.mxu0 0.0
        %4142 = vmatpush2.msra.mxu0 0.0
        %4143 = vmatprep.subr.mxu0 0.0
        %4144 = vmatpush2.msra.mxu0 0.0
        %4145 = vmatprep.subr.mxu0 0.0
        %4146 = vmatpush2.msra.mxu0 0.0
        %4147 = vmatprep.mubr.f32.mxu0 0.0
        %v4148 = vand.u32 %v3693, 4294901760
        %v4149 = vsub.f32 %v3693, %v4148
        %v4150 = vand.u32 %v4149, 4294901760
        %4151 = vmatmul.mubr.f32.gmra.mxu0 %v4150
        %v4152 = vpop.f32.mrf.mxu0
        %v4153 = vadd.f32 %v4057, %v4152
        %v4154 = vpop.f32.mrf.mxu0
        %4155 = vmatprep.mubr.f32.mxu0 0.0
        %v4156 = vand.u32 %v3695, 4294901760
        %v4157 = vsub.f32 %v3695, %v4156
        %v4158 = vand.u32 %v4157, 4294901760
        %4159 = vmatmul.mubr.f32.gmra.mxu0 %v4158
        %v4160 = vpop.f32.mrf.mxu0
        %v4161 = vadd.f32 %v4064, %v4160
        %v4162 = vpop.f32.mrf.mxu0
        %4163 = vdwg.mxu0
        %4164 = vmatprep.subr.mxu0 0.0
        %v4165 = vand.u32 %v3689, 4294901760
        %v4166 = vsub.f32 %v3689, %v4165
        %v4167 = vand.u32 %v4166, 4294901760
        %4168 = vmatpush1.msra.mxu0 %v4167
        %4169 = vmatprep.subr.mxu0 0.0
        %v4170 = vand.u32 %v3688, 4294901760
        %v4171 = vsub.f32 %v3688, %v4170
        %v4172 = vand.u32 %v4171, 4294901760
        %4173 = vmatpush1.msra.mxu0 %v4172
        %4174 = vmatprep.subr.mxu0 0.0
        %v4175 = vand.u32 %v3687, 4294901760
        %v4176 = vsub.f32 %v3687, %v4175
        %v4177 = vand.u32 %v4176, 4294901760
        %4178 = vmatpush1.msra.mxu0 %v4177
        %4179 = vmatprep.subr.mxu0 0.0
        %v4180 = vand.u32 %v3686, 4294901760
        %v4181 = vsub.f32 %v3686, %v4180
        %v4182 = vand.u32 %v4181, 4294901760
        %4183 = vmatpush1.msra.mxu0 %v4182
        %4184 = vmatprep.subr.mxu0 0.0
        %v4185 = vand.u32 %v3685, 4294901760
        %v4186 = vsub.f32 %v3685, %v4185
        %v4187 = vand.u32 %v4186, 4294901760
        %4188 = vmatpush1.msra.mxu0 %v4187
        %4189 = vmatprep.subr.mxu0 0.0
        %v4190 = vand.u32 %v3684, 4294901760
        %v4191 = vsub.f32 %v3684, %v4190
        %v4192 = vand.u32 %v4191, 4294901760
        %4193 = vmatpush1.msra.mxu0 %v4192
        %4194 = vmatprep.subr.mxu0 0.0
        %v4195 = vand.u32 %v3683, 4294901760
        %v4196 = vsub.f32 %v3683, %v4195
        %v4197 = vand.u32 %v4196, 4294901760
        %4198 = vmatpush1.msra.mxu0 %v4197
        %4199 = vmatprep.subr.mxu0 0.0
        %v4200 = vand.u32 %v3682, 4294901760
        %v4201 = vsub.f32 %v3682, %v4200
        %v4202 = vand.u32 %v4201, 4294901760
        %4203 = vmatpush1.msra.mxu0 %v4202
        %4204 = vmatprep.subr.mxu0 0.0
        %v4205 = vand.u32 %v3681, 4294901760
        %v4206 = vsub.f32 %v3681, %v4205
        %v4207 = vand.u32 %v4206, 4294901760
        %4208 = vmatpush1.msra.mxu0 %v4207
        %4209 = vmatprep.subr.mxu0 0.0
        %v4210 = vand.u32 %v3680, 4294901760
        %v4211 = vsub.f32 %v3680, %v4210
        %v4212 = vand.u32 %v4211, 4294901760
        %4213 = vmatpush1.msra.mxu0 %v4212
        %4214 = vmatprep.subr.mxu0 0.0
        %v4215 = vand.u32 %v3679, 4294901760
        %v4216 = vsub.f32 %v3679, %v4215
        %v4217 = vand.u32 %v4216, 4294901760
        %4218 = vmatpush1.msra.mxu0 %v4217
        %4219 = vmatprep.subr.mxu0 0.0
        %v4220 = vand.u32 %v3678, 4294901760
        %v4221 = vsub.f32 %v3678, %v4220
        %v4222 = vand.u32 %v4221, 4294901760
        %4223 = vmatpush1.msra.mxu0 %v4222
        %4224 = vmatprep.subr.mxu0 0.0
        %v4225 = vand.u32 %v3677, 4294901760
        %v4226 = vsub.f32 %v3677, %v4225
        %v4227 = vand.u32 %v4226, 4294901760
        %4228 = vmatpush1.msra.mxu0 %v4227
        %4229 = vmatprep.subr.mxu0 0.0
        %v4230 = vand.u32 %v3676, 4294901760
        %v4231 = vsub.f32 %v3676, %v4230
        %v4232 = vand.u32 %v4231, 4294901760
        %4233 = vmatpush1.msra.mxu0 %v4232
        %4234 = vmatprep.subr.mxu0 0.0
        %v4235 = vand.u32 %v3675, 4294901760
        %v4236 = vsub.f32 %v3675, %v4235
        %v4237 = vand.u32 %v4236, 4294901760
        %4238 = vmatpush1.msra.mxu0 %v4237
        %4239 = vmatprep.subr.mxu0 0.0
        %v4240 = vand.u32 %v3674, 4294901760
        %v4241 = vsub.f32 %v3674, %v4240
        %v4242 = vand.u32 %v4241, 4294901760
        %4243 = vmatpush1.msra.mxu0 %v4242
        %4244 = vmatprep.subr.mxu0 0.0
        %4245 = vmatpush2.msra.mxu0 0.0
        %4246 = vmatprep.subr.mxu0 0.0
        %4247 = vmatpush2.msra.mxu0 0.0
        %4248 = vmatprep.subr.mxu0 0.0
        %4249 = vmatpush2.msra.mxu0 0.0
        %4250 = vmatprep.subr.mxu0 0.0
        %4251 = vmatpush2.msra.mxu0 0.0
        %4252 = vmatprep.subr.mxu0 0.0
        %4253 = vmatpush2.msra.mxu0 0.0
        %4254 = vmatprep.subr.mxu0 0.0
        %4255 = vmatpush2.msra.mxu0 0.0
        %4256 = vmatprep.subr.mxu0 0.0
        %4257 = vmatpush2.msra.mxu0 0.0
        %4258 = vmatprep.subr.mxu0 0.0
        %4259 = vmatpush2.msra.mxu0 0.0
        %4260 = vmatprep.subr.mxu0 0.0
        %4261 = vmatpush2.msra.mxu0 0.0
        %4262 = vmatprep.subr.mxu0 0.0
        %4263 = vmatpush2.msra.mxu0 0.0
        %4264 = vmatprep.subr.mxu0 0.0
        %4265 = vmatpush2.msra.mxu0 0.0
        %4266 = vmatprep.subr.mxu0 0.0
        %4267 = vmatpush2.msra.mxu0 0.0
        %4268 = vmatprep.subr.mxu0 0.0
        %4269 = vmatpush2.msra.mxu0 0.0
        %4270 = vmatprep.subr.mxu0 0.0
        %4271 = vmatpush2.msra.mxu0 0.0
        %4272 = vmatprep.subr.mxu0 0.0
        %4273 = vmatpush2.msra.mxu0 0.0
        %4274 = vmatprep.subr.mxu0 0.0
        %4275 = vmatpush2.msra.mxu0 0.0
        %4276 = vmatprep.mubr.f32.mxu0 0.0
        %v4277 = vand.u32 %v3693, 4294901760
        %4278 = vmatmul.mubr.f32.gmra.mxu0 %v4277
        %v4279 = vpop.f32.mrf.mxu0
        %v4280 = vadd.f32 %v4153, %v4279
        %v4281 = vpop.f32.mrf.mxu0
        %4282 = vmatprep.mubr.f32.mxu0 0.0
        %v4283 = vand.u32 %v3695, 4294901760
        %4284 = vmatmul.mubr.f32.gmra.mxu0 %v4283
        %v4285 = vpop.f32.mrf.mxu0
        %v4286 = vadd.f32 %v4161, %v4285
        %v4287 = vpop.f32.mrf.mxu0
        %4288 = vdwg.mxu0
        %4289 = vmatprep.subr.mxu0 0.0
        %v4290 = vand.u32 %v3689, 4294901760
        %4291 = vmatpush1.msra.mxu0 %v4290
        %4292 = vmatprep.subr.mxu0 0.0
        %v4293 = vand.u32 %v3688, 4294901760
        %4294 = vmatpush1.msra.mxu0 %v4293
        %4295 = vmatprep.subr.mxu0 0.0
        %v4296 = vand.u32 %v3687, 4294901760
        %4297 = vmatpush1.msra.mxu0 %v4296
        %4298 = vmatprep.subr.mxu0 0.0
        %v4299 = vand.u32 %v3686, 4294901760
        %4300 = vmatpush1.msra.mxu0 %v4299
        %4301 = vmatprep.subr.mxu0 0.0
        %v4302 = vand.u32 %v3685, 4294901760
        %4303 = vmatpush1.msra.mxu0 %v4302
        %4304 = vmatprep.subr.mxu0 0.0
        %v4305 = vand.u32 %v3684, 4294901760
        %4306 = vmatpush1.msra.mxu0 %v4305
        %4307 = vmatprep.subr.mxu0 0.0
        %v4308 = vand.u32 %v3683, 4294901760
        %4309 = vmatpush1.msra.mxu0 %v4308
        %4310 = vmatprep.subr.mxu0 0.0
        %v4311 = vand.u32 %v3682, 4294901760
        %4312 = vmatpush1.msra.mxu0 %v4311
        %4313 = vmatprep.subr.mxu0 0.0
        %v4314 = vand.u32 %v3681, 4294901760
        %4315 = vmatpush1.msra.mxu0 %v4314
        %4316 = vmatprep.subr.mxu0 0.0
        %v4317 = vand.u32 %v3680, 4294901760
        %4318 = vmatpush1.msra.mxu0 %v4317
        %4319 = vmatprep.subr.mxu0 0.0
        %v4320 = vand.u32 %v3679, 4294901760
        %4321 = vmatpush1.msra.mxu0 %v4320
        %4322 = vmatprep.subr.mxu0 0.0
        %v4323 = vand.u32 %v3678, 4294901760
        %4324 = vmatpush1.msra.mxu0 %v4323
        %4325 = vmatprep.subr.mxu0 0.0
        %v4326 = vand.u32 %v3677, 4294901760
        %4327 = vmatpush1.msra.mxu0 %v4326
        %4328 = vmatprep.subr.mxu0 0.0
        %v4329 = vand.u32 %v3676, 4294901760
        %4330 = vmatpush1.msra.mxu0 %v4329
        %4331 = vmatprep.subr.mxu0 0.0
        %v4332 = vand.u32 %v3675, 4294901760
        %4333 = vmatpush1.msra.mxu0 %v4332
        %4334 = vmatprep.subr.mxu0 0.0
        %v4335 = vand.u32 %v3674, 4294901760
        %4336 = vmatpush1.msra.mxu0 %v4335
        %4337 = vmatprep.subr.mxu0 0.0
        %4338 = vmatpush2.msra.mxu0 0.0
        %4339 = vmatprep.subr.mxu0 0.0
        %4340 = vmatpush2.msra.mxu0 0.0
        %4341 = vmatprep.subr.mxu0 0.0
        %4342 = vmatpush2.msra.mxu0 0.0
        %4343 = vmatprep.subr.mxu0 0.0
        %4344 = vmatpush2.msra.mxu0 0.0
        %4345 = vmatprep.subr.mxu0 0.0
        %4346 = vmatpush2.msra.mxu0 0.0
        %4347 = vmatprep.subr.mxu0 0.0
        %4348 = vmatpush2.msra.mxu0 0.0
        %4349 = vmatprep.subr.mxu0 0.0
        %4350 = vmatpush2.msra.mxu0 0.0
        %4351 = vmatprep.subr.mxu0 0.0
        %4352 = vmatpush2.msra.mxu0 0.0
        %4353 = vmatprep.subr.mxu0 0.0
        %4354 = vmatpush2.msra.mxu0 0.0
        %4355 = vmatprep.subr.mxu0 0.0
        %4356 = vmatpush2.msra.mxu0 0.0
        %4357 = vmatprep.subr.mxu0 0.0
        %4358 = vmatpush2.msra.mxu0 0.0
        %4359 = vmatprep.subr.mxu0 0.0
        %4360 = vmatpush2.msra.mxu0 0.0
        %4361 = vmatprep.subr.mxu0 0.0
        %4362 = vmatpush2.msra.mxu0 0.0
        %4363 = vmatprep.subr.mxu0 0.0
        %4364 = vmatpush2.msra.mxu0 0.0
        %4365 = vmatprep.subr.mxu0 0.0
        %4366 = vmatpush2.msra.mxu0 0.0
        %4367 = vmatprep.subr.mxu0 0.0
        %4368 = vmatpush2.msra.mxu0 0.0
        %4369 = vmatprep.mubr.f32.mxu0 0.0
        %v4370 = vand.u32 %v3693, 4294901760
        %4371 = vmatmul.mubr.f32.gmra.mxu0 %v4370
        %v4372 = vpop.f32.mrf.mxu0
        %v4373 = vadd.f32 %v4280, %v4372
        %v4374 = vpop.f32.mrf.mxu0
        %4375 = vmatprep.mubr.f32.mxu0 0.0
        %v4376 = vand.u32 %v3695, 4294901760
        %4377 = vmatmul.mubr.f32.gmra.mxu0 %v4376
        %v4378 = vpop.f32.mrf.mxu0
        %v4379 = vadd.f32 %v4286, %v4378
        %v4380 = vpop.f32.mrf.mxu0
        %4381 = vdwg.mxu0
        %v4382 = vadd.f32 %v3671, %v4373
        %v4383 = vadd.f32 %v3672, %v4379
        %s4384 = scalar_lea.vmem %s1, 768
        %v4385 = vld [vmem:[%s4384] sm:$0xff]
        %v4386 = vld [vmem:[%s4384 + $0x8] sm:$0xff]
        %v4387 = vld [vmem:[%s4384 + $0x10] sm:$0xff]
        %v4388 = vld [vmem:[%s4384 + $0x18] sm:$0xff]
        %v4389 = vld [vmem:[%s4384 + $0x20] sm:$0xff]
        %v4390 = vld [vmem:[%s4384 + $0x28] sm:$0xff]
        %v4391 = vld [vmem:[%s4384 + $0x30] sm:$0xff]
        %v4392 = vld [vmem:[%s4384 + $0x38] sm:$0xff]
        %v4393 = vld [vmem:[%s4384 + $0x40] sm:$0xff]
        %v4394 = vld [vmem:[%s4384 + $0x48] sm:$0xff]
        %v4395 = vld [vmem:[%s4384 + $0x50] sm:$0xff]
        %v4396 = vld [vmem:[%s4384 + $0x58] sm:$0xff]
        %v4397 = vld [vmem:[%s4384 + $0x60] sm:$0xff]
        %v4398 = vld [vmem:[%s4384 + $0x68] sm:$0xff]
        %v4399 = vld [vmem:[%s4384 + $0x70] sm:$0xff]
        %v4400 = vld [vmem:[%s4384 + $0x78] sm:$0xff]
        %vm4401 = vcmask 1041408
        %v4402 = vrot.slane %v125, 6
        %v4403 = vrot.slane %v126, 6
        %v4404 = vsel %vm4401, %v4402, %v4403
        %v4405 = vrot.slane %v127, 6
        %v4406 = vsel %vm4401, %v4403, %v4405
        %4409 = vmatprep.subr.mxu0 0.0
        %v4410 = vand.u32 %v4400, 4294901760
        %4411 = vmatpush1.msra.mxu0 %v4410
        %4412 = vmatprep.subr.mxu0 0.0
        %v4413 = vand.u32 %v4399, 4294901760
        %4414 = vmatpush1.msra.mxu0 %v4413
        %4415 = vmatprep.subr.mxu0 0.0
        %v4416 = vand.u32 %v4398, 4294901760
        %4417 = vmatpush1.msra.mxu0 %v4416
        %4418 = vmatprep.subr.mxu0 0.0
        %v4419 = vand.u32 %v4397, 4294901760
        %4420 = vmatpush1.msra.mxu0 %v4419
        %4421 = vmatprep.subr.mxu0 0.0
        %v4422 = vand.u32 %v4396, 4294901760
        %4423 = vmatpush1.msra.mxu0 %v4422
        %4424 = vmatprep.subr.mxu0 0.0
        %v4425 = vand.u32 %v4395, 4294901760
        %4426 = vmatpush1.msra.mxu0 %v4425
        %4427 = vmatprep.subr.mxu0 0.0
        %v4428 = vand.u32 %v4394, 4294901760
        %4429 = vmatpush1.msra.mxu0 %v4428
        %4430 = vmatprep.subr.mxu0 0.0
        %v4431 = vand.u32 %v4393, 4294901760
        %4432 = vmatpush1.msra.mxu0 %v4431
        %4433 = vmatprep.subr.mxu0 0.0
        %v4434 = vand.u32 %v4392, 4294901760
        %4435 = vmatpush1.msra.mxu0 %v4434
        %4436 = vmatprep.subr.mxu0 0.0
        %v4437 = vand.u32 %v4391, 4294901760
        %4438 = vmatpush1.msra.mxu0 %v4437
        %4439 = vmatprep.subr.mxu0 0.0
        %v4440 = vand.u32 %v4390, 4294901760
        %4441 = vmatpush1.msra.mxu0 %v4440
        %4442 = vmatprep.subr.mxu0 0.0
        %v4443 = vand.u32 %v4389, 4294901760
        %4444 = vmatpush1.msra.mxu0 %v4443
        %4445 = vmatprep.subr.mxu0 0.0
        %v4446 = vand.u32 %v4388, 4294901760
        %4447 = vmatpush1.msra.mxu0 %v4446
        %4448 = vmatprep.subr.mxu0 0.0
        %v4449 = vand.u32 %v4387, 4294901760
        %4450 = vmatpush1.msra.mxu0 %v4449
        %4451 = vmatprep.subr.mxu0 0.0
        %v4452 = vand.u32 %v4386, 4294901760
        %4453 = vmatpush1.msra.mxu0 %v4452
        %4454 = vmatprep.subr.mxu0 0.0
        %v4455 = vand.u32 %v4385, 4294901760
        %4456 = vmatpush1.msra.mxu0 %v4455
        %4457 = vmatprep.subr.mxu0 0.0
        %4458 = vmatpush2.msra.mxu0 0.0
        %4459 = vmatprep.subr.mxu0 0.0
        %4460 = vmatpush2.msra.mxu0 0.0
        %4461 = vmatprep.subr.mxu0 0.0
        %4462 = vmatpush2.msra.mxu0 0.0
        %4463 = vmatprep.subr.mxu0 0.0
        %4464 = vmatpush2.msra.mxu0 0.0
        %4465 = vmatprep.subr.mxu0 0.0
        %4466 = vmatpush2.msra.mxu0 0.0
        %4467 = vmatprep.subr.mxu0 0.0
        %4468 = vmatpush2.msra.mxu0 0.0
        %4469 = vmatprep.subr.mxu0 0.0
        %4470 = vmatpush2.msra.mxu0 0.0
        %4471 = vmatprep.subr.mxu0 0.0
        %4472 = vmatpush2.msra.mxu0 0.0
        %4473 = vmatprep.subr.mxu0 0.0
        %4474 = vmatpush2.msra.mxu0 0.0
        %4475 = vmatprep.subr.mxu0 0.0
        %4476 = vmatpush2.msra.mxu0 0.0
        %4477 = vmatprep.subr.mxu0 0.0
        %4478 = vmatpush2.msra.mxu0 0.0
        %4479 = vmatprep.subr.mxu0 0.0
        %4480 = vmatpush2.msra.mxu0 0.0
        %4481 = vmatprep.subr.mxu0 0.0
        %4482 = vmatpush2.msra.mxu0 0.0
        %4483 = vmatprep.subr.mxu0 0.0
        %4484 = vmatpush2.msra.mxu0 0.0
        %4485 = vmatprep.subr.mxu0 0.0
        %4486 = vmatpush2.msra.mxu0 0.0
        %4487 = vmatprep.subr.mxu0 0.0
        %4488 = vmatpush2.msra.mxu0 0.0
        %4489 = vmatprep.mubr.f32.mxu0 0.0
        %v4490 = vand.u32 %v4404, 4294901760
        %v4491 = vsub.f32 %v4404, %v4490
        %v4492 = vand.u32 %v4491, 4294901760
        %v4493 = vsub.f32 %v4491, %v4492
        %v4494 = vand.u32 %v4493, 4294901760
        %4495 = vmatmul.mubr.f32.gmra.mxu0 %v4494
        %v4496 = vpop.f32.mrf.mxu0
        %v4497 = vadd.f32 0.0, %v4496
        %v4498 = vpop.f32.mrf.mxu0
        %4499 = vmatprep.mubr.f32.mxu0 0.0
        %v4500 = vand.u32 %v4406, 4294901760
        %v4501 = vsub.f32 %v4406, %v4500
        %v4502 = vand.u32 %v4501, 4294901760
        %v4503 = vsub.f32 %v4501, %v4502
        %v4504 = vand.u32 %v4503, 4294901760
        %4505 = vmatmul.mubr.f32.gmra.mxu0 %v4504
        %v4506 = vpop.f32.mrf.mxu0
        %v4507 = vadd.f32 0.0, %v4506
        %v4508 = vpop.f32.mrf.mxu0
        %4509 = vdwg.mxu0
        %4510 = vmatprep.subr.mxu0 0.0
        %v4511 = vand.u32 %v4400, 4294901760
        %v4512 = vsub.f32 %v4400, %v4511
        %v4513 = vand.u32 %v4512, 4294901760
        %v4514 = vsub.f32 %v4512, %v4513
        %v4515 = vand.u32 %v4514, 4294901760
        %4516 = vmatpush1.msra.mxu0 %v4515
        %4517 = vmatprep.subr.mxu0 0.0
        %v4518 = vand.u32 %v4399, 4294901760
        %v4519 = vsub.f32 %v4399, %v4518
        %v4520 = vand.u32 %v4519, 4294901760
        %v4521 = vsub.f32 %v4519, %v4520
        %v4522 = vand.u32 %v4521, 4294901760
        %4523 = vmatpush1.msra.mxu0 %v4522
        %4524 = vmatprep.subr.mxu0 0.0
        %v4525 = vand.u32 %v4398, 4294901760
        %v4526 = vsub.f32 %v4398, %v4525
        %v4527 = vand.u32 %v4526, 4294901760
        %v4528 = vsub.f32 %v4526, %v4527
        %v4529 = vand.u32 %v4528, 4294901760
        %4530 = vmatpush1.msra.mxu0 %v4529
        %4531 = vmatprep.subr.mxu0 0.0
        %v4532 = vand.u32 %v4397, 4294901760
        %v4533 = vsub.f32 %v4397, %v4532
        %v4534 = vand.u32 %v4533, 4294901760
        %v4535 = vsub.f32 %v4533, %v4534
        %v4536 = vand.u32 %v4535, 4294901760
        %4537 = vmatpush1.msra.mxu0 %v4536
        %4538 = vmatprep.subr.mxu0 0.0
        %v4539 = vand.u32 %v4396, 4294901760
        %v4540 = vsub.f32 %v4396, %v4539
        %v4541 = vand.u32 %v4540, 4294901760
        %v4542 = vsub.f32 %v4540, %v4541
        %v4543 = vand.u32 %v4542, 4294901760
        %4544 = vmatpush1.msra.mxu0 %v4543
        %4545 = vmatprep.subr.mxu0 0.0
        %v4546 = vand.u32 %v4395, 4294901760
        %v4547 = vsub.f32 %v4395, %v4546
        %v4548 = vand.u32 %v4547, 4294901760
        %v4549 = vsub.f32 %v4547, %v4548
        %v4550 = vand.u32 %v4549, 4294901760
        %4551 = vmatpush1.msra.mxu0 %v4550
        %4552 = vmatprep.subr.mxu0 0.0
        %v4553 = vand.u32 %v4394, 4294901760
        %v4554 = vsub.f32 %v4394, %v4553
        %v4555 = vand.u32 %v4554, 4294901760
        %v4556 = vsub.f32 %v4554, %v4555
        %v4557 = vand.u32 %v4556, 4294901760
        %4558 = vmatpush1.msra.mxu0 %v4557
        %4559 = vmatprep.subr.mxu0 0.0
        %v4560 = vand.u32 %v4393, 4294901760
        %v4561 = vsub.f32 %v4393, %v4560
        %v4562 = vand.u32 %v4561, 4294901760
        %v4563 = vsub.f32 %v4561, %v4562
        %v4564 = vand.u32 %v4563, 4294901760
        %4565 = vmatpush1.msra.mxu0 %v4564
        %4566 = vmatprep.subr.mxu0 0.0
        %v4567 = vand.u32 %v4392, 4294901760
        %v4568 = vsub.f32 %v4392, %v4567
        %v4569 = vand.u32 %v4568, 4294901760
        %v4570 = vsub.f32 %v4568, %v4569
        %v4571 = vand.u32 %v4570, 4294901760
        %4572 = vmatpush1.msra.mxu0 %v4571
        %4573 = vmatprep.subr.mxu0 0.0
        %v4574 = vand.u32 %v4391, 4294901760
        %v4575 = vsub.f32 %v4391, %v4574
        %v4576 = vand.u32 %v4575, 4294901760
        %v4577 = vsub.f32 %v4575, %v4576
        %v4578 = vand.u32 %v4577, 4294901760
        %4579 = vmatpush1.msra.mxu0 %v4578
        %4580 = vmatprep.subr.mxu0 0.0
        %v4581 = vand.u32 %v4390, 4294901760
        %v4582 = vsub.f32 %v4390, %v4581
        %v4583 = vand.u32 %v4582, 4294901760
        %v4584 = vsub.f32 %v4582, %v4583
        %v4585 = vand.u32 %v4584, 4294901760
        %4586 = vmatpush1.msra.mxu0 %v4585
        %4587 = vmatprep.subr.mxu0 0.0
        %v4588 = vand.u32 %v4389, 4294901760
        %v4589 = vsub.f32 %v4389, %v4588
        %v4590 = vand.u32 %v4589, 4294901760
        %v4591 = vsub.f32 %v4589, %v4590
        %v4592 = vand.u32 %v4591, 4294901760
        %4593 = vmatpush1.msra.mxu0 %v4592
        %4594 = vmatprep.subr.mxu0 0.0
        %v4595 = vand.u32 %v4388, 4294901760
        %v4596 = vsub.f32 %v4388, %v4595
        %v4597 = vand.u32 %v4596, 4294901760
        %v4598 = vsub.f32 %v4596, %v4597
        %v4599 = vand.u32 %v4598, 4294901760
        %4600 = vmatpush1.msra.mxu0 %v4599
        %4601 = vmatprep.subr.mxu0 0.0
        %v4602 = vand.u32 %v4387, 4294901760
        %v4603 = vsub.f32 %v4387, %v4602
        %v4604 = vand.u32 %v4603, 4294901760
        %v4605 = vsub.f32 %v4603, %v4604
        %v4606 = vand.u32 %v4605, 4294901760
        %4607 = vmatpush1.msra.mxu0 %v4606
        %4608 = vmatprep.subr.mxu0 0.0
        %v4609 = vand.u32 %v4386, 4294901760
        %v4610 = vsub.f32 %v4386, %v4609
        %v4611 = vand.u32 %v4610, 4294901760
        %v4612 = vsub.f32 %v4610, %v4611
        %v4613 = vand.u32 %v4612, 4294901760
        %4614 = vmatpush1.msra.mxu0 %v4613
        %4615 = vmatprep.subr.mxu0 0.0
        %v4616 = vand.u32 %v4385, 4294901760
        %v4617 = vsub.f32 %v4385, %v4616
        %v4618 = vand.u32 %v4617, 4294901760
        %v4619 = vsub.f32 %v4617, %v4618
        %v4620 = vand.u32 %v4619, 4294901760
        %4621 = vmatpush1.msra.mxu0 %v4620
        %4622 = vmatprep.subr.mxu0 0.0
        %4623 = vmatpush2.msra.mxu0 0.0
        %4624 = vmatprep.subr.mxu0 0.0
        %4625 = vmatpush2.msra.mxu0 0.0
        %4626 = vmatprep.subr.mxu0 0.0
        %4627 = vmatpush2.msra.mxu0 0.0
        %4628 = vmatprep.subr.mxu0 0.0
        %4629 = vmatpush2.msra.mxu0 0.0
        %4630 = vmatprep.subr.mxu0 0.0
        %4631 = vmatpush2.msra.mxu0 0.0
        %4632 = vmatprep.subr.mxu0 0.0
        %4633 = vmatpush2.msra.mxu0 0.0
        %4634 = vmatprep.subr.mxu0 0.0
        %4635 = vmatpush2.msra.mxu0 0.0
        %4636 = vmatprep.subr.mxu0 0.0
        %4637 = vmatpush2.msra.mxu0 0.0
        %4638 = vmatprep.subr.mxu0 0.0
        %4639 = vmatpush2.msra.mxu0 0.0
        %4640 = vmatprep.subr.mxu0 0.0
        %4641 = vmatpush2.msra.mxu0 0.0
        %4642 = vmatprep.subr.mxu0 0.0
        %4643 = vmatpush2.msra.mxu0 0.0
        %4644 = vmatprep.subr.mxu0 0.0
        %4645 = vmatpush2.msra.mxu0 0.0
        %4646 = vmatprep.subr.mxu0 0.0
        %4647 = vmatpush2.msra.mxu0 0.0
        %4648 = vmatprep.subr.mxu0 0.0
        %4649 = vmatpush2.msra.mxu0 0.0
        %4650 = vmatprep.subr.mxu0 0.0
        %4651 = vmatpush2.msra.mxu0 0.0
        %4652 = vmatprep.subr.mxu0 0.0
        %4653 = vmatpush2.msra.mxu0 0.0
        %4654 = vmatprep.mubr.f32.mxu0 0.0
        %v4655 = vand.u32 %v4404, 4294901760
        %4656 = vmatmul.mubr.f32.gmra.mxu0 %v4655
        %v4657 = vpop.f32.mrf.mxu0
        %v4658 = vadd.f32 %v4497, %v4657
        %v4659 = vpop.f32.mrf.mxu0
        %4660 = vmatprep.mubr.f32.mxu0 0.0
        %v4661 = vand.u32 %v4406, 4294901760
        %4662 = vmatmul.mubr.f32.gmra.mxu0 %v4661
        %v4663 = vpop.f32.mrf.mxu0
        %v4664 = vadd.f32 %v4507, %v4663
        %v4665 = vpop.f32.mrf.mxu0
        %4666 = vdwg.mxu0
        %4667 = vmatprep.subr.mxu0 0.0
        %v4668 = vand.u32 %v4400, 4294901760
        %v4669 = vsub.f32 %v4400, %v4668
        %4670 = vmatpush1.msra.mxu0 %v4669
        %4671 = vmatprep.subr.mxu0 0.0
        %v4672 = vand.u32 %v4399, 4294901760
        %v4673 = vsub.f32 %v4399, %v4672
        %4674 = vmatpush1.msra.mxu0 %v4673
        %4675 = vmatprep.subr.mxu0 0.0
        %v4676 = vand.u32 %v4398, 4294901760
        %v4677 = vsub.f32 %v4398, %v4676
        %4678 = vmatpush1.msra.mxu0 %v4677
        %4679 = vmatprep.subr.mxu0 0.0
        %v4680 = vand.u32 %v4397, 4294901760
        %v4681 = vsub.f32 %v4397, %v4680
        %4682 = vmatpush1.msra.mxu0 %v4681
        %4683 = vmatprep.subr.mxu0 0.0
        %v4684 = vand.u32 %v4396, 4294901760
        %v4685 = vsub.f32 %v4396, %v4684
        %4686 = vmatpush1.msra.mxu0 %v4685
        %4687 = vmatprep.subr.mxu0 0.0
        %v4688 = vand.u32 %v4395, 4294901760
        %v4689 = vsub.f32 %v4395, %v4688
        %4690 = vmatpush1.msra.mxu0 %v4689
        %4691 = vmatprep.subr.mxu0 0.0
        %v4692 = vand.u32 %v4394, 4294901760
        %v4693 = vsub.f32 %v4394, %v4692
        %4694 = vmatpush1.msra.mxu0 %v4693
        %4695 = vmatprep.subr.mxu0 0.0
        %v4696 = vand.u32 %v4393, 4294901760
        %v4697 = vsub.f32 %v4393, %v4696
        %4698 = vmatpush1.msra.mxu0 %v4697
        %4699 = vmatprep.subr.mxu0 0.0
        %v4700 = vand.u32 %v4392, 4294901760
        %v4701 = vsub.f32 %v4392, %v4700
        %4702 = vmatpush1.msra.mxu0 %v4701
        %4703 = vmatprep.subr.mxu0 0.0
        %v4704 = vand.u32 %v4391, 4294901760
        %v4705 = vsub.f32 %v4391, %v4704
        %4706 = vmatpush1.msra.mxu0 %v4705
        %4707 = vmatprep.subr.mxu0 0.0
        %v4708 = vand.u32 %v4390, 4294901760
        %v4709 = vsub.f32 %v4390, %v4708
        %4710 = vmatpush1.msra.mxu0 %v4709
        %4711 = vmatprep.subr.mxu0 0.0
        %v4712 = vand.u32 %v4389, 4294901760
        %v4713 = vsub.f32 %v4389, %v4712
        %4714 = vmatpush1.msra.mxu0 %v4713
        %4715 = vmatprep.subr.mxu0 0.0
        %v4716 = vand.u32 %v4388, 4294901760
        %v4717 = vsub.f32 %v4388, %v4716
        %4718 = vmatpush1.msra.mxu0 %v4717
        %4719 = vmatprep.subr.mxu0 0.0
        %v4720 = vand.u32 %v4387, 4294901760
        %v4721 = vsub.f32 %v4387, %v4720
        %4722 = vmatpush1.msra.mxu0 %v4721
        %4723 = vmatprep.subr.mxu0 0.0
        %v4724 = vand.u32 %v4386, 4294901760
        %v4725 = vsub.f32 %v4386, %v4724
        %4726 = vmatpush1.msra.mxu0 %v4725
        %4727 = vmatprep.subr.mxu0 0.0
        %v4728 = vand.u32 %v4385, 4294901760
        %v4729 = vsub.f32 %v4385, %v4728
        %4730 = vmatpush1.msra.mxu0 %v4729
        %4731 = vmatprep.subr.mxu0 0.0
        %4732 = vmatpush2.msra.mxu0 0.0
        %4733 = vmatprep.subr.mxu0 0.0
        %4734 = vmatpush2.msra.mxu0 0.0
        %4735 = vmatprep.subr.mxu0 0.0
        %4736 = vmatpush2.msra.mxu0 0.0
        %4737 = vmatprep.subr.mxu0 0.0
        %4738 = vmatpush2.msra.mxu0 0.0
        %4739 = vmatprep.subr.mxu0 0.0
        %4740 = vmatpush2.msra.mxu0 0.0
        %4741 = vmatprep.subr.mxu0 0.0
        %4742 = vmatpush2.msra.mxu0 0.0
        %4743 = vmatprep.subr.mxu0 0.0
        %4744 = vmatpush2.msra.mxu0 0.0
        %4745 = vmatprep.subr.mxu0 0.0
        %4746 = vmatpush2.msra.mxu0 0.0
        %4747 = vmatprep.subr.mxu0 0.0
        %4748 = vmatpush2.msra.mxu0 0.0
        %4749 = vmatprep.subr.mxu0 0.0
        %4750 = vmatpush2.msra.mxu0 0.0
        %4751 = vmatprep.subr.mxu0 0.0
        %4752 = vmatpush2.msra.mxu0 0.0
        %4753 = vmatprep.subr.mxu0 0.0
        %4754 = vmatpush2.msra.mxu0 0.0
        %4755 = vmatprep.subr.mxu0 0.0
        %4756 = vmatpush2.msra.mxu0 0.0
        %4757 = vmatprep.subr.mxu0 0.0
        %4758 = vmatpush2.msra.mxu0 0.0
        %4759 = vmatprep.subr.mxu0 0.0
        %4760 = vmatpush2.msra.mxu0 0.0
        %4761 = vmatprep.subr.mxu0 0.0
        %4762 = vmatpush2.msra.mxu0 0.0
        %4763 = vmatprep.mubr.f32.mxu0 0.0
        %v4764 = vand.u32 %v4404, 4294901760
        %v4765 = vsub.f32 %v4404, %v4764
        %4766 = vmatmul.mubr.f32.gmra.mxu0 %v4765
        %v4767 = vpop.f32.mrf.mxu0
        %v4768 = vadd.f32 %v4658, %v4767
        %v4769 = vpop.f32.mrf.mxu0
        %4770 = vmatprep.mubr.f32.mxu0 0.0
        %v4771 = vand.u32 %v4406, 4294901760
        %v4772 = vsub.f32 %v4406, %v4771
        %4773 = vmatmul.mubr.f32.gmra.mxu0 %v4772
        %v4774 = vpop.f32.mrf.mxu0
        %v4775 = vadd.f32 %v4664, %v4774
        %v4776 = vpop.f32.mrf.mxu0
        %4777 = vdwg.mxu0
        %4778 = vmatprep.subr.mxu0 0.0
        %v4779 = vand.u32 %v4400, 4294901760
        %4780 = vmatpush1.msra.mxu0 %v4779
        %4781 = vmatprep.subr.mxu0 0.0
        %v4782 = vand.u32 %v4399, 4294901760
        %4783 = vmatpush1.msra.mxu0 %v4782
        %4784 = vmatprep.subr.mxu0 0.0
        %v4785 = vand.u32 %v4398, 4294901760
        %4786 = vmatpush1.msra.mxu0 %v4785
        %4787 = vmatprep.subr.mxu0 0.0
        %v4788 = vand.u32 %v4397, 4294901760
        %4789 = vmatpush1.msra.mxu0 %v4788
        %4790 = vmatprep.subr.mxu0 0.0
        %v4791 = vand.u32 %v4396, 4294901760
        %4792 = vmatpush1.msra.mxu0 %v4791
        %4793 = vmatprep.subr.mxu0 0.0
        %v4794 = vand.u32 %v4395, 4294901760
        %4795 = vmatpush1.msra.mxu0 %v4794
        %4796 = vmatprep.subr.mxu0 0.0
        %v4797 = vand.u32 %v4394, 4294901760
        %4798 = vmatpush1.msra.mxu0 %v4797
        %4799 = vmatprep.subr.mxu0 0.0
        %v4800 = vand.u32 %v4393, 4294901760
        %4801 = vmatpush1.msra.mxu0 %v4800
        %4802 = vmatprep.subr.mxu0 0.0
        %v4803 = vand.u32 %v4392, 4294901760
        %4804 = vmatpush1.msra.mxu0 %v4803
        %4805 = vmatprep.subr.mxu0 0.0
        %v4806 = vand.u32 %v4391, 4294901760
        %4807 = vmatpush1.msra.mxu0 %v4806
        %4808 = vmatprep.subr.mxu0 0.0
        %v4809 = vand.u32 %v4390, 4294901760
        %4810 = vmatpush1.msra.mxu0 %v4809
        %4811 = vmatprep.subr.mxu0 0.0
        %v4812 = vand.u32 %v4389, 4294901760
        %4813 = vmatpush1.msra.mxu0 %v4812
        %4814 = vmatprep.subr.mxu0 0.0
        %v4815 = vand.u32 %v4388, 4294901760
        %4816 = vmatpush1.msra.mxu0 %v4815
        %4817 = vmatprep.subr.mxu0 0.0
        %v4818 = vand.u32 %v4387, 4294901760
        %4819 = vmatpush1.msra.mxu0 %v4818
        %4820 = vmatprep.subr.mxu0 0.0
        %v4821 = vand.u32 %v4386, 4294901760
        %4822 = vmatpush1.msra.mxu0 %v4821
        %4823 = vmatprep.subr.mxu0 0.0
        %v4824 = vand.u32 %v4385, 4294901760
        %4825 = vmatpush1.msra.mxu0 %v4824
        %4826 = vmatprep.subr.mxu0 0.0
        %4827 = vmatpush2.msra.mxu0 0.0
        %4828 = vmatprep.subr.mxu0 0.0
        %4829 = vmatpush2.msra.mxu0 0.0
        %4830 = vmatprep.subr.mxu0 0.0
        %4831 = vmatpush2.msra.mxu0 0.0
        %4832 = vmatprep.subr.mxu0 0.0
        %4833 = vmatpush2.msra.mxu0 0.0
        %4834 = vmatprep.subr.mxu0 0.0
        %4835 = vmatpush2.msra.mxu0 0.0
        %4836 = vmatprep.subr.mxu0 0.0
        %4837 = vmatpush2.msra.mxu0 0.0
        %4838 = vmatprep.subr.mxu0 0.0
        %4839 = vmatpush2.msra.mxu0 0.0
        %4840 = vmatprep.subr.mxu0 0.0
        %4841 = vmatpush2.msra.mxu0 0.0
        %4842 = vmatprep.subr.mxu0 0.0
        %4843 = vmatpush2.msra.mxu0 0.0
        %4844 = vmatprep.subr.mxu0 0.0
        %4845 = vmatpush2.msra.mxu0 0.0
        %4846 = vmatprep.subr.mxu0 0.0
        %4847 = vmatpush2.msra.mxu0 0.0
        %4848 = vmatprep.subr.mxu0 0.0
        %4849 = vmatpush2.msra.mxu0 0.0
        %4850 = vmatprep.subr.mxu0 0.0
        %4851 = vmatpush2.msra.mxu0 0.0
        %4852 = vmatprep.subr.mxu0 0.0
        %4853 = vmatpush2.msra.mxu0 0.0
        %4854 = vmatprep.subr.mxu0 0.0
        %4855 = vmatpush2.msra.mxu0 0.0
        %4856 = vmatprep.subr.mxu0 0.0
        %4857 = vmatpush2.msra.mxu0 0.0
        %4858 = vmatprep.mubr.f32.mxu0 0.0
        %v4859 = vand.u32 %v4404, 4294901760
        %v4860 = vsub.f32 %v4404, %v4859
        %v4861 = vand.u32 %v4860, 4294901760
        %4862 = vmatmul.mubr.f32.gmra.mxu0 %v4861
        %v4863 = vpop.f32.mrf.mxu0
        %v4864 = vadd.f32 %v4768, %v4863
        %v4865 = vpop.f32.mrf.mxu0
        %4866 = vmatprep.mubr.f32.mxu0 0.0
        %v4867 = vand.u32 %v4406, 4294901760
        %v4868 = vsub.f32 %v4406, %v4867
        %v4869 = vand.u32 %v4868, 4294901760
        %4870 = vmatmul.mubr.f32.gmra.mxu0 %v4869
        %v4871 = vpop.f32.mrf.mxu0
        %v4872 = vadd.f32 %v4775, %v4871
        %v4873 = vpop.f32.mrf.mxu0
        %4874 = vdwg.mxu0
        %4875 = vmatprep.subr.mxu0 0.0
        %v4876 = vand.u32 %v4400, 4294901760
        %v4877 = vsub.f32 %v4400, %v4876
        %v4878 = vand.u32 %v4877, 4294901760
        %4879 = vmatpush1.msra.mxu0 %v4878
        %4880 = vmatprep.subr.mxu0 0.0
        %v4881 = vand.u32 %v4399, 4294901760
        %v4882 = vsub.f32 %v4399, %v4881
        %v4883 = vand.u32 %v4882, 4294901760
        %4884 = vmatpush1.msra.mxu0 %v4883
        %4885 = vmatprep.subr.mxu0 0.0
        %v4886 = vand.u32 %v4398, 4294901760
        %v4887 = vsub.f32 %v4398, %v4886
        %v4888 = vand.u32 %v4887, 4294901760
        %4889 = vmatpush1.msra.mxu0 %v4888
        %4890 = vmatprep.subr.mxu0 0.0
        %v4891 = vand.u32 %v4397, 4294901760
        %v4892 = vsub.f32 %v4397, %v4891
        %v4893 = vand.u32 %v4892, 4294901760
        %4894 = vmatpush1.msra.mxu0 %v4893
        %4895 = vmatprep.subr.mxu0 0.0
        %v4896 = vand.u32 %v4396, 4294901760
        %v4897 = vsub.f32 %v4396, %v4896
        %v4898 = vand.u32 %v4897, 4294901760
        %4899 = vmatpush1.msra.mxu0 %v4898
        %4900 = vmatprep.subr.mxu0 0.0
        %v4901 = vand.u32 %v4395, 4294901760
        %v4902 = vsub.f32 %v4395, %v4901
        %v4903 = vand.u32 %v4902, 4294901760
        %4904 = vmatpush1.msra.mxu0 %v4903
        %4905 = vmatprep.subr.mxu0 0.0
        %v4906 = vand.u32 %v4394, 4294901760
        %v4907 = vsub.f32 %v4394, %v4906
        %v4908 = vand.u32 %v4907, 4294901760
        %4909 = vmatpush1.msra.mxu0 %v4908
        %4910 = vmatprep.subr.mxu0 0.0
        %v4911 = vand.u32 %v4393, 4294901760
        %v4912 = vsub.f32 %v4393, %v4911
        %v4913 = vand.u32 %v4912, 4294901760
        %4914 = vmatpush1.msra.mxu0 %v4913
        %4915 = vmatprep.subr.mxu0 0.0
        %v4916 = vand.u32 %v4392, 4294901760
        %v4917 = vsub.f32 %v4392, %v4916
        %v4918 = vand.u32 %v4917, 4294901760
        %4919 = vmatpush1.msra.mxu0 %v4918
        %4920 = vmatprep.subr.mxu0 0.0
        %v4921 = vand.u32 %v4391, 4294901760
        %v4922 = vsub.f32 %v4391, %v4921
        %v4923 = vand.u32 %v4922, 4294901760
        %4924 = vmatpush1.msra.mxu0 %v4923
        %4925 = vmatprep.subr.mxu0 0.0
        %v4926 = vand.u32 %v4390, 4294901760
        %v4927 = vsub.f32 %v4390, %v4926
        %v4928 = vand.u32 %v4927, 4294901760
        %4929 = vmatpush1.msra.mxu0 %v4928
        %4930 = vmatprep.subr.mxu0 0.0
        %v4931 = vand.u32 %v4389, 4294901760
        %v4932 = vsub.f32 %v4389, %v4931
        %v4933 = vand.u32 %v4932, 4294901760
        %4934 = vmatpush1.msra.mxu0 %v4933
        %4935 = vmatprep.subr.mxu0 0.0
        %v4936 = vand.u32 %v4388, 4294901760
        %v4937 = vsub.f32 %v4388, %v4936
        %v4938 = vand.u32 %v4937, 4294901760
        %4939 = vmatpush1.msra.mxu0 %v4938
        %4940 = vmatprep.subr.mxu0 0.0
        %v4941 = vand.u32 %v4387, 4294901760
        %v4942 = vsub.f32 %v4387, %v4941
        %v4943 = vand.u32 %v4942, 4294901760
        %4944 = vmatpush1.msra.mxu0 %v4943
        %4945 = vmatprep.subr.mxu0 0.0
        %v4946 = vand.u32 %v4386, 4294901760
        %v4947 = vsub.f32 %v4386, %v4946
        %v4948 = vand.u32 %v4947, 4294901760
        %4949 = vmatpush1.msra.mxu0 %v4948
        %4950 = vmatprep.subr.mxu0 0.0
        %v4951 = vand.u32 %v4385, 4294901760
        %v4952 = vsub.f32 %v4385, %v4951
        %v4953 = vand.u32 %v4952, 4294901760
        %4954 = vmatpush1.msra.mxu0 %v4953
        %4955 = vmatprep.subr.mxu0 0.0
        %4956 = vmatpush2.msra.mxu0 0.0
        %4957 = vmatprep.subr.mxu0 0.0
        %4958 = vmatpush2.msra.mxu0 0.0
        %4959 = vmatprep.subr.mxu0 0.0
        %4960 = vmatpush2.msra.mxu0 0.0
        %4961 = vmatprep.subr.mxu0 0.0
        %4962 = vmatpush2.msra.mxu0 0.0
        %4963 = vmatprep.subr.mxu0 0.0
        %4964 = vmatpush2.msra.mxu0 0.0
        %4965 = vmatprep.subr.mxu0 0.0
        %4966 = vmatpush2.msra.mxu0 0.0
        %4967 = vmatprep.subr.mxu0 0.0
        %4968 = vmatpush2.msra.mxu0 0.0
        %4969 = vmatprep.subr.mxu0 0.0
        %4970 = vmatpush2.msra.mxu0 0.0
        %4971 = vmatprep.subr.mxu0 0.0
        %4972 = vmatpush2.msra.mxu0 0.0
        %4973 = vmatprep.subr.mxu0 0.0
        %4974 = vmatpush2.msra.mxu0 0.0
        %4975 = vmatprep.subr.mxu0 0.0
        %4976 = vmatpush2.msra.mxu0 0.0
        %4977 = vmatprep.subr.mxu0 0.0
        %4978 = vmatpush2.msra.mxu0 0.0
        %4979 = vmatprep.subr.mxu0 0.0
        %4980 = vmatpush2.msra.mxu0 0.0
        %4981 = vmatprep.subr.mxu0 0.0
        %4982 = vmatpush2.msra.mxu0 0.0
        %4983 = vmatprep.subr.mxu0 0.0
        %4984 = vmatpush2.msra.mxu0 0.0
        %4985 = vmatprep.subr.mxu0 0.0
        %4986 = vmatpush2.msra.mxu0 0.0
        %4987 = vmatprep.mubr.f32.mxu0 0.0
        %v4988 = vand.u32 %v4404, 4294901760
        %4989 = vmatmul.mubr.f32.gmra.mxu0 %v4988
        %v4990 = vpop.f32.mrf.mxu0
        %v4991 = vadd.f32 %v4864, %v4990
        %v4992 = vpop.f32.mrf.mxu0
        %4993 = vmatprep.mubr.f32.mxu0 0.0
        %v4994 = vand.u32 %v4406, 4294901760
        %4995 = vmatmul.mubr.f32.gmra.mxu0 %v4994
        %v4996 = vpop.f32.mrf.mxu0
        %v4997 = vadd.f32 %v4872, %v4996
        %v4998 = vpop.f32.mrf.mxu0
        %4999 = vdwg.mxu0
        %5000 = vmatprep.subr.mxu0 0.0
        %v5001 = vand.u32 %v4400, 4294901760
        %5002 = vmatpush1.msra.mxu0 %v5001
        %5003 = vmatprep.subr.mxu0 0.0
        %v5004 = vand.u32 %v4399, 4294901760
        %5005 = vmatpush1.msra.mxu0 %v5004
        %5006 = vmatprep.subr.mxu0 0.0
        %v5007 = vand.u32 %v4398, 4294901760
        %5008 = vmatpush1.msra.mxu0 %v5007
        %5009 = vmatprep.subr.mxu0 0.0
        %v5010 = vand.u32 %v4397, 4294901760
        %5011 = vmatpush1.msra.mxu0 %v5010
        %5012 = vmatprep.subr.mxu0 0.0
        %v5013 = vand.u32 %v4396, 4294901760
        %5014 = vmatpush1.msra.mxu0 %v5013
        %5015 = vmatprep.subr.mxu0 0.0
        %v5016 = vand.u32 %v4395, 4294901760
        %5017 = vmatpush1.msra.mxu0 %v5016
        %5018 = vmatprep.subr.mxu0 0.0
        %v5019 = vand.u32 %v4394, 4294901760
        %5020 = vmatpush1.msra.mxu0 %v5019
        %5021 = vmatprep.subr.mxu0 0.0
        %v5022 = vand.u32 %v4393, 4294901760
        %5023 = vmatpush1.msra.mxu0 %v5022
        %5024 = vmatprep.subr.mxu0 0.0
        %v5025 = vand.u32 %v4392, 4294901760
        %5026 = vmatpush1.msra.mxu0 %v5025
        %5027 = vmatprep.subr.mxu0 0.0
        %v5028 = vand.u32 %v4391, 4294901760
        %5029 = vmatpush1.msra.mxu0 %v5028
        %5030 = vmatprep.subr.mxu0 0.0
        %v5031 = vand.u32 %v4390, 4294901760
        %5032 = vmatpush1.msra.mxu0 %v5031
        %5033 = vmatprep.subr.mxu0 0.0
        %v5034 = vand.u32 %v4389, 4294901760
        %5035 = vmatpush1.msra.mxu0 %v5034
        %5036 = vmatprep.subr.mxu0 0.0
        %v5037 = vand.u32 %v4388, 4294901760
        %5038 = vmatpush1.msra.mxu0 %v5037
        %5039 = vmatprep.subr.mxu0 0.0
        %v5040 = vand.u32 %v4387, 4294901760
        %5041 = vmatpush1.msra.mxu0 %v5040
        %5042 = vmatprep.subr.mxu0 0.0
        %v5043 = vand.u32 %v4386, 4294901760
        %5044 = vmatpush1.msra.mxu0 %v5043
        %5045 = vmatprep.subr.mxu0 0.0
        %v5046 = vand.u32 %v4385, 4294901760
        %5047 = vmatpush1.msra.mxu0 %v5046
        %5048 = vmatprep.subr.mxu0 0.0
        %5049 = vmatpush2.msra.mxu0 0.0
        %5050 = vmatprep.subr.mxu0 0.0
        %5051 = vmatpush2.msra.mxu0 0.0
        %5052 = vmatprep.subr.mxu0 0.0
        %5053 = vmatpush2.msra.mxu0 0.0
        %5054 = vmatprep.subr.mxu0 0.0
        %5055 = vmatpush2.msra.mxu0 0.0
        %5056 = vmatprep.subr.mxu0 0.0
        %5057 = vmatpush2.msra.mxu0 0.0
        %5058 = vmatprep.subr.mxu0 0.0
        %5059 = vmatpush2.msra.mxu0 0.0
        %5060 = vmatprep.subr.mxu0 0.0
        %5061 = vmatpush2.msra.mxu0 0.0
        %5062 = vmatprep.subr.mxu0 0.0
        %5063 = vmatpush2.msra.mxu0 0.0
        %5064 = vmatprep.subr.mxu0 0.0
        %5065 = vmatpush2.msra.mxu0 0.0
        %5066 = vmatprep.subr.mxu0 0.0
        %5067 = vmatpush2.msra.mxu0 0.0
        %5068 = vmatprep.subr.mxu0 0.0
        %5069 = vmatpush2.msra.mxu0 0.0
        %5070 = vmatprep.subr.mxu0 0.0
        %5071 = vmatpush2.msra.mxu0 0.0
        %5072 = vmatprep.subr.mxu0 0.0
        %5073 = vmatpush2.msra.mxu0 0.0
        %5074 = vmatprep.subr.mxu0 0.0
        %5075 = vmatpush2.msra.mxu0 0.0
        %5076 = vmatprep.subr.mxu0 0.0
        %5077 = vmatpush2.msra.mxu0 0.0
        %5078 = vmatprep.subr.mxu0 0.0
        %5079 = vmatpush2.msra.mxu0 0.0
        %5080 = vmatprep.mubr.f32.mxu0 0.0
        %v5081 = vand.u32 %v4404, 4294901760
        %5082 = vmatmul.mubr.f32.gmra.mxu0 %v5081
        %v5083 = vpop.f32.mrf.mxu0
        %v5084 = vadd.f32 %v4991, %v5083
        %v5085 = vpop.f32.mrf.mxu0
        %5086 = vmatprep.mubr.f32.mxu0 0.0
        %v5087 = vand.u32 %v4406, 4294901760
        %5088 = vmatmul.mubr.f32.gmra.mxu0 %v5087
        %v5089 = vpop.f32.mrf.mxu0
        %v5090 = vadd.f32 %v4997, %v5089
        %v5091 = vpop.f32.mrf.mxu0
        %5092 = vdwg.mxu0
        %v5093 = vadd.f32 %v4382, %v5084
        %v5094 = vadd.f32 %v4383, %v5090
        %s5095 = scalar_lea.vmem %s1, 896
        %v5096 = vld [vmem:[%s5095] sm:$0xff]
        %v5097 = vld [vmem:[%s5095 + $0x8] sm:$0xff]
        %v5098 = vld [vmem:[%s5095 + $0x10] sm:$0xff]
        %v5099 = vld [vmem:[%s5095 + $0x18] sm:$0xff]
        %v5100 = vld [vmem:[%s5095 + $0x20] sm:$0xff]
        %v5101 = vld [vmem:[%s5095 + $0x28] sm:$0xff]
        %v5102 = vld [vmem:[%s5095 + $0x30] sm:$0xff]
        %v5103 = vld [vmem:[%s5095 + $0x38] sm:$0xff]
        %v5104 = vld [vmem:[%s5095 + $0x40] sm:$0xff]
        %v5105 = vld [vmem:[%s5095 + $0x48] sm:$0xff]
        %v5106 = vld [vmem:[%s5095 + $0x50] sm:$0xff]
        %v5107 = vld [vmem:[%s5095 + $0x58] sm:$0xff]
        %v5108 = vld [vmem:[%s5095 + $0x60] sm:$0xff]
        %v5109 = vld [vmem:[%s5095 + $0x68] sm:$0xff]
        %v5110 = vld [vmem:[%s5095 + $0x70] sm:$0xff]
        %v5111 = vld [vmem:[%s5095 + $0x78] sm:$0xff]
        %vm5112 = vcmask 1040384
        %v5113 = vrot.slane %v125, 7
        %v5114 = vrot.slane %v126, 7
        %v5115 = vsel %vm5112, %v5113, %v5114
        %v5116 = vrot.slane %v127, 7
        %v5117 = vsel %vm5112, %v5114, %v5116
        %5120 = vmatprep.subr.mxu0 0.0
        %v5121 = vand.u32 %v5111, 4294901760
        %5122 = vmatpush1.msra.mxu0 %v5121
        %5123 = vmatprep.subr.mxu0 0.0
        %v5124 = vand.u32 %v5110, 4294901760
        %5125 = vmatpush1.msra.mxu0 %v5124
        %5126 = vmatprep.subr.mxu0 0.0
        %v5127 = vand.u32 %v5109, 4294901760
        %5128 = vmatpush1.msra.mxu0 %v5127
        %5129 = vmatprep.subr.mxu0 0.0
        %v5130 = vand.u32 %v5108, 4294901760
        %5131 = vmatpush1.msra.mxu0 %v5130
        %5132 = vmatprep.subr.mxu0 0.0
        %v5133 = vand.u32 %v5107, 4294901760
        %5134 = vmatpush1.msra.mxu0 %v5133
        %5135 = vmatprep.subr.mxu0 0.0
        %v5136 = vand.u32 %v5106, 4294901760
        %5137 = vmatpush1.msra.mxu0 %v5136
        %5138 = vmatprep.subr.mxu0 0.0
        %v5139 = vand.u32 %v5105, 4294901760
        %5140 = vmatpush1.msra.mxu0 %v5139
        %5141 = vmatprep.subr.mxu0 0.0
        %v5142 = vand.u32 %v5104, 4294901760
        %5143 = vmatpush1.msra.mxu0 %v5142
        %5144 = vmatprep.subr.mxu0 0.0
        %v5145 = vand.u32 %v5103, 4294901760
        %5146 = vmatpush1.msra.mxu0 %v5145
        %5147 = vmatprep.subr.mxu0 0.0
        %v5148 = vand.u32 %v5102, 4294901760
        %5149 = vmatpush1.msra.mxu0 %v5148
        %5150 = vmatprep.subr.mxu0 0.0
        %v5151 = vand.u32 %v5101, 4294901760
        %5152 = vmatpush1.msra.mxu0 %v5151
        %5153 = vmatprep.subr.mxu0 0.0
        %v5154 = vand.u32 %v5100, 4294901760
        %5155 = vmatpush1.msra.mxu0 %v5154
        %5156 = vmatprep.subr.mxu0 0.0
        %v5157 = vand.u32 %v5099, 4294901760
        %5158 = vmatpush1.msra.mxu0 %v5157
        %5159 = vmatprep.subr.mxu0 0.0
        %v5160 = vand.u32 %v5098, 4294901760
        %5161 = vmatpush1.msra.mxu0 %v5160
        %5162 = vmatprep.subr.mxu0 0.0
        %v5163 = vand.u32 %v5097, 4294901760
        %5164 = vmatpush1.msra.mxu0 %v5163
        %5165 = vmatprep.subr.mxu0 0.0
        %v5166 = vand.u32 %v5096, 4294901760
        %5167 = vmatpush1.msra.mxu0 %v5166
        %5168 = vmatprep.subr.mxu0 0.0
        %5169 = vmatpush2.msra.mxu0 0.0
        %5170 = vmatprep.subr.mxu0 0.0
        %5171 = vmatpush2.msra.mxu0 0.0
        %5172 = vmatprep.subr.mxu0 0.0
        %5173 = vmatpush2.msra.mxu0 0.0
        %5174 = vmatprep.subr.mxu0 0.0
        %5175 = vmatpush2.msra.mxu0 0.0
        %5176 = vmatprep.subr.mxu0 0.0
        %5177 = vmatpush2.msra.mxu0 0.0
        %5178 = vmatprep.subr.mxu0 0.0
        %5179 = vmatpush2.msra.mxu0 0.0
        %5180 = vmatprep.subr.mxu0 0.0
        %5181 = vmatpush2.msra.mxu0 0.0
        %5182 = vmatprep.subr.mxu0 0.0
        %5183 = vmatpush2.msra.mxu0 0.0
        %5184 = vmatprep.subr.mxu0 0.0
        %5185 = vmatpush2.msra.mxu0 0.0
        %5186 = vmatprep.subr.mxu0 0.0
        %5187 = vmatpush2.msra.mxu0 0.0
        %5188 = vmatprep.subr.mxu0 0.0
        %5189 = vmatpush2.msra.mxu0 0.0
        %5190 = vmatprep.subr.mxu0 0.0
        %5191 = vmatpush2.msra.mxu0 0.0
        %5192 = vmatprep.subr.mxu0 0.0
        %5193 = vmatpush2.msra.mxu0 0.0
        %5194 = vmatprep.subr.mxu0 0.0
        %5195 = vmatpush2.msra.mxu0 0.0
        %5196 = vmatprep.subr.mxu0 0.0
        %5197 = vmatpush2.msra.mxu0 0.0
        %5198 = vmatprep.subr.mxu0 0.0
        %5199 = vmatpush2.msra.mxu0 0.0
        %5200 = vmatprep.mubr.f32.mxu0 0.0
        %v5201 = vand.u32 %v5115, 4294901760
        %v5202 = vsub.f32 %v5115, %v5201
        %v5203 = vand.u32 %v5202, 4294901760
        %v5204 = vsub.f32 %v5202, %v5203
        %v5205 = vand.u32 %v5204, 4294901760
        %5206 = vmatmul.mubr.f32.gmra.mxu0 %v5205
        %v5207 = vpop.f32.mrf.mxu0
        %v5208 = vadd.f32 0.0, %v5207
        %v5209 = vpop.f32.mrf.mxu0
        %5210 = vmatprep.mubr.f32.mxu0 0.0
        %v5211 = vand.u32 %v5117, 4294901760
        %v5212 = vsub.f32 %v5117, %v5211
        %v5213 = vand.u32 %v5212, 4294901760
        %v5214 = vsub.f32 %v5212, %v5213
        %v5215 = vand.u32 %v5214, 4294901760
        %5216 = vmatmul.mubr.f32.gmra.mxu0 %v5215
        %v5217 = vpop.f32.mrf.mxu0
        %v5218 = vadd.f32 0.0, %v5217
        %v5219 = vpop.f32.mrf.mxu0
        %5220 = vdwg.mxu0
        %5221 = vmatprep.subr.mxu0 0.0
        %v5222 = vand.u32 %v5111, 4294901760
        %v5223 = vsub.f32 %v5111, %v5222
        %v5224 = vand.u32 %v5223, 4294901760
        %v5225 = vsub.f32 %v5223, %v5224
        %v5226 = vand.u32 %v5225, 4294901760
        %5227 = vmatpush1.msra.mxu0 %v5226
        %5228 = vmatprep.subr.mxu0 0.0
        %v5229 = vand.u32 %v5110, 4294901760
        %v5230 = vsub.f32 %v5110, %v5229
        %v5231 = vand.u32 %v5230, 4294901760
        %v5232 = vsub.f32 %v5230, %v5231
        %v5233 = vand.u32 %v5232, 4294901760
        %5234 = vmatpush1.msra.mxu0 %v5233
        %5235 = vmatprep.subr.mxu0 0.0
        %v5236 = vand.u32 %v5109, 4294901760
        %v5237 = vsub.f32 %v5109, %v5236
        %v5238 = vand.u32 %v5237, 4294901760
        %v5239 = vsub.f32 %v5237, %v5238
        %v5240 = vand.u32 %v5239, 4294901760
        %5241 = vmatpush1.msra.mxu0 %v5240
        %5242 = vmatprep.subr.mxu0 0.0
        %v5243 = vand.u32 %v5108, 4294901760
        %v5244 = vsub.f32 %v5108, %v5243
        %v5245 = vand.u32 %v5244, 4294901760
        %v5246 = vsub.f32 %v5244, %v5245
        %v5247 = vand.u32 %v5246, 4294901760
        %5248 = vmatpush1.msra.mxu0 %v5247
        %5249 = vmatprep.subr.mxu0 0.0
        %v5250 = vand.u32 %v5107, 4294901760
        %v5251 = vsub.f32 %v5107, %v5250
        %v5252 = vand.u32 %v5251, 4294901760
        %v5253 = vsub.f32 %v5251, %v5252
        %v5254 = vand.u32 %v5253, 4294901760
        %5255 = vmatpush1.msra.mxu0 %v5254
        %5256 = vmatprep.subr.mxu0 0.0
        %v5257 = vand.u32 %v5106, 4294901760
        %v5258 = vsub.f32 %v5106, %v5257
        %v5259 = vand.u32 %v5258, 4294901760
        %v5260 = vsub.f32 %v5258, %v5259
        %v5261 = vand.u32 %v5260, 4294901760
        %5262 = vmatpush1.msra.mxu0 %v5261
        %5263 = vmatprep.subr.mxu0 0.0
        %v5264 = vand.u32 %v5105, 4294901760
        %v5265 = vsub.f32 %v5105, %v5264
        %v5266 = vand.u32 %v5265, 4294901760
        %v5267 = vsub.f32 %v5265, %v5266
        %v5268 = vand.u32 %v5267, 4294901760
        %5269 = vmatpush1.msra.mxu0 %v5268
        %5270 = vmatprep.subr.mxu0 0.0
        %v5271 = vand.u32 %v5104, 4294901760
        %v5272 = vsub.f32 %v5104, %v5271
        %v5273 = vand.u32 %v5272, 4294901760
        %v5274 = vsub.f32 %v5272, %v5273
        %v5275 = vand.u32 %v5274, 4294901760
        %5276 = vmatpush1.msra.mxu0 %v5275
        %5277 = vmatprep.subr.mxu0 0.0
        %v5278 = vand.u32 %v5103, 4294901760
        %v5279 = vsub.f32 %v5103, %v5278
        %v5280 = vand.u32 %v5279, 4294901760
        %v5281 = vsub.f32 %v5279, %v5280
        %v5282 = vand.u32 %v5281, 4294901760
        %5283 = vmatpush1.msra.mxu0 %v5282
        %5284 = vmatprep.subr.mxu0 0.0
        %v5285 = vand.u32 %v5102, 4294901760
        %v5286 = vsub.f32 %v5102, %v5285
        %v5287 = vand.u32 %v5286, 4294901760
        %v5288 = vsub.f32 %v5286, %v5287
        %v5289 = vand.u32 %v5288, 4294901760
        %5290 = vmatpush1.msra.mxu0 %v5289
        %5291 = vmatprep.subr.mxu0 0.0
        %v5292 = vand.u32 %v5101, 4294901760
        %v5293 = vsub.f32 %v5101, %v5292
        %v5294 = vand.u32 %v5293, 4294901760
        %v5295 = vsub.f32 %v5293, %v5294
        %v5296 = vand.u32 %v5295, 4294901760
        %5297 = vmatpush1.msra.mxu0 %v5296
        %5298 = vmatprep.subr.mxu0 0.0
        %v5299 = vand.u32 %v5100, 4294901760
        %v5300 = vsub.f32 %v5100, %v5299
        %v5301 = vand.u32 %v5300, 4294901760
        %v5302 = vsub.f32 %v5300, %v5301
        %v5303 = vand.u32 %v5302, 4294901760
        %5304 = vmatpush1.msra.mxu0 %v5303
        %5305 = vmatprep.subr.mxu0 0.0
        %v5306 = vand.u32 %v5099, 4294901760
        %v5307 = vsub.f32 %v5099, %v5306
        %v5308 = vand.u32 %v5307, 4294901760
        %v5309 = vsub.f32 %v5307, %v5308
        %v5310 = vand.u32 %v5309, 4294901760
        %5311 = vmatpush1.msra.mxu0 %v5310
        %5312 = vmatprep.subr.mxu0 0.0
        %v5313 = vand.u32 %v5098, 4294901760
        %v5314 = vsub.f32 %v5098, %v5313
        %v5315 = vand.u32 %v5314, 4294901760
        %v5316 = vsub.f32 %v5314, %v5315
        %v5317 = vand.u32 %v5316, 4294901760
        %5318 = vmatpush1.msra.mxu0 %v5317
        %5319 = vmatprep.subr.mxu0 0.0
        %v5320 = vand.u32 %v5097, 4294901760
        %v5321 = vsub.f32 %v5097, %v5320
        %v5322 = vand.u32 %v5321, 4294901760
        %v5323 = vsub.f32 %v5321, %v5322
        %v5324 = vand.u32 %v5323, 4294901760
        %5325 = vmatpush1.msra.mxu0 %v5324
        %5326 = vmatprep.subr.mxu0 0.0
        %v5327 = vand.u32 %v5096, 4294901760
        %v5328 = vsub.f32 %v5096, %v5327
        %v5329 = vand.u32 %v5328, 4294901760
        %v5330 = vsub.f32 %v5328, %v5329
        %v5331 = vand.u32 %v5330, 4294901760
        %5332 = vmatpush1.msra.mxu0 %v5331
        %5333 = vmatprep.subr.mxu0 0.0
        %5334 = vmatpush2.msra.mxu0 0.0
        %5335 = vmatprep.subr.mxu0 0.0
        %5336 = vmatpush2.msra.mxu0 0.0
        %5337 = vmatprep.subr.mxu0 0.0
        %5338 = vmatpush2.msra.mxu0 0.0
        %5339 = vmatprep.subr.mxu0 0.0
        %5340 = vmatpush2.msra.mxu0 0.0
        %5341 = vmatprep.subr.mxu0 0.0
        %5342 = vmatpush2.msra.mxu0 0.0
        %5343 = vmatprep.subr.mxu0 0.0
        %5344 = vmatpush2.msra.mxu0 0.0
        %5345 = vmatprep.subr.mxu0 0.0
        %5346 = vmatpush2.msra.mxu0 0.0
        %5347 = vmatprep.subr.mxu0 0.0
        %5348 = vmatpush2.msra.mxu0 0.0
        %5349 = vmatprep.subr.mxu0 0.0
        %5350 = vmatpush2.msra.mxu0 0.0
        %5351 = vmatprep.subr.mxu0 0.0
        %5352 = vmatpush2.msra.mxu0 0.0
        %5353 = vmatprep.subr.mxu0 0.0
        %5354 = vmatpush2.msra.mxu0 0.0
        %5355 = vmatprep.subr.mxu0 0.0
        %5356 = vmatpush2.msra.mxu0 0.0
        %5357 = vmatprep.subr.mxu0 0.0
        %5358 = vmatpush2.msra.mxu0 0.0
        %5359 = vmatprep.subr.mxu0 0.0
        %5360 = vmatpush2.msra.mxu0 0.0
        %5361 = vmatprep.subr.mxu0 0.0
        %5362 = vmatpush2.msra.mxu0 0.0
        %5363 = vmatprep.subr.mxu0 0.0
        %5364 = vmatpush2.msra.mxu0 0.0
        %5365 = vmatprep.mubr.f32.mxu0 0.0
        %v5366 = vand.u32 %v5115, 4294901760
        %5367 = vmatmul.mubr.f32.gmra.mxu0 %v5366
        %v5368 = vpop.f32.mrf.mxu0
        %v5369 = vadd.f32 %v5208, %v5368
        %v5370 = vpop.f32.mrf.mxu0
        %5371 = vmatprep.mubr.f32.mxu0 0.0
        %v5372 = vand.u32 %v5117, 4294901760
        %5373 = vmatmul.mubr.f32.gmra.mxu0 %v5372
        %v5374 = vpop.f32.mrf.mxu0
        %v5375 = vadd.f32 %v5218, %v5374
        %v5376 = vpop.f32.mrf.mxu0
        %5377 = vdwg.mxu0
        %5378 = vmatprep.subr.mxu0 0.0
        %v5379 = vand.u32 %v5111, 4294901760
        %v5380 = vsub.f32 %v5111, %v5379
        %5381 = vmatpush1.msra.mxu0 %v5380
        %5382 = vmatprep.subr.mxu0 0.0
        %v5383 = vand.u32 %v5110, 4294901760
        %v5384 = vsub.f32 %v5110, %v5383
        %5385 = vmatpush1.msra.mxu0 %v5384
        %5386 = vmatprep.subr.mxu0 0.0
        %v5387 = vand.u32 %v5109, 4294901760
        %v5388 = vsub.f32 %v5109, %v5387
        %5389 = vmatpush1.msra.mxu0 %v5388
        %5390 = vmatprep.subr.mxu0 0.0
        %v5391 = vand.u32 %v5108, 4294901760
        %v5392 = vsub.f32 %v5108, %v5391
        %5393 = vmatpush1.msra.mxu0 %v5392
        %5394 = vmatprep.subr.mxu0 0.0
        %v5395 = vand.u32 %v5107, 4294901760
        %v5396 = vsub.f32 %v5107, %v5395
        %5397 = vmatpush1.msra.mxu0 %v5396
        %5398 = vmatprep.subr.mxu0 0.0
        %v5399 = vand.u32 %v5106, 4294901760
        %v5400 = vsub.f32 %v5106, %v5399
        %5401 = vmatpush1.msra.mxu0 %v5400
        %5402 = vmatprep.subr.mxu0 0.0
        %v5403 = vand.u32 %v5105, 4294901760
        %v5404 = vsub.f32 %v5105, %v5403
        %5405 = vmatpush1.msra.mxu0 %v5404
        %5406 = vmatprep.subr.mxu0 0.0
        %v5407 = vand.u32 %v5104, 4294901760
        %v5408 = vsub.f32 %v5104, %v5407
        %5409 = vmatpush1.msra.mxu0 %v5408
        %5410 = vmatprep.subr.mxu0 0.0
        %v5411 = vand.u32 %v5103, 4294901760
        %v5412 = vsub.f32 %v5103, %v5411
        %5413 = vmatpush1.msra.mxu0 %v5412
        %5414 = vmatprep.subr.mxu0 0.0
        %v5415 = vand.u32 %v5102, 4294901760
        %v5416 = vsub.f32 %v5102, %v5415
        %5417 = vmatpush1.msra.mxu0 %v5416
        %5418 = vmatprep.subr.mxu0 0.0
        %v5419 = vand.u32 %v5101, 4294901760
        %v5420 = vsub.f32 %v5101, %v5419
        %5421 = vmatpush1.msra.mxu0 %v5420
        %5422 = vmatprep.subr.mxu0 0.0
        %v5423 = vand.u32 %v5100, 4294901760
        %v5424 = vsub.f32 %v5100, %v5423
        %5425 = vmatpush1.msra.mxu0 %v5424
        %5426 = vmatprep.subr.mxu0 0.0
        %v5427 = vand.u32 %v5099, 4294901760
        %v5428 = vsub.f32 %v5099, %v5427
        %5429 = vmatpush1.msra.mxu0 %v5428
        %5430 = vmatprep.subr.mxu0 0.0
        %v5431 = vand.u32 %v5098, 4294901760
        %v5432 = vsub.f32 %v5098, %v5431
        %5433 = vmatpush1.msra.mxu0 %v5432
        %5434 = vmatprep.subr.mxu0 0.0
        %v5435 = vand.u32 %v5097, 4294901760
        %v5436 = vsub.f32 %v5097, %v5435
        %5437 = vmatpush1.msra.mxu0 %v5436
        %5438 = vmatprep.subr.mxu0 0.0
        %v5439 = vand.u32 %v5096, 4294901760
        %v5440 = vsub.f32 %v5096, %v5439
        %5441 = vmatpush1.msra.mxu0 %v5440
        %5442 = vmatprep.subr.mxu0 0.0
        %5443 = vmatpush2.msra.mxu0 0.0
        %5444 = vmatprep.subr.mxu0 0.0
        %5445 = vmatpush2.msra.mxu0 0.0
        %5446 = vmatprep.subr.mxu0 0.0
        %5447 = vmatpush2.msra.mxu0 0.0
        %5448 = vmatprep.subr.mxu0 0.0
        %5449 = vmatpush2.msra.mxu0 0.0
        %5450 = vmatprep.subr.mxu0 0.0
        %5451 = vmatpush2.msra.mxu0 0.0
        %5452 = vmatprep.subr.mxu0 0.0
        %5453 = vmatpush2.msra.mxu0 0.0
        %5454 = vmatprep.subr.mxu0 0.0
        %5455 = vmatpush2.msra.mxu0 0.0
        %5456 = vmatprep.subr.mxu0 0.0
        %5457 = vmatpush2.msra.mxu0 0.0
        %5458 = vmatprep.subr.mxu0 0.0
        %5459 = vmatpush2.msra.mxu0 0.0
        %5460 = vmatprep.subr.mxu0 0.0
        %5461 = vmatpush2.msra.mxu0 0.0
        %5462 = vmatprep.subr.mxu0 0.0
        %5463 = vmatpush2.msra.mxu0 0.0
        %5464 = vmatprep.subr.mxu0 0.0
        %5465 = vmatpush2.msra.mxu0 0.0
        %5466 = vmatprep.subr.mxu0 0.0
        %5467 = vmatpush2.msra.mxu0 0.0
        %5468 = vmatprep.subr.mxu0 0.0
        %5469 = vmatpush2.msra.mxu0 0.0
        %5470 = vmatprep.subr.mxu0 0.0
        %5471 = vmatpush2.msra.mxu0 0.0
        %5472 = vmatprep.subr.mxu0 0.0
        %5473 = vmatpush2.msra.mxu0 0.0
        %5474 = vmatprep.mubr.f32.mxu0 0.0
        %v5475 = vand.u32 %v5115, 4294901760
        %v5476 = vsub.f32 %v5115, %v5475
        %5477 = vmatmul.mubr.f32.gmra.mxu0 %v5476
        %v5478 = vpop.f32.mrf.mxu0
        %v5479 = vadd.f32 %v5369, %v5478
        %v5480 = vpop.f32.mrf.mxu0
        %5481 = vmatprep.mubr.f32.mxu0 0.0
        %v5482 = vand.u32 %v5117, 4294901760
        %v5483 = vsub.f32 %v5117, %v5482
        %5484 = vmatmul.mubr.f32.gmra.mxu0 %v5483
        %v5485 = vpop.f32.mrf.mxu0
        %v5486 = vadd.f32 %v5375, %v5485
        %v5487 = vpop.f32.mrf.mxu0
        %5488 = vdwg.mxu0
        %5489 = vmatprep.subr.mxu0 0.0
        %v5490 = vand.u32 %v5111, 4294901760
        %5491 = vmatpush1.msra.mxu0 %v5490
        %5492 = vmatprep.subr.mxu0 0.0
        %v5493 = vand.u32 %v5110, 4294901760
        %5494 = vmatpush1.msra.mxu0 %v5493
        %5495 = vmatprep.subr.mxu0 0.0
        %v5496 = vand.u32 %v5109, 4294901760
        %5497 = vmatpush1.msra.mxu0 %v5496
        %5498 = vmatprep.subr.mxu0 0.0
        %v5499 = vand.u32 %v5108, 4294901760
        %5500 = vmatpush1.msra.mxu0 %v5499
        %5501 = vmatprep.subr.mxu0 0.0
        %v5502 = vand.u32 %v5107, 4294901760
        %5503 = vmatpush1.msra.mxu0 %v5502
        %5504 = vmatprep.subr.mxu0 0.0
        %v5505 = vand.u32 %v5106, 4294901760
        %5506 = vmatpush1.msra.mxu0 %v5505
        %5507 = vmatprep.subr.mxu0 0.0
        %v5508 = vand.u32 %v5105, 4294901760
        %5509 = vmatpush1.msra.mxu0 %v5508
        %5510 = vmatprep.subr.mxu0 0.0
        %v5511 = vand.u32 %v5104, 4294901760
        %5512 = vmatpush1.msra.mxu0 %v5511
        %5513 = vmatprep.subr.mxu0 0.0
        %v5514 = vand.u32 %v5103, 4294901760
        %5515 = vmatpush1.msra.mxu0 %v5514
        %5516 = vmatprep.subr.mxu0 0.0
        %v5517 = vand.u32 %v5102, 4294901760
        %5518 = vmatpush1.msra.mxu0 %v5517
        %5519 = vmatprep.subr.mxu0 0.0
        %v5520 = vand.u32 %v5101, 4294901760
        %5521 = vmatpush1.msra.mxu0 %v5520
        %5522 = vmatprep.subr.mxu0 0.0
        %v5523 = vand.u32 %v5100, 4294901760
        %5524 = vmatpush1.msra.mxu0 %v5523
        %5525 = vmatprep.subr.mxu0 0.0
        %v5526 = vand.u32 %v5099, 4294901760
        %5527 = vmatpush1.msra.mxu0 %v5526
        %5528 = vmatprep.subr.mxu0 0.0
        %v5529 = vand.u32 %v5098, 4294901760
        %5530 = vmatpush1.msra.mxu0 %v5529
        %5531 = vmatprep.subr.mxu0 0.0
        %v5532 = vand.u32 %v5097, 4294901760
        %5533 = vmatpush1.msra.mxu0 %v5532
        %5534 = vmatprep.subr.mxu0 0.0
        %v5535 = vand.u32 %v5096, 4294901760
        %5536 = vmatpush1.msra.mxu0 %v5535
        %5537 = vmatprep.subr.mxu0 0.0
        %5538 = vmatpush2.msra.mxu0 0.0
        %5539 = vmatprep.subr.mxu0 0.0
        %5540 = vmatpush2.msra.mxu0 0.0
        %5541 = vmatprep.subr.mxu0 0.0
        %5542 = vmatpush2.msra.mxu0 0.0
        %5543 = vmatprep.subr.mxu0 0.0
        %5544 = vmatpush2.msra.mxu0 0.0
        %5545 = vmatprep.subr.mxu0 0.0
        %5546 = vmatpush2.msra.mxu0 0.0
        %5547 = vmatprep.subr.mxu0 0.0
        %5548 = vmatpush2.msra.mxu0 0.0
        %5549 = vmatprep.subr.mxu0 0.0
        %5550 = vmatpush2.msra.mxu0 0.0
        %5551 = vmatprep.subr.mxu0 0.0
        %5552 = vmatpush2.msra.mxu0 0.0
        %5553 = vmatprep.subr.mxu0 0.0
        %5554 = vmatpush2.msra.mxu0 0.0
        %5555 = vmatprep.subr.mxu0 0.0
        %5556 = vmatpush2.msra.mxu0 0.0
        %5557 = vmatprep.subr.mxu0 0.0
        %5558 = vmatpush2.msra.mxu0 0.0
        %5559 = vmatprep.subr.mxu0 0.0
        %5560 = vmatpush2.msra.mxu0 0.0
        %5561 = vmatprep.subr.mxu0 0.0
        %5562 = vmatpush2.msra.mxu0 0.0
        %5563 = vmatprep.subr.mxu0 0.0
        %5564 = vmatpush2.msra.mxu0 0.0
        %5565 = vmatprep.subr.mxu0 0.0
        %5566 = vmatpush2.msra.mxu0 0.0
        %5567 = vmatprep.subr.mxu0 0.0
        %5568 = vmatpush2.msra.mxu0 0.0
        %5569 = vmatprep.mubr.f32.mxu0 0.0
        %v5570 = vand.u32 %v5115, 4294901760
        %v5571 = vsub.f32 %v5115, %v5570
        %v5572 = vand.u32 %v5571, 4294901760
        %5573 = vmatmul.mubr.f32.gmra.mxu0 %v5572
        %v5574 = vpop.f32.mrf.mxu0
        %v5575 = vadd.f32 %v5479, %v5574
        %v5576 = vpop.f32.mrf.mxu0
        %5577 = vmatprep.mubr.f32.mxu0 0.0
        %v5578 = vand.u32 %v5117, 4294901760
        %v5579 = vsub.f32 %v5117, %v5578
        %v5580 = vand.u32 %v5579, 4294901760
        %5581 = vmatmul.mubr.f32.gmra.mxu0 %v5580
        %v5582 = vpop.f32.mrf.mxu0
        %v5583 = vadd.f32 %v5486, %v5582
        %v5584 = vpop.f32.mrf.mxu0
        %5585 = vdwg.mxu0
        %5586 = vmatprep.subr.mxu0 0.0
        %v5587 = vand.u32 %v5111, 4294901760
        %v5588 = vsub.f32 %v5111, %v5587
        %v5589 = vand.u32 %v5588, 4294901760
        %5590 = vmatpush1.msra.mxu0 %v5589
        %5591 = vmatprep.subr.mxu0 0.0
        %v5592 = vand.u32 %v5110, 4294901760
        %v5593 = vsub.f32 %v5110, %v5592
        %v5594 = vand.u32 %v5593, 4294901760
        %5595 = vmatpush1.msra.mxu0 %v5594
        %5596 = vmatprep.subr.mxu0 0.0
        %v5597 = vand.u32 %v5109, 4294901760
        %v5598 = vsub.f32 %v5109, %v5597
        %v5599 = vand.u32 %v5598, 4294901760
        %5600 = vmatpush1.msra.mxu0 %v5599
        %5601 = vmatprep.subr.mxu0 0.0
        %v5602 = vand.u32 %v5108, 4294901760
        %v5603 = vsub.f32 %v5108, %v5602
        %v5604 = vand.u32 %v5603, 4294901760
        %5605 = vmatpush1.msra.mxu0 %v5604
        %5606 = vmatprep.subr.mxu0 0.0
        %v5607 = vand.u32 %v5107, 4294901760
        %v5608 = vsub.f32 %v5107, %v5607
        %v5609 = vand.u32 %v5608, 4294901760
        %5610 = vmatpush1.msra.mxu0 %v5609
        %5611 = vmatprep.subr.mxu0 0.0
        %v5612 = vand.u32 %v5106, 4294901760
        %v5613 = vsub.f32 %v5106, %v5612
        %v5614 = vand.u32 %v5613, 4294901760
        %5615 = vmatpush1.msra.mxu0 %v5614
        %5616 = vmatprep.subr.mxu0 0.0
        %v5617 = vand.u32 %v5105, 4294901760
        %v5618 = vsub.f32 %v5105, %v5617
        %v5619 = vand.u32 %v5618, 4294901760
        %5620 = vmatpush1.msra.mxu0 %v5619
        %5621 = vmatprep.subr.mxu0 0.0
        %v5622 = vand.u32 %v5104, 4294901760
        %v5623 = vsub.f32 %v5104, %v5622
        %v5624 = vand.u32 %v5623, 4294901760
        %5625 = vmatpush1.msra.mxu0 %v5624
        %5626 = vmatprep.subr.mxu0 0.0
        %v5627 = vand.u32 %v5103, 4294901760
        %v5628 = vsub.f32 %v5103, %v5627
        %v5629 = vand.u32 %v5628, 4294901760
        %5630 = vmatpush1.msra.mxu0 %v5629
        %5631 = vmatprep.subr.mxu0 0.0
        %v5632 = vand.u32 %v5102, 4294901760
        %v5633 = vsub.f32 %v5102, %v5632
        %v5634 = vand.u32 %v5633, 4294901760
        %5635 = vmatpush1.msra.mxu0 %v5634
        %5636 = vmatprep.subr.mxu0 0.0
        %v5637 = vand.u32 %v5101, 4294901760
        %v5638 = vsub.f32 %v5101, %v5637
        %v5639 = vand.u32 %v5638, 4294901760
        %5640 = vmatpush1.msra.mxu0 %v5639
        %5641 = vmatprep.subr.mxu0 0.0
        %v5642 = vand.u32 %v5100, 4294901760
        %v5643 = vsub.f32 %v5100, %v5642
        %v5644 = vand.u32 %v5643, 4294901760
        %5645 = vmatpush1.msra.mxu0 %v5644
        %5646 = vmatprep.subr.mxu0 0.0
        %v5647 = vand.u32 %v5099, 4294901760
        %v5648 = vsub.f32 %v5099, %v5647
        %v5649 = vand.u32 %v5648, 4294901760
        %5650 = vmatpush1.msra.mxu0 %v5649
        %5651 = vmatprep.subr.mxu0 0.0
        %v5652 = vand.u32 %v5098, 4294901760
        %v5653 = vsub.f32 %v5098, %v5652
        %v5654 = vand.u32 %v5653, 4294901760
        %5655 = vmatpush1.msra.mxu0 %v5654
        %5656 = vmatprep.subr.mxu0 0.0
        %v5657 = vand.u32 %v5097, 4294901760
        %v5658 = vsub.f32 %v5097, %v5657
        %v5659 = vand.u32 %v5658, 4294901760
        %5660 = vmatpush1.msra.mxu0 %v5659
        %5661 = vmatprep.subr.mxu0 0.0
        %v5662 = vand.u32 %v5096, 4294901760
        %v5663 = vsub.f32 %v5096, %v5662
        %v5664 = vand.u32 %v5663, 4294901760
        %5665 = vmatpush1.msra.mxu0 %v5664
        %5666 = vmatprep.subr.mxu0 0.0
        %5667 = vmatpush2.msra.mxu0 0.0
        %5668 = vmatprep.subr.mxu0 0.0
        %5669 = vmatpush2.msra.mxu0 0.0
        %5670 = vmatprep.subr.mxu0 0.0
        %5671 = vmatpush2.msra.mxu0 0.0
        %5672 = vmatprep.subr.mxu0 0.0
        %5673 = vmatpush2.msra.mxu0 0.0
        %5674 = vmatprep.subr.mxu0 0.0
        %5675 = vmatpush2.msra.mxu0 0.0
        %5676 = vmatprep.subr.mxu0 0.0
        %5677 = vmatpush2.msra.mxu0 0.0
        %5678 = vmatprep.subr.mxu0 0.0
        %5679 = vmatpush2.msra.mxu0 0.0
        %5680 = vmatprep.subr.mxu0 0.0
        %5681 = vmatpush2.msra.mxu0 0.0
        %5682 = vmatprep.subr.mxu0 0.0
        %5683 = vmatpush2.msra.mxu0 0.0
        %5684 = vmatprep.subr.mxu0 0.0
        %5685 = vmatpush2.msra.mxu0 0.0
        %5686 = vmatprep.subr.mxu0 0.0
        %5687 = vmatpush2.msra.mxu0 0.0
        %5688 = vmatprep.subr.mxu0 0.0
        %5689 = vmatpush2.msra.mxu0 0.0
        %5690 = vmatprep.subr.mxu0 0.0
        %5691 = vmatpush2.msra.mxu0 0.0
        %5692 = vmatprep.subr.mxu0 0.0
        %5693 = vmatpush2.msra.mxu0 0.0
        %5694 = vmatprep.subr.mxu0 0.0
        %5695 = vmatpush2.msra.mxu0 0.0
        %5696 = vmatprep.subr.mxu0 0.0
        %5697 = vmatpush2.msra.mxu0 0.0
        %5698 = vmatprep.mubr.f32.mxu0 0.0
        %v5699 = vand.u32 %v5115, 4294901760
        %5700 = vmatmul.mubr.f32.gmra.mxu0 %v5699
        %v5701 = vpop.f32.mrf.mxu0
        %v5702 = vadd.f32 %v5575, %v5701
        %v5703 = vpop.f32.mrf.mxu0
        %5704 = vmatprep.mubr.f32.mxu0 0.0
        %v5705 = vand.u32 %v5117, 4294901760
        %5706 = vmatmul.mubr.f32.gmra.mxu0 %v5705
        %v5707 = vpop.f32.mrf.mxu0
        %v5708 = vadd.f32 %v5583, %v5707
        %v5709 = vpop.f32.mrf.mxu0
        %5710 = vdwg.mxu0
        %5711 = vmatprep.subr.mxu0 0.0
        %v5712 = vand.u32 %v5111, 4294901760
        %5713 = vmatpush1.msra.mxu0 %v5712
        %5714 = vmatprep.subr.mxu0 0.0
        %v5715 = vand.u32 %v5110, 4294901760
        %5716 = vmatpush1.msra.mxu0 %v5715
        %5717 = vmatprep.subr.mxu0 0.0
        %v5718 = vand.u32 %v5109, 4294901760
        %5719 = vmatpush1.msra.mxu0 %v5718
        %5720 = vmatprep.subr.mxu0 0.0
        %v5721 = vand.u32 %v5108, 4294901760
        %5722 = vmatpush1.msra.mxu0 %v5721
        %5723 = vmatprep.subr.mxu0 0.0
        %v5724 = vand.u32 %v5107, 4294901760
        %5725 = vmatpush1.msra.mxu0 %v5724
        %5726 = vmatprep.subr.mxu0 0.0
        %v5727 = vand.u32 %v5106, 4294901760
        %5728 = vmatpush1.msra.mxu0 %v5727
        %5729 = vmatprep.subr.mxu0 0.0
        %v5730 = vand.u32 %v5105, 4294901760
        %5731 = vmatpush1.msra.mxu0 %v5730
        %5732 = vmatprep.subr.mxu0 0.0
        %v5733 = vand.u32 %v5104, 4294901760
        %5734 = vmatpush1.msra.mxu0 %v5733
        %5735 = vmatprep.subr.mxu0 0.0
        %v5736 = vand.u32 %v5103, 4294901760
        %5737 = vmatpush1.msra.mxu0 %v5736
        %5738 = vmatprep.subr.mxu0 0.0
        %v5739 = vand.u32 %v5102, 4294901760
        %5740 = vmatpush1.msra.mxu0 %v5739
        %5741 = vmatprep.subr.mxu0 0.0
        %v5742 = vand.u32 %v5101, 4294901760
        %5743 = vmatpush1.msra.mxu0 %v5742
        %5744 = vmatprep.subr.mxu0 0.0
        %v5745 = vand.u32 %v5100, 4294901760
        %5746 = vmatpush1.msra.mxu0 %v5745
        %5747 = vmatprep.subr.mxu0 0.0
        %v5748 = vand.u32 %v5099, 4294901760
        %5749 = vmatpush1.msra.mxu0 %v5748
        %5750 = vmatprep.subr.mxu0 0.0
        %v5751 = vand.u32 %v5098, 4294901760
        %5752 = vmatpush1.msra.mxu0 %v5751
        %5753 = vmatprep.subr.mxu0 0.0
        %v5754 = vand.u32 %v5097, 4294901760
        %5755 = vmatpush1.msra.mxu0 %v5754
        %5756 = vmatprep.subr.mxu0 0.0
        %v5757 = vand.u32 %v5096, 4294901760
        %5758 = vmatpush1.msra.mxu0 %v5757
        %5759 = vmatprep.subr.mxu0 0.0
        %5760 = vmatpush2.msra.mxu0 0.0
        %5761 = vmatprep.subr.mxu0 0.0
        %5762 = vmatpush2.msra.mxu0 0.0
        %5763 = vmatprep.subr.mxu0 0.0
        %5764 = vmatpush2.msra.mxu0 0.0
        %5765 = vmatprep.subr.mxu0 0.0
        %5766 = vmatpush2.msra.mxu0 0.0
        %5767 = vmatprep.subr.mxu0 0.0
        %5768 = vmatpush2.msra.mxu0 0.0
        %5769 = vmatprep.subr.mxu0 0.0
        %5770 = vmatpush2.msra.mxu0 0.0
        %5771 = vmatprep.subr.mxu0 0.0
        %5772 = vmatpush2.msra.mxu0 0.0
        %5773 = vmatprep.subr.mxu0 0.0
        %5774 = vmatpush2.msra.mxu0 0.0
        %5775 = vmatprep.subr.mxu0 0.0
        %5776 = vmatpush2.msra.mxu0 0.0
        %5777 = vmatprep.subr.mxu0 0.0
        %5778 = vmatpush2.msra.mxu0 0.0
        %5779 = vmatprep.subr.mxu0 0.0
        %5780 = vmatpush2.msra.mxu0 0.0
        %5781 = vmatprep.subr.mxu0 0.0
        %5782 = vmatpush2.msra.mxu0 0.0
        %5783 = vmatprep.subr.mxu0 0.0
        %5784 = vmatpush2.msra.mxu0 0.0
        %5785 = vmatprep.subr.mxu0 0.0
        %5786 = vmatpush2.msra.mxu0 0.0
        %5787 = vmatprep.subr.mxu0 0.0
        %5788 = vmatpush2.msra.mxu0 0.0
        %5789 = vmatprep.subr.mxu0 0.0
        %5790 = vmatpush2.msra.mxu0 0.0
        %5791 = vmatprep.mubr.f32.mxu0 0.0
        %v5792 = vand.u32 %v5115, 4294901760
        %5793 = vmatmul.mubr.f32.gmra.mxu0 %v5792
        %v5794 = vpop.f32.mrf.mxu0
        %v5795 = vadd.f32 %v5702, %v5794
        %v5796 = vpop.f32.mrf.mxu0
        %5797 = vmatprep.mubr.f32.mxu0 0.0
        %v5798 = vand.u32 %v5117, 4294901760
        %5799 = vmatmul.mubr.f32.gmra.mxu0 %v5798
        %v5800 = vpop.f32.mrf.mxu0
        %v5801 = vadd.f32 %v5708, %v5800
        %v5802 = vpop.f32.mrf.mxu0
        %5803 = vdwg.mxu0
        %v5804 = vadd.f32 %v5093, %v5795
        %v5805 = vadd.f32 %v5094, %v5801
        %s5806 = scalar_lea.vmem %s1, 1024
        %v5807 = vld [vmem:[%s5806] sm:$0xff]
        %v5808 = vld [vmem:[%s5806 + $0x8] sm:$0xff]
        %v5809 = vld [vmem:[%s5806 + $0x10] sm:$0xff]
        %v5810 = vld [vmem:[%s5806 + $0x18] sm:$0xff]
        %v5811 = vld [vmem:[%s5806 + $0x20] sm:$0xff]
        %v5812 = vld [vmem:[%s5806 + $0x28] sm:$0xff]
        %v5813 = vld [vmem:[%s5806 + $0x30] sm:$0xff]
        %v5814 = vld [vmem:[%s5806 + $0x38] sm:$0xff]
        %v5815 = vld [vmem:[%s5806 + $0x40] sm:$0xff]
        %v5816 = vld [vmem:[%s5806 + $0x48] sm:$0xff]
        %v5817 = vld [vmem:[%s5806 + $0x50] sm:$0xff]
        %v5818 = vld [vmem:[%s5806 + $0x58] sm:$0xff]
        %v5819 = vld [vmem:[%s5806 + $0x60] sm:$0xff]
        %v5820 = vld [vmem:[%s5806 + $0x68] sm:$0xff]
        %v5821 = vld [vmem:[%s5806 + $0x70] sm:$0xff]
        %v5822 = vld [vmem:[%s5806 + $0x78] sm:$0xff]
        %5823 = vmatprep.subr.mxu0 0.0
        %v5824 = vand.u32 %v5822, 4294901760
        %5825 = vmatpush1.msra.mxu0 %v5824
        %5826 = vmatprep.subr.mxu0 0.0
        %v5827 = vand.u32 %v5821, 4294901760
        %5828 = vmatpush1.msra.mxu0 %v5827
        %5829 = vmatprep.subr.mxu0 0.0
        %v5830 = vand.u32 %v5820, 4294901760
        %5831 = vmatpush1.msra.mxu0 %v5830
        %5832 = vmatprep.subr.mxu0 0.0
        %v5833 = vand.u32 %v5819, 4294901760
        %5834 = vmatpush1.msra.mxu0 %v5833
        %5835 = vmatprep.subr.mxu0 0.0
        %v5836 = vand.u32 %v5818, 4294901760
        %5837 = vmatpush1.msra.mxu0 %v5836
        %5838 = vmatprep.subr.mxu0 0.0
        %v5839 = vand.u32 %v5817, 4294901760
        %5840 = vmatpush1.msra.mxu0 %v5839
        %5841 = vmatprep.subr.mxu0 0.0
        %v5842 = vand.u32 %v5816, 4294901760
        %5843 = vmatpush1.msra.mxu0 %v5842
        %5844 = vmatprep.subr.mxu0 0.0
        %v5845 = vand.u32 %v5815, 4294901760
        %5846 = vmatpush1.msra.mxu0 %v5845
        %5847 = vmatprep.subr.mxu0 0.0
        %v5848 = vand.u32 %v5814, 4294901760
        %5849 = vmatpush1.msra.mxu0 %v5848
        %5850 = vmatprep.subr.mxu0 0.0
        %v5851 = vand.u32 %v5813, 4294901760
        %5852 = vmatpush1.msra.mxu0 %v5851
        %5853 = vmatprep.subr.mxu0 0.0
        %v5854 = vand.u32 %v5812, 4294901760
        %5855 = vmatpush1.msra.mxu0 %v5854
        %5856 = vmatprep.subr.mxu0 0.0
        %v5857 = vand.u32 %v5811, 4294901760
        %5858 = vmatpush1.msra.mxu0 %v5857
        %5859 = vmatprep.subr.mxu0 0.0
        %v5860 = vand.u32 %v5810, 4294901760
        %5861 = vmatpush1.msra.mxu0 %v5860
        %5862 = vmatprep.subr.mxu0 0.0
        %v5863 = vand.u32 %v5809, 4294901760
        %5864 = vmatpush1.msra.mxu0 %v5863
        %5865 = vmatprep.subr.mxu0 0.0
        %v5866 = vand.u32 %v5808, 4294901760
        %5867 = vmatpush1.msra.mxu0 %v5866
        %5868 = vmatprep.subr.mxu0 0.0
        %v5869 = vand.u32 %v5807, 4294901760
        %5870 = vmatpush1.msra.mxu0 %v5869
        %5871 = vmatprep.subr.mxu0 0.0
        %5872 = vmatpush2.msra.mxu0 0.0
        %5873 = vmatprep.subr.mxu0 0.0
        %5874 = vmatpush2.msra.mxu0 0.0
        %5875 = vmatprep.subr.mxu0 0.0
        %5876 = vmatpush2.msra.mxu0 0.0
        %5877 = vmatprep.subr.mxu0 0.0
        %5878 = vmatpush2.msra.mxu0 0.0
        %5879 = vmatprep.subr.mxu0 0.0
        %5880 = vmatpush2.msra.mxu0 0.0
        %5881 = vmatprep.subr.mxu0 0.0
        %5882 = vmatpush2.msra.mxu0 0.0
        %5883 = vmatprep.subr.mxu0 0.0
        %5884 = vmatpush2.msra.mxu0 0.0
        %5885 = vmatprep.subr.mxu0 0.0
        %5886 = vmatpush2.msra.mxu0 0.0
        %5887 = vmatprep.subr.mxu0 0.0
        %5888 = vmatpush2.msra.mxu0 0.0
        %5889 = vmatprep.subr.mxu0 0.0
        %5890 = vmatpush2.msra.mxu0 0.0
        %5891 = vmatprep.subr.mxu0 0.0
        %5892 = vmatpush2.msra.mxu0 0.0
        %5893 = vmatprep.subr.mxu0 0.0
        %5894 = vmatpush2.msra.mxu0 0.0
        %5895 = vmatprep.subr.mxu0 0.0
        %5896 = vmatpush2.msra.mxu0 0.0
        %5897 = vmatprep.subr.mxu0 0.0
        %5898 = vmatpush2.msra.mxu0 0.0
        %5899 = vmatprep.subr.mxu0 0.0
        %5900 = vmatpush2.msra.mxu0 0.0
        %5901 = vmatprep.subr.mxu0 0.0
        %5902 = vmatpush2.msra.mxu0 0.0
        %5903 = vmatprep.mubr.f32.mxu0 0.0
        %v5904 = vand.u32 %v126, 4294901760
        %v5905 = vsub.f32 %v126, %v5904
        %v5906 = vand.u32 %v5905, 4294901760
        %v5907 = vsub.f32 %v5905, %v5906
        %v5908 = vand.u32 %v5907, 4294901760
        %5909 = vmatmul.mubr.f32.gmra.mxu0 %v5908
        %v5910 = vpop.f32.mrf.mxu0
        %v5911 = vadd.f32 0.0, %v5910
        %v5912 = vpop.f32.mrf.mxu0
        %5913 = vmatprep.mubr.f32.mxu0 0.0
        %v5914 = vand.u32 %v127, 4294901760
        %v5915 = vsub.f32 %v127, %v5914
        %v5916 = vand.u32 %v5915, 4294901760
        %v5917 = vsub.f32 %v5915, %v5916
        %v5918 = vand.u32 %v5917, 4294901760
        %5919 = vmatmul.mubr.f32.gmra.mxu0 %v5918
        %v5920 = vpop.f32.mrf.mxu0
        %v5921 = vadd.f32 0.0, %v5920
        %v5922 = vpop.f32.mrf.mxu0
        %5923 = vdwg.mxu0
        %5924 = vmatprep.subr.mxu0 0.0
        %v5925 = vand.u32 %v5822, 4294901760
        %v5926 = vsub.f32 %v5822, %v5925
        %v5927 = vand.u32 %v5926, 4294901760
        %v5928 = vsub.f32 %v5926, %v5927
        %v5929 = vand.u32 %v5928, 4294901760
        %5930 = vmatpush1.msra.mxu0 %v5929
        %5931 = vmatprep.subr.mxu0 0.0
        %v5932 = vand.u32 %v5821, 4294901760
        %v5933 = vsub.f32 %v5821, %v5932
        %v5934 = vand.u32 %v5933, 4294901760
        %v5935 = vsub.f32 %v5933, %v5934
        %v5936 = vand.u32 %v5935, 4294901760
        %5937 = vmatpush1.msra.mxu0 %v5936
        %5938 = vmatprep.subr.mxu0 0.0
        %v5939 = vand.u32 %v5820, 4294901760
        %v5940 = vsub.f32 %v5820, %v5939
        %v5941 = vand.u32 %v5940, 4294901760
        %v5942 = vsub.f32 %v5940, %v5941
        %v5943 = vand.u32 %v5942, 4294901760
        %5944 = vmatpush1.msra.mxu0 %v5943
        %5945 = vmatprep.subr.mxu0 0.0
        %v5946 = vand.u32 %v5819, 4294901760
        %v5947 = vsub.f32 %v5819, %v5946
        %v5948 = vand.u32 %v5947, 4294901760
        %v5949 = vsub.f32 %v5947, %v5948
        %v5950 = vand.u32 %v5949, 4294901760
        %5951 = vmatpush1.msra.mxu0 %v5950
        %5952 = vmatprep.subr.mxu0 0.0
        %v5953 = vand.u32 %v5818, 4294901760
        %v5954 = vsub.f32 %v5818, %v5953
        %v5955 = vand.u32 %v5954, 4294901760
        %v5956 = vsub.f32 %v5954, %v5955
        %v5957 = vand.u32 %v5956, 4294901760
        %5958 = vmatpush1.msra.mxu0 %v5957
        %5959 = vmatprep.subr.mxu0 0.0
        %v5960 = vand.u32 %v5817, 4294901760
        %v5961 = vsub.f32 %v5817, %v5960
        %v5962 = vand.u32 %v5961, 4294901760
        %v5963 = vsub.f32 %v5961, %v5962
        %v5964 = vand.u32 %v5963, 4294901760
        %5965 = vmatpush1.msra.mxu0 %v5964
        %5966 = vmatprep.subr.mxu0 0.0
        %v5967 = vand.u32 %v5816, 4294901760
        %v5968 = vsub.f32 %v5816, %v5967
        %v5969 = vand.u32 %v5968, 4294901760
        %v5970 = vsub.f32 %v5968, %v5969
        %v5971 = vand.u32 %v5970, 4294901760
        %5972 = vmatpush1.msra.mxu0 %v5971
        %5973 = vmatprep.subr.mxu0 0.0
        %v5974 = vand.u32 %v5815, 4294901760
        %v5975 = vsub.f32 %v5815, %v5974
        %v5976 = vand.u32 %v5975, 4294901760
        %v5977 = vsub.f32 %v5975, %v5976
        %v5978 = vand.u32 %v5977, 4294901760
        %5979 = vmatpush1.msra.mxu0 %v5978
        %5980 = vmatprep.subr.mxu0 0.0
        %v5981 = vand.u32 %v5814, 4294901760
        %v5982 = vsub.f32 %v5814, %v5981
        %v5983 = vand.u32 %v5982, 4294901760
        %v5984 = vsub.f32 %v5982, %v5983
        %v5985 = vand.u32 %v5984, 4294901760
        %5986 = vmatpush1.msra.mxu0 %v5985
        %5987 = vmatprep.subr.mxu0 0.0
        %v5988 = vand.u32 %v5813, 4294901760
        %v5989 = vsub.f32 %v5813, %v5988
        %v5990 = vand.u32 %v5989, 4294901760
        %v5991 = vsub.f32 %v5989, %v5990
        %v5992 = vand.u32 %v5991, 4294901760
        %5993 = vmatpush1.msra.mxu0 %v5992
        %5994 = vmatprep.subr.mxu0 0.0
        %v5995 = vand.u32 %v5812, 4294901760
        %v5996 = vsub.f32 %v5812, %v5995
        %v5997 = vand.u32 %v5996, 4294901760
        %v5998 = vsub.f32 %v5996, %v5997
        %v5999 = vand.u32 %v5998, 4294901760
        %6000 = vmatpush1.msra.mxu0 %v5999
        %6001 = vmatprep.subr.mxu0 0.0
        %v6002 = vand.u32 %v5811, 4294901760
        %v6003 = vsub.f32 %v5811, %v6002
        %v6004 = vand.u32 %v6003, 4294901760
        %v6005 = vsub.f32 %v6003, %v6004
        %v6006 = vand.u32 %v6005, 4294901760
        %6007 = vmatpush1.msra.mxu0 %v6006
        %6008 = vmatprep.subr.mxu0 0.0
        %v6009 = vand.u32 %v5810, 4294901760
        %v6010 = vsub.f32 %v5810, %v6009
        %v6011 = vand.u32 %v6010, 4294901760
        %v6012 = vsub.f32 %v6010, %v6011
        %v6013 = vand.u32 %v6012, 4294901760
        %6014 = vmatpush1.msra.mxu0 %v6013
        %6015 = vmatprep.subr.mxu0 0.0
        %v6016 = vand.u32 %v5809, 4294901760
        %v6017 = vsub.f32 %v5809, %v6016
        %v6018 = vand.u32 %v6017, 4294901760
        %v6019 = vsub.f32 %v6017, %v6018
        %v6020 = vand.u32 %v6019, 4294901760
        %6021 = vmatpush1.msra.mxu0 %v6020
        %6022 = vmatprep.subr.mxu0 0.0
        %v6023 = vand.u32 %v5808, 4294901760
        %v6024 = vsub.f32 %v5808, %v6023
        %v6025 = vand.u32 %v6024, 4294901760
        %v6026 = vsub.f32 %v6024, %v6025
        %v6027 = vand.u32 %v6026, 4294901760
        %6028 = vmatpush1.msra.mxu0 %v6027
        %6029 = vmatprep.subr.mxu0 0.0
        %v6030 = vand.u32 %v5807, 4294901760
        %v6031 = vsub.f32 %v5807, %v6030
        %v6032 = vand.u32 %v6031, 4294901760
        %v6033 = vsub.f32 %v6031, %v6032
        %v6034 = vand.u32 %v6033, 4294901760
        %6035 = vmatpush1.msra.mxu0 %v6034
        %6036 = vmatprep.subr.mxu0 0.0
        %6037 = vmatpush2.msra.mxu0 0.0
        %6038 = vmatprep.subr.mxu0 0.0
        %6039 = vmatpush2.msra.mxu0 0.0
        %6040 = vmatprep.subr.mxu0 0.0
        %6041 = vmatpush2.msra.mxu0 0.0
        %6042 = vmatprep.subr.mxu0 0.0
        %6043 = vmatpush2.msra.mxu0 0.0
        %6044 = vmatprep.subr.mxu0 0.0
        %6045 = vmatpush2.msra.mxu0 0.0
        %6046 = vmatprep.subr.mxu0 0.0
        %6047 = vmatpush2.msra.mxu0 0.0
        %6048 = vmatprep.subr.mxu0 0.0
        %6049 = vmatpush2.msra.mxu0 0.0
        %6050 = vmatprep.subr.mxu0 0.0
        %6051 = vmatpush2.msra.mxu0 0.0
        %6052 = vmatprep.subr.mxu0 0.0
        %6053 = vmatpush2.msra.mxu0 0.0
        %6054 = vmatprep.subr.mxu0 0.0
        %6055 = vmatpush2.msra.mxu0 0.0
        %6056 = vmatprep.subr.mxu0 0.0
        %6057 = vmatpush2.msra.mxu0 0.0
        %6058 = vmatprep.subr.mxu0 0.0
        %6059 = vmatpush2.msra.mxu0 0.0
        %6060 = vmatprep.subr.mxu0 0.0
        %6061 = vmatpush2.msra.mxu0 0.0
        %6062 = vmatprep.subr.mxu0 0.0
        %6063 = vmatpush2.msra.mxu0 0.0
        %6064 = vmatprep.subr.mxu0 0.0
        %6065 = vmatpush2.msra.mxu0 0.0
        %6066 = vmatprep.subr.mxu0 0.0
        %6067 = vmatpush2.msra.mxu0 0.0
        %6068 = vmatprep.mubr.f32.mxu0 0.0
        %v6069 = vand.u32 %v126, 4294901760
        %6070 = vmatmul.mubr.f32.gmra.mxu0 %v6069
        %v6071 = vpop.f32.mrf.mxu0
        %v6072 = vadd.f32 %v5911, %v6071
        %v6073 = vpop.f32.mrf.mxu0
        %6074 = vmatprep.mubr.f32.mxu0 0.0
        %v6075 = vand.u32 %v127, 4294901760
        %6076 = vmatmul.mubr.f32.gmra.mxu0 %v6075
        %v6077 = vpop.f32.mrf.mxu0
        %v6078 = vadd.f32 %v5921, %v6077
        %v6079 = vpop.f32.mrf.mxu0
        %6080 = vdwg.mxu0
        %6081 = vmatprep.subr.mxu0 0.0
        %v6082 = vand.u32 %v5822, 4294901760
        %v6083 = vsub.f32 %v5822, %v6082
        %6084 = vmatpush1.msra.mxu0 %v6083
        %6085 = vmatprep.subr.mxu0 0.0
        %v6086 = vand.u32 %v5821, 4294901760
        %v6087 = vsub.f32 %v5821, %v6086
        %6088 = vmatpush1.msra.mxu0 %v6087
        %6089 = vmatprep.subr.mxu0 0.0
        %v6090 = vand.u32 %v5820, 4294901760
        %v6091 = vsub.f32 %v5820, %v6090
        %6092 = vmatpush1.msra.mxu0 %v6091
        %6093 = vmatprep.subr.mxu0 0.0
        %v6094 = vand.u32 %v5819, 4294901760
        %v6095 = vsub.f32 %v5819, %v6094
        %6096 = vmatpush1.msra.mxu0 %v6095
        %6097 = vmatprep.subr.mxu0 0.0
        %v6098 = vand.u32 %v5818, 4294901760
        %v6099 = vsub.f32 %v5818, %v6098
        %6100 = vmatpush1.msra.mxu0 %v6099
        %6101 = vmatprep.subr.mxu0 0.0
        %v6102 = vand.u32 %v5817, 4294901760
        %v6103 = vsub.f32 %v5817, %v6102
        %6104 = vmatpush1.msra.mxu0 %v6103
        %6105 = vmatprep.subr.mxu0 0.0
        %v6106 = vand.u32 %v5816, 4294901760
        %v6107 = vsub.f32 %v5816, %v6106
        %6108 = vmatpush1.msra.mxu0 %v6107
        %6109 = vmatprep.subr.mxu0 0.0
        %v6110 = vand.u32 %v5815, 4294901760
        %v6111 = vsub.f32 %v5815, %v6110
        %6112 = vmatpush1.msra.mxu0 %v6111
        %6113 = vmatprep.subr.mxu0 0.0
        %v6114 = vand.u32 %v5814, 4294901760
        %v6115 = vsub.f32 %v5814, %v6114
        %6116 = vmatpush1.msra.mxu0 %v6115
        %6117 = vmatprep.subr.mxu0 0.0
        %v6118 = vand.u32 %v5813, 4294901760
        %v6119 = vsub.f32 %v5813, %v6118
        %6120 = vmatpush1.msra.mxu0 %v6119
        %6121 = vmatprep.subr.mxu0 0.0
        %v6122 = vand.u32 %v5812, 4294901760
        %v6123 = vsub.f32 %v5812, %v6122
        %6124 = vmatpush1.msra.mxu0 %v6123
        %6125 = vmatprep.subr.mxu0 0.0
        %v6126 = vand.u32 %v5811, 4294901760
        %v6127 = vsub.f32 %v5811, %v6126
        %6128 = vmatpush1.msra.mxu0 %v6127
        %6129 = vmatprep.subr.mxu0 0.0
        %v6130 = vand.u32 %v5810, 4294901760
        %v6131 = vsub.f32 %v5810, %v6130
        %6132 = vmatpush1.msra.mxu0 %v6131
        %6133 = vmatprep.subr.mxu0 0.0
        %v6134 = vand.u32 %v5809, 4294901760
        %v6135 = vsub.f32 %v5809, %v6134
        %6136 = vmatpush1.msra.mxu0 %v6135
        %6137 = vmatprep.subr.mxu0 0.0
        %v6138 = vand.u32 %v5808, 4294901760
        %v6139 = vsub.f32 %v5808, %v6138
        %6140 = vmatpush1.msra.mxu0 %v6139
        %6141 = vmatprep.subr.mxu0 0.0
        %v6142 = vand.u32 %v5807, 4294901760
        %v6143 = vsub.f32 %v5807, %v6142
        %6144 = vmatpush1.msra.mxu0 %v6143
        %6145 = vmatprep.subr.mxu0 0.0
        %6146 = vmatpush2.msra.mxu0 0.0
        %6147 = vmatprep.subr.mxu0 0.0
        %6148 = vmatpush2.msra.mxu0 0.0
        %6149 = vmatprep.subr.mxu0 0.0
        %6150 = vmatpush2.msra.mxu0 0.0
        %6151 = vmatprep.subr.mxu0 0.0
        %6152 = vmatpush2.msra.mxu0 0.0
        %6153 = vmatprep.subr.mxu0 0.0
        %6154 = vmatpush2.msra.mxu0 0.0
        %6155 = vmatprep.subr.mxu0 0.0
        %6156 = vmatpush2.msra.mxu0 0.0
        %6157 = vmatprep.subr.mxu0 0.0
        %6158 = vmatpush2.msra.mxu0 0.0
        %6159 = vmatprep.subr.mxu0 0.0
        %6160 = vmatpush2.msra.mxu0 0.0
        %6161 = vmatprep.subr.mxu0 0.0
        %6162 = vmatpush2.msra.mxu0 0.0
        %6163 = vmatprep.subr.mxu0 0.0
        %6164 = vmatpush2.msra.mxu0 0.0
        %6165 = vmatprep.subr.mxu0 0.0
        %6166 = vmatpush2.msra.mxu0 0.0
        %6167 = vmatprep.subr.mxu0 0.0
        %6168 = vmatpush2.msra.mxu0 0.0
        %6169 = vmatprep.subr.mxu0 0.0
        %6170 = vmatpush2.msra.mxu0 0.0
        %6171 = vmatprep.subr.mxu0 0.0
        %6172 = vmatpush2.msra.mxu0 0.0
        %6173 = vmatprep.subr.mxu0 0.0
        %6174 = vmatpush2.msra.mxu0 0.0
        %6175 = vmatprep.subr.mxu0 0.0
        %6176 = vmatpush2.msra.mxu0 0.0
        %6177 = vmatprep.mubr.f32.mxu0 0.0
        %v6178 = vand.u32 %v126, 4294901760
        %v6179 = vsub.f32 %v126, %v6178
        %6180 = vmatmul.mubr.f32.gmra.mxu0 %v6179
        %v6181 = vpop.f32.mrf.mxu0
        %v6182 = vadd.f32 %v6072, %v6181
        %v6183 = vpop.f32.mrf.mxu0
        %6184 = vmatprep.mubr.f32.mxu0 0.0
        %v6185 = vand.u32 %v127, 4294901760
        %v6186 = vsub.f32 %v127, %v6185
        %6187 = vmatmul.mubr.f32.gmra.mxu0 %v6186
        %v6188 = vpop.f32.mrf.mxu0
        %v6189 = vadd.f32 %v6078, %v6188
        %v6190 = vpop.f32.mrf.mxu0
        %6191 = vdwg.mxu0
        %6192 = vmatprep.subr.mxu0 0.0
        %v6193 = vand.u32 %v5822, 4294901760
        %6194 = vmatpush1.msra.mxu0 %v6193
        %6195 = vmatprep.subr.mxu0 0.0
        %v6196 = vand.u32 %v5821, 4294901760
        %6197 = vmatpush1.msra.mxu0 %v6196
        %6198 = vmatprep.subr.mxu0 0.0
        %v6199 = vand.u32 %v5820, 4294901760
        %6200 = vmatpush1.msra.mxu0 %v6199
        %6201 = vmatprep.subr.mxu0 0.0
        %v6202 = vand.u32 %v5819, 4294901760
        %6203 = vmatpush1.msra.mxu0 %v6202
        %6204 = vmatprep.subr.mxu0 0.0
        %v6205 = vand.u32 %v5818, 4294901760
        %6206 = vmatpush1.msra.mxu0 %v6205
        %6207 = vmatprep.subr.mxu0 0.0
        %v6208 = vand.u32 %v5817, 4294901760
        %6209 = vmatpush1.msra.mxu0 %v6208
        %6210 = vmatprep.subr.mxu0 0.0
        %v6211 = vand.u32 %v5816, 4294901760
        %6212 = vmatpush1.msra.mxu0 %v6211
        %6213 = vmatprep.subr.mxu0 0.0
        %v6214 = vand.u32 %v5815, 4294901760
        %6215 = vmatpush1.msra.mxu0 %v6214
        %6216 = vmatprep.subr.mxu0 0.0
        %v6217 = vand.u32 %v5814, 4294901760
        %6218 = vmatpush1.msra.mxu0 %v6217
        %6219 = vmatprep.subr.mxu0 0.0
        %v6220 = vand.u32 %v5813, 4294901760
        %6221 = vmatpush1.msra.mxu0 %v6220
        %6222 = vmatprep.subr.mxu0 0.0
        %v6223 = vand.u32 %v5812, 4294901760
        %6224 = vmatpush1.msra.mxu0 %v6223
        %6225 = vmatprep.subr.mxu0 0.0
        %v6226 = vand.u32 %v5811, 4294901760
        %6227 = vmatpush1.msra.mxu0 %v6226
        %6228 = vmatprep.subr.mxu0 0.0
        %v6229 = vand.u32 %v5810, 4294901760
        %6230 = vmatpush1.msra.mxu0 %v6229
        %6231 = vmatprep.subr.mxu0 0.0
        %v6232 = vand.u32 %v5809, 4294901760
        %6233 = vmatpush1.msra.mxu0 %v6232
        %6234 = vmatprep.subr.mxu0 0.0
        %v6235 = vand.u32 %v5808, 4294901760
        %6236 = vmatpush1.msra.mxu0 %v6235
        %6237 = vmatprep.subr.mxu0 0.0
        %v6238 = vand.u32 %v5807, 4294901760
        %6239 = vmatpush1.msra.mxu0 %v6238
        %6240 = vmatprep.subr.mxu0 0.0
        %6241 = vmatpush2.msra.mxu0 0.0
        %6242 = vmatprep.subr.mxu0 0.0
        %6243 = vmatpush2.msra.mxu0 0.0
        %6244 = vmatprep.subr.mxu0 0.0
        %6245 = vmatpush2.msra.mxu0 0.0
        %6246 = vmatprep.subr.mxu0 0.0
        %6247 = vmatpush2.msra.mxu0 0.0
        %6248 = vmatprep.subr.mxu0 0.0
        %6249 = vmatpush2.msra.mxu0 0.0
        %6250 = vmatprep.subr.mxu0 0.0
        %6251 = vmatpush2.msra.mxu0 0.0
        %6252 = vmatprep.subr.mxu0 0.0
        %6253 = vmatpush2.msra.mxu0 0.0
        %6254 = vmatprep.subr.mxu0 0.0
        %6255 = vmatpush2.msra.mxu0 0.0
        %6256 = vmatprep.subr.mxu0 0.0
        %6257 = vmatpush2.msra.mxu0 0.0
        %6258 = vmatprep.subr.mxu0 0.0
        %6259 = vmatpush2.msra.mxu0 0.0
        %6260 = vmatprep.subr.mxu0 0.0
        %6261 = vmatpush2.msra.mxu0 0.0
        %6262 = vmatprep.subr.mxu0 0.0
        %6263 = vmatpush2.msra.mxu0 0.0
        %6264 = vmatprep.subr.mxu0 0.0
        %6265 = vmatpush2.msra.mxu0 0.0
        %6266 = vmatprep.subr.mxu0 0.0
        %6267 = vmatpush2.msra.mxu0 0.0
        %6268 = vmatprep.subr.mxu0 0.0
        %6269 = vmatpush2.msra.mxu0 0.0
        %6270 = vmatprep.subr.mxu0 0.0
        %6271 = vmatpush2.msra.mxu0 0.0
        %6272 = vmatprep.mubr.f32.mxu0 0.0
        %v6273 = vand.u32 %v126, 4294901760
        %v6274 = vsub.f32 %v126, %v6273
        %v6275 = vand.u32 %v6274, 4294901760
        %6276 = vmatmul.mubr.f32.gmra.mxu0 %v6275
        %v6277 = vpop.f32.mrf.mxu0
        %v6278 = vadd.f32 %v6182, %v6277
        %v6279 = vpop.f32.mrf.mxu0
        %6280 = vmatprep.mubr.f32.mxu0 0.0
        %v6281 = vand.u32 %v127, 4294901760
        %v6282 = vsub.f32 %v127, %v6281
        %v6283 = vand.u32 %v6282, 4294901760
        %6284 = vmatmul.mubr.f32.gmra.mxu0 %v6283
        %v6285 = vpop.f32.mrf.mxu0
        %v6286 = vadd.f32 %v6189, %v6285
        %v6287 = vpop.f32.mrf.mxu0
        %6288 = vdwg.mxu0
        %6289 = vmatprep.subr.mxu0 0.0
        %v6290 = vand.u32 %v5822, 4294901760
        %v6291 = vsub.f32 %v5822, %v6290
        %v6292 = vand.u32 %v6291, 4294901760
        %6293 = vmatpush1.msra.mxu0 %v6292
        %6294 = vmatprep.subr.mxu0 0.0
        %v6295 = vand.u32 %v5821, 4294901760
        %v6296 = vsub.f32 %v5821, %v6295
        %v6297 = vand.u32 %v6296, 4294901760
        %6298 = vmatpush1.msra.mxu0 %v6297
        %6299 = vmatprep.subr.mxu0 0.0
        %v6300 = vand.u32 %v5820, 4294901760
        %v6301 = vsub.f32 %v5820, %v6300
        %v6302 = vand.u32 %v6301, 4294901760
        %6303 = vmatpush1.msra.mxu0 %v6302
        %6304 = vmatprep.subr.mxu0 0.0
        %v6305 = vand.u32 %v5819, 4294901760
        %v6306 = vsub.f32 %v5819, %v6305
        %v6307 = vand.u32 %v6306, 4294901760
        %6308 = vmatpush1.msra.mxu0 %v6307
        %6309 = vmatprep.subr.mxu0 0.0
        %v6310 = vand.u32 %v5818, 4294901760
        %v6311 = vsub.f32 %v5818, %v6310
        %v6312 = vand.u32 %v6311, 4294901760
        %6313 = vmatpush1.msra.mxu0 %v6312
        %6314 = vmatprep.subr.mxu0 0.0
        %v6315 = vand.u32 %v5817, 4294901760
        %v6316 = vsub.f32 %v5817, %v6315
        %v6317 = vand.u32 %v6316, 4294901760
        %6318 = vmatpush1.msra.mxu0 %v6317
        %6319 = vmatprep.subr.mxu0 0.0
        %v6320 = vand.u32 %v5816, 4294901760
        %v6321 = vsub.f32 %v5816, %v6320
        %v6322 = vand.u32 %v6321, 4294901760
        %6323 = vmatpush1.msra.mxu0 %v6322
        %6324 = vmatprep.subr.mxu0 0.0
        %v6325 = vand.u32 %v5815, 4294901760
        %v6326 = vsub.f32 %v5815, %v6325
        %v6327 = vand.u32 %v6326, 4294901760
        %6328 = vmatpush1.msra.mxu0 %v6327
        %6329 = vmatprep.subr.mxu0 0.0
        %v6330 = vand.u32 %v5814, 4294901760
        %v6331 = vsub.f32 %v5814, %v6330
        %v6332 = vand.u32 %v6331, 4294901760
        %6333 = vmatpush1.msra.mxu0 %v6332
        %6334 = vmatprep.subr.mxu0 0.0
        %v6335 = vand.u32 %v5813, 4294901760
        %v6336 = vsub.f32 %v5813, %v6335
        %v6337 = vand.u32 %v6336, 4294901760
        %6338 = vmatpush1.msra.mxu0 %v6337
        %6339 = vmatprep.subr.mxu0 0.0
        %v6340 = vand.u32 %v5812, 4294901760
        %v6341 = vsub.f32 %v5812, %v6340
        %v6342 = vand.u32 %v6341, 4294901760
        %6343 = vmatpush1.msra.mxu0 %v6342
        %6344 = vmatprep.subr.mxu0 0.0
        %v6345 = vand.u32 %v5811, 4294901760
        %v6346 = vsub.f32 %v5811, %v6345
        %v6347 = vand.u32 %v6346, 4294901760
        %6348 = vmatpush1.msra.mxu0 %v6347
        %6349 = vmatprep.subr.mxu0 0.0
        %v6350 = vand.u32 %v5810, 4294901760
        %v6351 = vsub.f32 %v5810, %v6350
        %v6352 = vand.u32 %v6351, 4294901760
        %6353 = vmatpush1.msra.mxu0 %v6352
        %6354 = vmatprep.subr.mxu0 0.0
        %v6355 = vand.u32 %v5809, 4294901760
        %v6356 = vsub.f32 %v5809, %v6355
        %v6357 = vand.u32 %v6356, 4294901760
        %6358 = vmatpush1.msra.mxu0 %v6357
        %6359 = vmatprep.subr.mxu0 0.0
        %v6360 = vand.u32 %v5808, 4294901760
        %v6361 = vsub.f32 %v5808, %v6360
        %v6362 = vand.u32 %v6361, 4294901760
        %6363 = vmatpush1.msra.mxu0 %v6362
        %6364 = vmatprep.subr.mxu0 0.0
        %v6365 = vand.u32 %v5807, 4294901760
        %v6366 = vsub.f32 %v5807, %v6365
        %v6367 = vand.u32 %v6366, 4294901760
        %6368 = vmatpush1.msra.mxu0 %v6367
        %6369 = vmatprep.subr.mxu0 0.0
        %6370 = vmatpush2.msra.mxu0 0.0
        %6371 = vmatprep.subr.mxu0 0.0
        %6372 = vmatpush2.msra.mxu0 0.0
        %6373 = vmatprep.subr.mxu0 0.0
        %6374 = vmatpush2.msra.mxu0 0.0
        %6375 = vmatprep.subr.mxu0 0.0
        %6376 = vmatpush2.msra.mxu0 0.0
        %6377 = vmatprep.subr.mxu0 0.0
        %6378 = vmatpush2.msra.mxu0 0.0
        %6379 = vmatprep.subr.mxu0 0.0
        %6380 = vmatpush2.msra.mxu0 0.0
        %6381 = vmatprep.subr.mxu0 0.0
        %6382 = vmatpush2.msra.mxu0 0.0
        %6383 = vmatprep.subr.mxu0 0.0
        %6384 = vmatpush2.msra.mxu0 0.0
        %6385 = vmatprep.subr.mxu0 0.0
        %6386 = vmatpush2.msra.mxu0 0.0
        %6387 = vmatprep.subr.mxu0 0.0
        %6388 = vmatpush2.msra.mxu0 0.0
        %6389 = vmatprep.subr.mxu0 0.0
        %6390 = vmatpush2.msra.mxu0 0.0
        %6391 = vmatprep.subr.mxu0 0.0
        %6392 = vmatpush2.msra.mxu0 0.0
        %6393 = vmatprep.subr.mxu0 0.0
        %6394 = vmatpush2.msra.mxu0 0.0
        %6395 = vmatprep.subr.mxu0 0.0
        %6396 = vmatpush2.msra.mxu0 0.0
        %6397 = vmatprep.subr.mxu0 0.0
        %6398 = vmatpush2.msra.mxu0 0.0
        %6399 = vmatprep.subr.mxu0 0.0
        %6400 = vmatpush2.msra.mxu0 0.0
        %6401 = vmatprep.mubr.f32.mxu0 0.0
        %v6402 = vand.u32 %v126, 4294901760
        %6403 = vmatmul.mubr.f32.gmra.mxu0 %v6402
        %v6404 = vpop.f32.mrf.mxu0
        %v6405 = vadd.f32 %v6278, %v6404
        %v6406 = vpop.f32.mrf.mxu0
        %6407 = vmatprep.mubr.f32.mxu0 0.0
        %v6408 = vand.u32 %v127, 4294901760
        %6409 = vmatmul.mubr.f32.gmra.mxu0 %v6408
        %v6410 = vpop.f32.mrf.mxu0
        %v6411 = vadd.f32 %v6286, %v6410
        %v6412 = vpop.f32.mrf.mxu0
        %6413 = vdwg.mxu0
        %6414 = vmatprep.subr.mxu0 0.0
        %v6415 = vand.u32 %v5822, 4294901760
        %6416 = vmatpush1.msra.mxu0 %v6415
        %6417 = vmatprep.subr.mxu0 0.0
        %v6418 = vand.u32 %v5821, 4294901760
        %6419 = vmatpush1.msra.mxu0 %v6418
        %6420 = vmatprep.subr.mxu0 0.0
        %v6421 = vand.u32 %v5820, 4294901760
        %6422 = vmatpush1.msra.mxu0 %v6421
        %6423 = vmatprep.subr.mxu0 0.0
        %v6424 = vand.u32 %v5819, 4294901760
        %6425 = vmatpush1.msra.mxu0 %v6424
        %6426 = vmatprep.subr.mxu0 0.0
        %v6427 = vand.u32 %v5818, 4294901760
        %6428 = vmatpush1.msra.mxu0 %v6427
        %6429 = vmatprep.subr.mxu0 0.0
        %v6430 = vand.u32 %v5817, 4294901760
        %6431 = vmatpush1.msra.mxu0 %v6430
        %6432 = vmatprep.subr.mxu0 0.0
        %v6433 = vand.u32 %v5816, 4294901760
        %6434 = vmatpush1.msra.mxu0 %v6433
        %6435 = vmatprep.subr.mxu0 0.0
        %v6436 = vand.u32 %v5815, 4294901760
        %6437 = vmatpush1.msra.mxu0 %v6436
        %6438 = vmatprep.subr.mxu0 0.0
        %v6439 = vand.u32 %v5814, 4294901760
        %6440 = vmatpush1.msra.mxu0 %v6439
        %6441 = vmatprep.subr.mxu0 0.0
        %v6442 = vand.u32 %v5813, 4294901760
        %6443 = vmatpush1.msra.mxu0 %v6442
        %6444 = vmatprep.subr.mxu0 0.0
        %v6445 = vand.u32 %v5812, 4294901760
        %6446 = vmatpush1.msra.mxu0 %v6445
        %6447 = vmatprep.subr.mxu0 0.0
        %v6448 = vand.u32 %v5811, 4294901760
        %6449 = vmatpush1.msra.mxu0 %v6448
        %6450 = vmatprep.subr.mxu0 0.0
        %v6451 = vand.u32 %v5810, 4294901760
        %6452 = vmatpush1.msra.mxu0 %v6451
        %6453 = vmatprep.subr.mxu0 0.0
        %v6454 = vand.u32 %v5809, 4294901760
        %6455 = vmatpush1.msra.mxu0 %v6454
        %6456 = vmatprep.subr.mxu0 0.0
        %v6457 = vand.u32 %v5808, 4294901760
        %6458 = vmatpush1.msra.mxu0 %v6457
        %6459 = vmatprep.subr.mxu0 0.0
        %v6460 = vand.u32 %v5807, 4294901760
        %6461 = vmatpush1.msra.mxu0 %v6460
        %6462 = vmatprep.subr.mxu0 0.0
        %6463 = vmatpush2.msra.mxu0 0.0
        %6464 = vmatprep.subr.mxu0 0.0
        %6465 = vmatpush2.msra.mxu0 0.0
        %6466 = vmatprep.subr.mxu0 0.0
        %6467 = vmatpush2.msra.mxu0 0.0
        %6468 = vmatprep.subr.mxu0 0.0
        %6469 = vmatpush2.msra.mxu0 0.0
        %6470 = vmatprep.subr.mxu0 0.0
        %6471 = vmatpush2.msra.mxu0 0.0
        %6472 = vmatprep.subr.mxu0 0.0
        %6473 = vmatpush2.msra.mxu0 0.0
        %6474 = vmatprep.subr.mxu0 0.0
        %6475 = vmatpush2.msra.mxu0 0.0
        %6476 = vmatprep.subr.mxu0 0.0
        %6477 = vmatpush2.msra.mxu0 0.0
        %6478 = vmatprep.subr.mxu0 0.0
        %6479 = vmatpush2.msra.mxu0 0.0
        %6480 = vmatprep.subr.mxu0 0.0
        %6481 = vmatpush2.msra.mxu0 0.0
        %6482 = vmatprep.subr.mxu0 0.0
        %6483 = vmatpush2.msra.mxu0 0.0
        %6484 = vmatprep.subr.mxu0 0.0
        %6485 = vmatpush2.msra.mxu0 0.0
        %6486 = vmatprep.subr.mxu0 0.0
        %6487 = vmatpush2.msra.mxu0 0.0
        %6488 = vmatprep.subr.mxu0 0.0
        %6489 = vmatpush2.msra.mxu0 0.0
        %6490 = vmatprep.subr.mxu0 0.0
        %6491 = vmatpush2.msra.mxu0 0.0
        %6492 = vmatprep.subr.mxu0 0.0
        %6493 = vmatpush2.msra.mxu0 0.0
        %6494 = vmatprep.mubr.f32.mxu0 0.0
        %v6495 = vand.u32 %v126, 4294901760
        %6496 = vmatmul.mubr.f32.gmra.mxu0 %v6495
        %v6497 = vpop.f32.mrf.mxu0
        %v6498 = vadd.f32 %v6405, %v6497
        %v6499 = vpop.f32.mrf.mxu0
        %6500 = vmatprep.mubr.f32.mxu0 0.0
        %v6501 = vand.u32 %v127, 4294901760
        %6502 = vmatmul.mubr.f32.gmra.mxu0 %v6501
        %v6503 = vpop.f32.mrf.mxu0
        %v6504 = vadd.f32 %v6411, %v6503
        %v6505 = vpop.f32.mrf.mxu0
        %6506 = vdwg.mxu0
        %v6507 = vadd.f32 %v5804, %v6498
        %v6508 = vadd.f32 %v5805, %v6504
        %6509 = vst [vmem:[%s121] sm:$0xff] %v6507
        %6510 = vst [vmem:[%s121 + $0x8] sm:$0xff] %v6508
        %s6511 = sand.u32 %s66, 1
        %s6512 = scalar_lea.sflag [#allocation3], %s6511
        %s6513 = sand.u32 %s66, 1
        %s6514 = smul.addr %s6513, 16
        %s6515 = scalar_lea.vmem [#allocation2], %s6514
        // Predicated region
        $region29: #{extrinsic_forward.1} parent=27 // pred_check
          %p6516 = pneg %p76
        $region30: #{extrinsic_forward.1} parent=27 // pred_check_branch
          %6518 = sbr.rel (%p6516) target = $region32
        $region31: #{extrinsic_forward.1} parent=27 // pred_region
          %s6519 = smul.u32 2, %s16
          %s6521 = ssub.s32 256, 256
          %6522 = vsyncadd %s6512, %s6521
          %s6523 = smul.addr %s6519, 128
          %s6524 = scalar_lea.hbm %s2, %s6523
          %s6525 = sshll.u32 %s6515, 4
          %s6526 = int_to_ptr.vmem [resolvable:$true] %s6525
          %6531 = dma.vmem_to_hbm [thread:$0]  %s6526, 256, %s6524, %s6512, 128, 128, 8
        $region32: #{extrinsic_forward.1} parent=27 // pred_fallthru
          _
      $region28: #{extrinsic_forward.1} parent=5 // pred_fallthru
        _
      %p6532 = scmp.le.s32.totalorder 2, %s11
      // Predicated region
      $region33: #{extrinsic_forward.1} parent=5 // pred_check
        %p6533 = pneg %p6532
      $region34: #{extrinsic_forward.1} parent=5 // pred_check_branch
        %6535 = sbr.rel (%p6533) target = $region36
      $region35: #{extrinsic_forward.1} parent=5 // pred_region
        %s6536 = ssub.s32 %s11, 2
        // Predicated region
        $region37: #{extrinsic_forward.1} parent=35 // pred_check
          %p6537 = pneg %p82
        $region38: #{extrinsic_forward.1} parent=35 // pred_check_branch
          %6539 = sbr.rel (%p6537) target = $region40
        $region39: #{extrinsic_forward.1} parent=35 // pred_region
          %s6540 = sand.u32 %s67, 1
          %s6541 = scalar_lea.sflag [#allocation3], %s6540
          %s6542 = sand.u32 %s67, 1
          %s6543 = smul.addr %s6542, 16
          %s6544 = scalar_lea.vmem [#allocation2], %s6543
          %6545 = dma.done %s6541, 256
        $region40: #{extrinsic_forward.1} parent=35 // pred_fallthru
          _
      $region36: #{extrinsic_forward.1} parent=5 // pred_fallthru
        _
    $region6: #{extrinsic_forward.1} parent=1 // loop_footer
      %s15 = sadd.s32 1, %s11
    $region7: #{extrinsic_forward.1} parent=1 // loop_footer_branch
      %10 = sbr.rel target = $region3
    $region8: #{extrinsic_forward.1} parent=1 // loop_exit
      _
    %6546 = vsyncpa [#allocation3], 1
    %s6547 = scalar_lea.sflag [#allocation3], 1
    %6548 = vsyncpa %s6547, 1

</llo_original>
